<compile_context>
chip_gen: v7x
topology: tpu7x:2x2x1
jax: 0.10.0
libtpu: 0.0.40
codegen_flags: <defaults>
</compile_context>

<pallas_src>
import jax
import jax.numpy as jnp
import numpy as np
from jax.experimental import pallas as pl
from jax.experimental.pallas import tpu as pltpu


# Row layout of the packed "small params" slab (width 11 lanes).
SP_MG_W1 = 0     # rows  0:11, cols 0:11   merge_fc Linear(11,11) weight (in,out)
SP_MG_W2 = 11    # rows 11:22, cols 0:7    merge_fc Linear(11,7)  weight (in,out)
SP_MG_B1 = 22    # row  22,    cols 0:11   merge_fc bias 1
SP_MG_B2 = 23    # row  23,    cols 0:7    merge_fc bias 2
SP_WM = 24       # row  24,    cols 0:4    [wm_w0, wm_w1, wm_w2, wm_b]
SP_NT_B1 = 25    # row  25,    cols 0:4    no_time_fc bias 1
SP_NT_B2 = 26    # row  26,    cols 0:4    no_time_fc bias 2
SP_NT_W2 = 27    # rows 27:31, cols 0:4    no_time_fc Linear(4,4) weight (in,out)
SP_NT_W1 = 31    # rows 31:31+N, cols 0:4  no_time_fc Linear(N,4) weight (in,out)


def _lstm_fc_cycle_kernel(xw_ref, xnt_ref, lw_ref, fc_ref, sp_ref, out_ref):
    R, T7, F = xw_ref.shape            # R = 3*B (weeks folded into rows), T7 = 7
    H = fc_ref.shape[1] - 1            # hidden size
    B = R // 3
    N = xnt_ref.shape[1]

    xw = xw_ref[...]                   # (3B, 7, F), weeks-major rows: s*B + b

    # --- cycle min/max normalization on the last feature, per ORIGINAL sample
    #     over all 21 steps, applied twice exactly as in the PyTorch reference --
    last = xw[:, :, F - 1].reshape(3, B, T7)                       # (3, B, 7)
    mini = jnp.min(jnp.min(last, axis=2, keepdims=True), axis=0, keepdims=True)
    maxi = jnp.max(jnp.max(last, axis=2, keepdims=True), axis=0, keepdims=True)
    rng = maxi - mini                                              # (1, B, 1)
    inv = 1.0 / rng                                                # one divide
    norm = (last - mini) * inv
    norm = (norm - mini) * inv                                     # (3, B, 7)

    # --- LSTM weights (packed slab: whh rows 0:H, wih rows H:H+F, bias last) --
    whh = lw_ref[0:H, :]                                           # (H, 4H)
    wih_top = lw_ref[H:H + F - 1, :]                               # (F-1, 4H)
    wih_last = lw_ref[H + F - 1:H + F, :]                          # (1, 4H)
    b_gate = lw_ref[H + F:H + F + 1, :]                            # (1, 4H)

    # --- hoisted input projection (single matmul, off the serial chain) -------
    #     x[:, :, :F-1] @ wih_top  +  norm * wih_last  +  b
    x2 = xw.reshape(R * T7, F)
    ih = jnp.dot(x2[:, :F - 1], wih_top, preferred_element_type=jnp.float32)
    ih = ih + norm.reshape(R * T7, 1) * wih_last + b_gate          # (R*7, 4H)
    ih = ih.reshape(R, T7, 4 * H)

    # --- 7-step recurrence, all 3 weeks in the row (sublane) dimension --------
    h = jnp.zeros((R, H), jnp.float32)
    c = jnp.zeros((R, H), jnp.float32)
    hs = []
    for t in range(T7):                                            # static unroll
        if t == 0:
            gates = ih[:, 0, :]                 # h == 0: skip recurrent matmul
        else:
            gates = ih[:, t, :] + jnp.dot(h, whh,
                                          preferred_element_type=jnp.float32)
        act = jax.nn.sigmoid(gates)             # one full 128-lane EUP pass
        g_g = jnp.tanh(gates[:, 2 * H:3 * H])
        c = act[:, H:2 * H] * c + act[:, 0:H] * g_g
        h = act[:, 3 * H:4 * H] * jnp.tanh(c)
        hs.append(h)
    hseq = jnp.stack(hs, axis=1)                                   # (R, 7, H)

    # --- per-week Linear(H,1) heads: one batched contraction after the loop ---
    fcw = fc_ref[:, 0:H]                                           # (R, H)
    fcb = fc_ref[:, H:H + 1]                                       # (R, 1)
    week_vals = jnp.sum(hseq * fcw[:, None, :], axis=-1) + fcb     # (R, 7)

    # --- week_merge: Linear(3, 1) over the three weeks ------------------------
    wv = week_vals.reshape(3, B, T7)                               # (3, B, 7)
    wm = sp_ref[SP_WM:SP_WM + 1, 0:4]                              # (1, 4)
    out_time = (wv[0] * wm[:, 0:1] + wv[1] * wm[:, 1:2]
                + wv[2] * wm[:, 2:3] + wm[:, 3:4])                 # (B, 7)

    # --- no_time_fc: Linear(N,4) -> ReLU -> Linear(4,4) ------------------------
    nt_w1 = sp_ref[SP_NT_W1:SP_NT_W1 + N, 0:4]
    nt_w2 = sp_ref[SP_NT_W2:SP_NT_W2 + 4, 0:4]
    nt_b1 = sp_ref[SP_NT_B1:SP_NT_B1 + 1, 0:4]
    nt_b2 = sp_ref[SP_NT_B2:SP_NT_B2 + 1, 0:4]
    xnt = xnt_ref[...]                                             # (B, N)
    h1 = jnp.maximum(
        jnp.dot(xnt, nt_w1, preferred_element_type=jnp.float32) + nt_b1, 0.0)
    out_nt = jnp.dot(h1, nt_w2, preferred_element_type=jnp.float32) + nt_b2

    # --- merge_fc: Linear(11,11) -> ReLU -> Linear(11,7) -----------------------
    mg_w1 = sp_ref[SP_MG_W1:SP_MG_W1 + 11, 0:11]
    mg_w2 = sp_ref[SP_MG_W2:SP_MG_W2 + 11, 0:7]
    mg_b1 = sp_ref[SP_MG_B1:SP_MG_B1 + 1, 0:11]
    mg_b2 = sp_ref[SP_MG_B2:SP_MG_B2 + 1, 0:7]
    merged = jnp.concatenate([out_time, out_nt], axis=1)           # (B, 11)
    m1 = jnp.maximum(
        jnp.dot(merged, mg_w1, preferred_element_type=jnp.float32) + mg_b1, 0.0)
    m2 = jnp.dot(m1, mg_w2, preferred_element_type=jnp.float32) + mg_b2  # (B, 7)

    # --- de-normalize ----------------------------------------------------------
    out_ref[...] = m2 * rng.reshape(B, 1) + mini.reshape(B, 1)


def pack_params(params, batch_size):
    """Pack the many tiny parameter tensors into 3 slabs (fewer DMA inputs)."""
    H = params["w_hh_T"].shape[0]
    N = params["nt_w1"].shape[0]
    B = batch_size

    # LSTM slab: whh (rows 0:H), wih (rows H:H+F), bias (last row); width 4H.
    lstm_slab = jnp.concatenate(
        [params["w_hh_T"], params["w_ih_T"], params["b_lstm"]], axis=0)

    # Week-FC slab: per-row (week-gathered) head weights + bias column.
    fcw_rows = jnp.repeat(params["fc_week_w"], B, axis=0)          # (3B, H)
    fcb_rows = jnp.repeat(params["fc_week_b"].reshape(3, 1), B, axis=0)
    fc_slab = jnp.concatenate([fcw_rows, fcb_rows], axis=1)        # (3B, H+1)

    # Small-FC slab (layout constants above).
    small = jnp.zeros((SP_NT_W1 + N, 11), jnp.float32)
    small = small.at[SP_MG_W1:SP_MG_W1 + 11, 0:11].set(params["mg_w1"])
    small = small.at[SP_MG_W2:SP_MG_W2 + 11, 0:7].set(params["mg_w2"])
    small = small.at[SP_MG_B1, 0:11].set(params["mg_b1"][0])
    small = small.at[SP_MG_B2, 0:7].set(params["mg_b2"][0])
    small = small.at[SP_WM, 0:3].set(params["wm_w"].reshape(3))
    small = small.at[SP_WM, 3].set(params["wm_b"][0, 0])
    small = small.at[SP_NT_B1, 0:4].set(params["nt_b1"][0])
    small = small.at[SP_NT_B2, 0:4].set(params["nt_b2"][0])
    small = small.at[SP_NT_W2:SP_NT_W2 + 4, 0:4].set(params["nt_w2"])
    small = small.at[SP_NT_W1:SP_NT_W1 + N, 0:4].set(params["nt_w1"])

    return {"lstm": lstm_slab, "fc": fc_slab, "small": small}


def lstm_fc_cycle_forward(x_time, x_no_time, packed):
    B, T, F = x_time.shape
    assert T == 21, "sequence length must be 21 (3 weeks of 7 days)"
    # Fold the 3 weeks into the batch dimension (weeks-major rows: s*B + b).
    xw = jnp.transpose(x_time.astype(jnp.float32).reshape(B, 3, 7, F),
                       (1, 0, 2, 3)).reshape(3 * B, 7, F)
    vmem = pl.BlockSpec(memory_space=pltpu.MemorySpace.VMEM)
    return pl.pallas_call(
        _lstm_fc_cycle_kernel,
        out_shape=jax.ShapeDtypeStruct((B, 7), jnp.float32),
        in_specs=[vmem] * 5,
        out_specs=vmem,
    )(xw, x_no_time.astype(jnp.float32),
      packed["lstm"], packed["fc"], packed["small"])


def init_params(key, input_size, hidden_size, no_time_size):
    """Deterministic synthetic parameters (PyTorch shapes, stored transposed)."""
    H, F, N = hidden_size, input_size, no_time_size
    ks = jax.random.split(key, 20)
    u = lambda k, shape, s=0.2: jax.random.uniform(k, shape, jnp.float32, -s, s)

    w_ih = u(ks[0], (4 * H, F))                   # PyTorch weight_ih_l0
    w_hh = u(ks[1], (4 * H, H))                   # PyTorch weight_hh_l0
    b_ih = u(ks[2], (4 * H,))
    b_hh = u(ks[3], (4 * H,))

    fc_week_w = jnp.stack([u(ks[4 + i], (H,)) for i in range(3)], axis=0)   # (3, H)
    fc_week_b = jnp.stack([u(ks[7 + i], ()) for i in range(3)]).reshape(1, 3)

    return {
        "w_ih_T": jnp.transpose(w_ih),                       # (F, 4H)
        "w_hh_T": jnp.transpose(w_hh),                       # (H, 4H)
        "b_lstm": (b_ih + b_hh).reshape(1, 4 * H),           # (1, 4H)
        "fc_week_w": fc_week_w,                              # (3, H)
        "fc_week_b": fc_week_b,                              # (1, 3)
        "wm_w": u(ks[10], (1, 3)),                           # week_merge weight
        "wm_b": u(ks[11], (1, 1)),
        "nt_w1": jnp.transpose(u(ks[12], (4, N))),           # (N, 4)
        "nt_b1": u(ks[13], (1, 4)),
        "nt_w2": jnp.transpose(u(ks[14], (4, 4))),           # (4, 4)
        "nt_b2": u(ks[15], (1, 4)),
        "mg_w1": jnp.transpose(u(ks[16], (11, 11))),         # (11, 11)
        "mg_b1": u(ks[17], (1, 11)),
        "mg_w2": jnp.transpose(u(ks[18], (7, 11))),          # (11, 7)
        "mg_b2": u(ks[19], (1, 7)),
    }


def reference_forward(x_time, x_no_time, params):
    """Plain-JAX mirror of the PyTorch forward for verification."""
    last = x_time[:, :, -1]
    mini = jnp.min(last, axis=1, keepdims=True)
    maxi = jnp.max(last, axis=1, keepdims=True)
    rng = maxi - mini
    norm = (last - mini) / rng
    norm = (norm - mini) / rng
    x = x_time.at[:, :, -1].set(norm)

    wih, whh, b = params["w_ih_T"], params["w_hh_T"], params["b_lstm"]
    H = whh.shape[0]

    def lstm(xs):
        B = xs.shape[0]
        h = jnp.zeros((B, H), jnp.float32)
        c = jnp.zeros((B, H), jnp.float32)
        hs = []
        for t in range(xs.shape[1]):
            g = xs[:, t] @ wih + h @ whh + b
            i = jax.nn.sigmoid(g[:, :H])
            f = jax.nn.sigmoid(g[:, H:2 * H])
            gg = jnp.tanh(g[:, 2 * H:3 * H])
            o = jax.nn.sigmoid(g[:, 3 * H:])
            c = f * c + i * gg
            h = o * jnp.tanh(c)
            hs.append(h)
        return jnp.stack(hs, axis=1)

    weeks = []
    for s in range(3):
        hseq = lstm(x[:, s * 7:(s + 1) * 7])
        weeks.append(hseq @ params["fc_week_w"][s] + params["fc_week_b"][0, s])
    wk = jnp.stack(weeks, axis=-1)                                  # (B,7,3)
    out_time = wk @ params["wm_w"][0] + params["wm_b"][0, 0]        # (B,7)

    h1 = jax.nn.relu(x_no_time @ params["nt_w1"] + params["nt_b1"])
    out_nt = h1 @ params["nt_w2"] + params["nt_b2"]

    merged = jnp.concatenate([out_time, out_nt], axis=1)
    m1 = jax.nn.relu(merged @ params["mg_w1"] + params["mg_b1"])
    m2 = m1 @ params["mg_w2"] + params["mg_b2"]
    return m2 * rng + mini


if __name__ == "__main__":
    B, T, F, H, N = 2, 21, 5, 32, 6     # seq len must be 21 (3 weeks of 7 days)
    key = jax.random.PRNGKey(0)
    k1, k2, k3 = jax.random.split(key, 3)
    x_time = jax.random.normal(k1, (B, T, F), jnp.float32)
    x_no_time = jax.random.normal(k2, (B, N), jnp.float32)
    params = init_params(k3, F, H, N)
    packed = pack_params(params, B)

    out = lstm_fc_cycle_forward(x_time, x_no_time, packed)
    out = jax.block_until_ready(out)

    ref = reference_forward(x_time, x_no_time, params)
    np.testing.assert_allclose(np.asarray(out), np.asarray(ref), rtol=2e-3, atol=2e-3)
    print("KERNEL_OK")
</pallas_src>

<mosaic_0001>
module attributes {stable_mosaic.version = 11 : i64} {
  func.func @_lstm_fc_cycle_kernel(%arg0: memref<6x7x5xf32, #tpu.memory_space<vmem>>, %arg1: memref<2x6xf32, #tpu.memory_space<vmem>>, %arg2: memref<38x128xf32, #tpu.memory_space<vmem>>, %arg3: memref<6x33xf32, #tpu.memory_space<vmem>>, %arg4: memref<37x11xf32, #tpu.memory_space<vmem>>, %arg5: memref<2x7xf32, #tpu.memory_space<vmem>>) attributes {dimension_semantics = [], scalar_prefetch = 0 : i64, scratch_operands = 0 : i64, tpu.core_type = #tpu.core_type<tc>} {
    %c0 = arith.constant 0 : index
    %c0_0 = arith.constant 0 : index
    %c0_1 = arith.constant 0 : index
    %0 = vector.load %arg0[%c0, %c0_0, %c0_1] : memref<6x7x5xf32, #tpu.memory_space<vmem>>, vector<6x7x5xf32>
    %1 = vector.extract_strided_slice %0 {offsets = [0, 0, 4], sizes = [6, 7, 1], strides = [1, 1, 1]} : vector<6x7x5xf32> to vector<6x7x1xf32>
    %2 = vector.shape_cast %1 : vector<6x7x1xf32> to vector<6x7xf32>
    %3 = vector.shape_cast %2 : vector<6x7xf32> to vector<3x2x7xf32>
    %cst = arith.constant dense<0x7F800000> : vector<3x2xf32>
    %4 = vector.multi_reduction <minimumf>, %3, %cst [2] : vector<3x2x7xf32> to vector<3x2xf32>
    %5 = vector.shape_cast %4 : vector<3x2xf32> to vector<3x2x1xf32>
    %cst_2 = arith.constant dense<0x7F800000> : vector<2x1xf32>
    %6 = vector.multi_reduction <minimumf>, %5, %cst_2 [0] : vector<3x2x1xf32> to vector<2x1xf32>
    %7 = vector.shape_cast %6 : vector<2x1xf32> to vector<1x2x1xf32>
    %cst_3 = arith.constant dense<0xFF800000> : vector<3x2xf32>
    %8 = vector.multi_reduction <maximumf>, %3, %cst_3 [2] : vector<3x2x7xf32> to vector<3x2xf32>
    %9 = vector.shape_cast %8 : vector<3x2xf32> to vector<3x2x1xf32>
    %cst_4 = arith.constant dense<0xFF800000> : vector<2x1xf32>
    %10 = vector.multi_reduction <maximumf>, %9, %cst_4 [0] : vector<3x2x1xf32> to vector<2x1xf32>
    %11 = vector.shape_cast %10 : vector<2x1xf32> to vector<1x2x1xf32>
    %12 = arith.subf %11, %7 : vector<1x2x1xf32>
    %cst_5 = arith.constant 1.000000e+00 : f32
    %13 = vector.broadcast %cst_5 : f32 to vector<1x2x1xf32>
    %14 = arith.divf %13, %12 : vector<1x2x1xf32>
    %15 = vector.broadcast %7 : vector<1x2x1xf32> to vector<3x2x7xf32>
    %16 = arith.subf %3, %15 : vector<3x2x7xf32>
    %17 = vector.broadcast %14 : vector<1x2x1xf32> to vector<3x2x7xf32>
    %18 = arith.mulf %16, %17 : vector<3x2x7xf32>
    %19 = vector.broadcast %7 : vector<1x2x1xf32> to vector<3x2x7xf32>
    %20 = arith.subf %18, %19 : vector<3x2x7xf32>
    %21 = vector.broadcast %14 : vector<1x2x1xf32> to vector<3x2x7xf32>
    %22 = arith.mulf %20, %21 : vector<3x2x7xf32>
    %c0_6 = arith.constant 0 : index
    %c0_7 = arith.constant 0 : index
    %23 = vector.load %arg2[%c0_6, %c0_7] : memref<38x128xf32, #tpu.memory_space<vmem>>, vector<32x128xf32>
    %c32 = arith.constant 32 : index
    %c0_8 = arith.constant 0 : index
    %24 = vector.load %arg2[%c32, %c0_8] : memref<38x128xf32, #tpu.memory_space<vmem>>, vector<4x128xf32>
    %c36 = arith.constant 36 : index
    %c0_9 = arith.constant 0 : index
    %25 = vector.load %arg2[%c36, %c0_9] : memref<38x128xf32, #tpu.memory_space<vmem>>, vector<1x128xf32>
    %c37 = arith.constant 37 : index
    %c0_10 = arith.constant 0 : index
    %26 = vector.load %arg2[%c37, %c0_10] : memref<38x128xf32, #tpu.memory_space<vmem>>, vector<1x128xf32>
    %27 = vector.shape_cast %0 : vector<6x7x5xf32> to vector<42x5xf32>
    %28 = vector.extract_strided_slice %27 {offsets = [0, 0], sizes = [42, 4], strides = [1, 1]} : vector<42x5xf32> to vector<42x4xf32>
    %cst_11 = arith.constant dense<0.000000e+00> : vector<42x128xf32>
    %29 = tpu.matmul %28, %24, %cst_11 {dimension_numbers = #tpu.dot_dimension_numbers<[1], [0], [0], [1], [0, 0, 1, 1], [], []>} : vector<42x4xf32>, vector<4x128xf32>, vector<42x128xf32> -> vector<42x128xf32>
    %30 = vector.shape_cast %22 : vector<3x2x7xf32> to vector<42x1xf32>
    %31 = vector.broadcast %30 : vector<42x1xf32> to vector<42x128xf32>
    %32 = vector.broadcast %25 : vector<1x128xf32> to vector<42x128xf32>
    %33 = arith.mulf %31, %32 : vector<42x128xf32>
    %34 = arith.addf %29, %33 : vector<42x128xf32>
    %35 = vector.broadcast %26 : vector<1x128xf32> to vector<42x128xf32>
    %36 = arith.addf %34, %35 : vector<42x128xf32>
    %37 = vector.shape_cast %36 : vector<42x128xf32> to vector<6x7x128xf32>
    %cst_12 = arith.constant 0.000000e+00 : f32
    %38 = vector.broadcast %cst_12 : f32 to vector<6x32xf32>
    %39 = vector.extract_strided_slice %37 {offsets = [0, 0, 0], sizes = [6, 1, 128], strides = [1, 1, 1]} : vector<6x7x128xf32> to vector<6x1x128xf32>
    %40 = vector.shape_cast %39 : vector<6x1x128xf32> to vector<6x128xf32>
    %41 = arith.negf %40 : vector<6x128xf32>
    %42 = math.exp %41 : vector<6x128xf32>
    %cst_13 = arith.constant 1.000000e+00 : f32
    %43 = vector.broadcast %cst_13 : f32 to vector<6x128xf32>
    %44 = arith.addf %43, %42 : vector<6x128xf32>
    %45 = arith.divf %43, %44 : vector<6x128xf32>
    %46 = vector.extract_strided_slice %40 {offsets = [0, 64], sizes = [6, 32], strides = [1, 1]} : vector<6x128xf32> to vector<6x32xf32>
    %47 = math.tanh %46 : vector<6x32xf32>
    %48 = vector.extract_strided_slice %45 {offsets = [0, 32], sizes = [6, 32], strides = [1, 1]} : vector<6x128xf32> to vector<6x32xf32>
    %49 = arith.mulf %48, %38 : vector<6x32xf32>
    %50 = vector.extract_strided_slice %45 {offsets = [0, 0], sizes = [6, 32], strides = [1, 1]} : vector<6x128xf32> to vector<6x32xf32>
    %51 = arith.mulf %50, %47 : vector<6x32xf32>
    %52 = arith.addf %49, %51 : vector<6x32xf32>
    %53 = vector.extract_strided_slice %45 {offsets = [0, 96], sizes = [6, 32], strides = [1, 1]} : vector<6x128xf32> to vector<6x32xf32>
    %54 = math.tanh %52 : vector<6x32xf32>
    %55 = arith.mulf %53, %54 : vector<6x32xf32>
    %56 = vector.extract_strided_slice %37 {offsets = [0, 1, 0], sizes = [6, 1, 128], strides = [1, 1, 1]} : vector<6x7x128xf32> to vector<6x1x128xf32>
    %57 = vector.shape_cast %56 : vector<6x1x128xf32> to vector<6x128xf32>
    %cst_14 = arith.constant dense<0.000000e+00> : vector<6x128xf32>
    %58 = tpu.matmul %55, %23, %cst_14 {dimension_numbers = #tpu.dot_dimension_numbers<[1], [0], [0], [1], [0, 0, 1, 1], [], []>} : vector<6x32xf32>, vector<32x128xf32>, vector<6x128xf32> -> vector<6x128xf32>
    %59 = arith.addf %57, %58 : vector<6x128xf32>
    %60 = arith.negf %59 : vector<6x128xf32>
    %61 = math.exp %60 : vector<6x128xf32>
    %cst_15 = arith.constant 1.000000e+00 : f32
    %62 = vector.broadcast %cst_15 : f32 to vector<6x128xf32>
    %63 = arith.addf %62, %61 : vector<6x128xf32>
    %64 = arith.divf %62, %63 : vector<6x128xf32>
    %65 = vector.extract_strided_slice %59 {offsets = [0, 64], sizes = [6, 32], strides = [1, 1]} : vector<6x128xf32> to vector<6x32xf32>
    %66 = math.tanh %65 : vector<6x32xf32>
    %67 = vector.extract_strided_slice %64 {offsets = [0, 32], sizes = [6, 32], strides = [1, 1]} : vector<6x128xf32> to vector<6x32xf32>
    %68 = arith.mulf %67, %52 : vector<6x32xf32>
    %69 = vector.extract_strided_slice %64 {offsets = [0, 0], sizes = [6, 32], strides = [1, 1]} : vector<6x128xf32> to vector<6x32xf32>
    %70 = arith.mulf %69, %66 : vector<6x32xf32>
    %71 = arith.addf %68, %70 : vector<6x32xf32>
    %72 = vector.extract_strided_slice %64 {offsets = [0, 96], sizes = [6, 32], strides = [1, 1]} : vector<6x128xf32> to vector<6x32xf32>
    %73 = math.tanh %71 : vector<6x32xf32>
    %74 = arith.mulf %72, %73 : vector<6x32xf32>
    %75 = vector.extract_strided_slice %37 {offsets = [0, 2, 0], sizes = [6, 1, 128], strides = [1, 1, 1]} : vector<6x7x128xf32> to vector<6x1x128xf32>
    %76 = vector.shape_cast %75 : vector<6x1x128xf32> to vector<6x128xf32>
    %cst_16 = arith.constant dense<0.000000e+00> : vector<6x128xf32>
    %77 = tpu.matmul %74, %23, %cst_16 {dimension_numbers = #tpu.dot_dimension_numbers<[1], [0], [0], [1], [0, 0, 1, 1], [], []>} : vector<6x32xf32>, vector<32x128xf32>, vector<6x128xf32> -> vector<6x128xf32>
    %78 = arith.addf %76, %77 : vector<6x128xf32>
    %79 = arith.negf %78 : vector<6x128xf32>
    %80 = math.exp %79 : vector<6x128xf32>
    %cst_17 = arith.constant 1.000000e+00 : f32
    %81 = vector.broadcast %cst_17 : f32 to vector<6x128xf32>
    %82 = arith.addf %81, %80 : vector<6x128xf32>
    %83 = arith.divf %81, %82 : vector<6x128xf32>
    %84 = vector.extract_strided_slice %78 {offsets = [0, 64], sizes = [6, 32], strides = [1, 1]} : vector<6x128xf32> to vector<6x32xf32>
    %85 = math.tanh %84 : vector<6x32xf32>
    %86 = vector.extract_strided_slice %83 {offsets = [0, 32], sizes = [6, 32], strides = [1, 1]} : vector<6x128xf32> to vector<6x32xf32>
    %87 = arith.mulf %86, %71 : vector<6x32xf32>
    %88 = vector.extract_strided_slice %83 {offsets = [0, 0], sizes = [6, 32], strides = [1, 1]} : vector<6x128xf32> to vector<6x32xf32>
    %89 = arith.mulf %88, %85 : vector<6x32xf32>
    %90 = arith.addf %87, %89 : vector<6x32xf32>
    %91 = vector.extract_strided_slice %83 {offsets = [0, 96], sizes = [6, 32], strides = [1, 1]} : vector<6x128xf32> to vector<6x32xf32>
    %92 = math.tanh %90 : vector<6x32xf32>
    %93 = arith.mulf %91, %92 : vector<6x32xf32>
    %94 = vector.extract_strided_slice %37 {offsets = [0, 3, 0], sizes = [6, 1, 128], strides = [1, 1, 1]} : vector<6x7x128xf32> to vector<6x1x128xf32>
    %95 = vector.shape_cast %94 : vector<6x1x128xf32> to vector<6x128xf32>
    %cst_18 = arith.constant dense<0.000000e+00> : vector<6x128xf32>
    %96 = tpu.matmul %93, %23, %cst_18 {dimension_numbers = #tpu.dot_dimension_numbers<[1], [0], [0], [1], [0, 0, 1, 1], [], []>} : vector<6x32xf32>, vector<32x128xf32>, vector<6x128xf32> -> vector<6x128xf32>
    %97 = arith.addf %95, %96 : vector<6x128xf32>
    %98 = arith.negf %97 : vector<6x128xf32>
    %99 = math.exp %98 : vector<6x128xf32>
    %cst_19 = arith.constant 1.000000e+00 : f32
    %100 = vector.broadcast %cst_19 : f32 to vector<6x128xf32>
    %101 = arith.addf %100, %99 : vector<6x128xf32>
    %102 = arith.divf %100, %101 : vector<6x128xf32>
    %103 = vector.extract_strided_slice %97 {offsets = [0, 64], sizes = [6, 32], strides = [1, 1]} : vector<6x128xf32> to vector<6x32xf32>
    %104 = math.tanh %103 : vector<6x32xf32>
    %105 = vector.extract_strided_slice %102 {offsets = [0, 32], sizes = [6, 32], strides = [1, 1]} : vector<6x128xf32> to vector<6x32xf32>
    %106 = arith.mulf %105, %90 : vector<6x32xf32>
    %107 = vector.extract_strided_slice %102 {offsets = [0, 0], sizes = [6, 32], strides = [1, 1]} : vector<6x128xf32> to vector<6x32xf32>
    %108 = arith.mulf %107, %104 : vector<6x32xf32>
    %109 = arith.addf %106, %108 : vector<6x32xf32>
    %110 = vector.extract_strided_slice %102 {offsets = [0, 96], sizes = [6, 32], strides = [1, 1]} : vector<6x128xf32> to vector<6x32xf32>
    %111 = math.tanh %109 : vector<6x32xf32>
    %112 = arith.mulf %110, %111 : vector<6x32xf32>
    %113 = vector.extract_strided_slice %37 {offsets = [0, 4, 0], sizes = [6, 1, 128], strides = [1, 1, 1]} : vector<6x7x128xf32> to vector<6x1x128xf32>
    %114 = vector.shape_cast %113 : vector<6x1x128xf32> to vector<6x128xf32>
    %cst_20 = arith.constant dense<0.000000e+00> : vector<6x128xf32>
    %115 = tpu.matmul %112, %23, %cst_20 {dimension_numbers = #tpu.dot_dimension_numbers<[1], [0], [0], [1], [0, 0, 1, 1], [], []>} : vector<6x32xf32>, vector<32x128xf32>, vector<6x128xf32> -> vector<6x128xf32>
    %116 = arith.addf %114, %115 : vector<6x128xf32>
    %117 = arith.negf %116 : vector<6x128xf32>
    %118 = math.exp %117 : vector<6x128xf32>
    %cst_21 = arith.constant 1.000000e+00 : f32
    %119 = vector.broadcast %cst_21 : f32 to vector<6x128xf32>
    %120 = arith.addf %119, %118 : vector<6x128xf32>
    %121 = arith.divf %119, %120 : vector<6x128xf32>
    %122 = vector.extract_strided_slice %116 {offsets = [0, 64], sizes = [6, 32], strides = [1, 1]} : vector<6x128xf32> to vector<6x32xf32>
    %123 = math.tanh %122 : vector<6x32xf32>
    %124 = vector.extract_strided_slice %121 {offsets = [0, 32], sizes = [6, 32], strides = [1, 1]} : vector<6x128xf32> to vector<6x32xf32>
    %125 = arith.mulf %124, %109 : vector<6x32xf32>
    %126 = vector.extract_strided_slice %121 {offsets = [0, 0], sizes = [6, 32], strides = [1, 1]} : vector<6x128xf32> to vector<6x32xf32>
    %127 = arith.mulf %126, %123 : vector<6x32xf32>
    %128 = arith.addf %125, %127 : vector<6x32xf32>
    %129 = vector.extract_strided_slice %121 {offsets = [0, 96], sizes = [6, 32], strides = [1, 1]} : vector<6x128xf32> to vector<6x32xf32>
    %130 = math.tanh %128 : vector<6x32xf32>
    %131 = arith.mulf %129, %130 : vector<6x32xf32>
    %132 = vector.extract_strided_slice %37 {offsets = [0, 5, 0], sizes = [6, 1, 128], strides = [1, 1, 1]} : vector<6x7x128xf32> to vector<6x1x128xf32>
    %133 = vector.shape_cast %132 : vector<6x1x128xf32> to vector<6x128xf32>
    %cst_22 = arith.constant dense<0.000000e+00> : vector<6x128xf32>
    %134 = tpu.matmul %131, %23, %cst_22 {dimension_numbers = #tpu.dot_dimension_numbers<[1], [0], [0], [1], [0, 0, 1, 1], [], []>} : vector<6x32xf32>, vector<32x128xf32>, vector<6x128xf32> -> vector<6x128xf32>
    %135 = arith.addf %133, %134 : vector<6x128xf32>
    %136 = arith.negf %135 : vector<6x128xf32>
    %137 = math.exp %136 : vector<6x128xf32>
    %cst_23 = arith.constant 1.000000e+00 : f32
    %138 = vector.broadcast %cst_23 : f32 to vector<6x128xf32>
    %139 = arith.addf %138, %137 : vector<6x128xf32>
    %140 = arith.divf %138, %139 : vector<6x128xf32>
    %141 = vector.extract_strided_slice %135 {offsets = [0, 64], sizes = [6, 32], strides = [1, 1]} : vector<6x128xf32> to vector<6x32xf32>
    %142 = math.tanh %141 : vector<6x32xf32>
    %143 = vector.extract_strided_slice %140 {offsets = [0, 32], sizes = [6, 32], strides = [1, 1]} : vector<6x128xf32> to vector<6x32xf32>
    %144 = arith.mulf %143, %128 : vector<6x32xf32>
    %145 = vector.extract_strided_slice %140 {offsets = [0, 0], sizes = [6, 32], strides = [1, 1]} : vector<6x128xf32> to vector<6x32xf32>
    %146 = arith.mulf %145, %142 : vector<6x32xf32>
    %147 = arith.addf %144, %146 : vector<6x32xf32>
    %148 = vector.extract_strided_slice %140 {offsets = [0, 96], sizes = [6, 32], strides = [1, 1]} : vector<6x128xf32> to vector<6x32xf32>
    %149 = math.tanh %147 : vector<6x32xf32>
    %150 = arith.mulf %148, %149 : vector<6x32xf32>
    %151 = vector.extract_strided_slice %37 {offsets = [0, 6, 0], sizes = [6, 1, 128], strides = [1, 1, 1]} : vector<6x7x128xf32> to vector<6x1x128xf32>
    %152 = vector.shape_cast %151 : vector<6x1x128xf32> to vector<6x128xf32>
    %cst_24 = arith.constant dense<0.000000e+00> : vector<6x128xf32>
    %153 = tpu.matmul %150, %23, %cst_24 {dimension_numbers = #tpu.dot_dimension_numbers<[1], [0], [0], [1], [0, 0, 1, 1], [], []>} : vector<6x32xf32>, vector<32x128xf32>, vector<6x128xf32> -> vector<6x128xf32>
    %154 = arith.addf %152, %153 : vector<6x128xf32>
    %155 = arith.negf %154 : vector<6x128xf32>
    %156 = math.exp %155 : vector<6x128xf32>
    %cst_25 = arith.constant 1.000000e+00 : f32
    %157 = vector.broadcast %cst_25 : f32 to vector<6x128xf32>
    %158 = arith.addf %157, %156 : vector<6x128xf32>
    %159 = arith.divf %157, %158 : vector<6x128xf32>
    %160 = vector.extract_strided_slice %154 {offsets = [0, 64], sizes = [6, 32], strides = [1, 1]} : vector<6x128xf32> to vector<6x32xf32>
    %161 = math.tanh %160 : vector<6x32xf32>
    %162 = vector.extract_strided_slice %159 {offsets = [0, 32], sizes = [6, 32], strides = [1, 1]} : vector<6x128xf32> to vector<6x32xf32>
    %163 = arith.mulf %162, %147 : vector<6x32xf32>
    %164 = vector.extract_strided_slice %159 {offsets = [0, 0], sizes = [6, 32], strides = [1, 1]} : vector<6x128xf32> to vector<6x32xf32>
    %165 = arith.mulf %164, %161 : vector<6x32xf32>
    %166 = arith.addf %163, %165 : vector<6x32xf32>
    %167 = vector.extract_strided_slice %159 {offsets = [0, 96], sizes = [6, 32], strides = [1, 1]} : vector<6x128xf32> to vector<6x32xf32>
    %168 = math.tanh %166 : vector<6x32xf32>
    %169 = arith.mulf %167, %168 : vector<6x32xf32>
    %170 = vector.shape_cast %55 : vector<6x32xf32> to vector<6x1x32xf32>
    %171 = vector.shape_cast %74 : vector<6x32xf32> to vector<6x1x32xf32>
    %172 = vector.shape_cast %93 : vector<6x32xf32> to vector<6x1x32xf32>
    %173 = vector.shape_cast %112 : vector<6x32xf32> to vector<6x1x32xf32>
    %174 = vector.shape_cast %131 : vector<6x32xf32> to vector<6x1x32xf32>
    %175 = vector.shape_cast %150 : vector<6x32xf32> to vector<6x1x32xf32>
    %176 = vector.shape_cast %169 : vector<6x32xf32> to vector<6x1x32xf32>
    %177 = tpu.concatenate %170, %171, %172, %173, %174, %175, %176 in 1 : vector<6x1x32xf32>, vector<6x1x32xf32>, vector<6x1x32xf32>, vector<6x1x32xf32>, vector<6x1x32xf32>, vector<6x1x32xf32>, vector<6x1x32xf32> -> vector<6x7x32xf32>
    %c0_26 = arith.constant 0 : index
    %c0_27 = arith.constant 0 : index
    %178 = vector.load %arg3[%c0_26, %c0_27] : memref<6x33xf32, #tpu.memory_space<vmem>>, vector<6x32xf32>
    %c0_28 = arith.constant 0 : index
    %c32_29 = arith.constant 32 : index
    %179 = vector.load %arg3[%c0_28, %c32_29] : memref<6x33xf32, #tpu.memory_space<vmem>>, vector<6x1xf32>
    %180 = vector.shape_cast %178 : vector<6x32xf32> to vector<6x1x32xf32>
    %181 = vector.broadcast %180 : vector<6x1x32xf32> to vector<6x7x32xf32>
    %182 = arith.mulf %177, %181 : vector<6x7x32xf32>
    %cst_30 = arith.constant dense<0.000000e+00> : vector<6x7xf32>
    %183 = vector.multi_reduction <add>, %182, %cst_30 [2] : vector<6x7x32xf32> to vector<6x7xf32>
    %184 = vector.broadcast %179 : vector<6x1xf32> to vector<6x7xf32>
    %185 = arith.addf %183, %184 : vector<6x7xf32>
    %186 = vector.shape_cast %185 : vector<6x7xf32> to vector<3x2x7xf32>
    %c24 = arith.constant 24 : index
    %c0_31 = arith.constant 0 : index
    %187 = vector.load %arg4[%c24, %c0_31] : memref<37x11xf32, #tpu.memory_space<vmem>>, vector<1x4xf32>
    %188 = vector.extract_strided_slice %186 {offsets = [0, 0, 0], sizes = [1, 2, 7], strides = [1, 1, 1]} : vector<3x2x7xf32> to vector<1x2x7xf32>
    %189 = vector.shape_cast %188 : vector<1x2x7xf32> to vector<2x7xf32>
    %190 = vector.extract_strided_slice %187 {offsets = [0, 0], sizes = [1, 1], strides = [1, 1]} : vector<1x4xf32> to vector<1x1xf32>
    %191 = vector.broadcast %190 : vector<1x1xf32> to vector<2x7xf32>
    %192 = arith.mulf %189, %191 : vector<2x7xf32>
    %193 = vector.extract_strided_slice %186 {offsets = [1, 0, 0], sizes = [1, 2, 7], strides = [1, 1, 1]} : vector<3x2x7xf32> to vector<1x2x7xf32>
    %194 = vector.shape_cast %193 : vector<1x2x7xf32> to vector<2x7xf32>
    %195 = vector.extract_strided_slice %187 {offsets = [0, 1], sizes = [1, 1], strides = [1, 1]} : vector<1x4xf32> to vector<1x1xf32>
    %196 = vector.broadcast %195 : vector<1x1xf32> to vector<2x7xf32>
    %197 = arith.mulf %194, %196 : vector<2x7xf32>
    %198 = arith.addf %192, %197 : vector<2x7xf32>
    %199 = vector.extract_strided_slice %186 {offsets = [2, 0, 0], sizes = [1, 2, 7], strides = [1, 1, 1]} : vector<3x2x7xf32> to vector<1x2x7xf32>
    %200 = vector.shape_cast %199 : vector<1x2x7xf32> to vector<2x7xf32>
    %201 = vector.extract_strided_slice %187 {offsets = [0, 2], sizes = [1, 1], strides = [1, 1]} : vector<1x4xf32> to vector<1x1xf32>
    %202 = vector.broadcast %201 : vector<1x1xf32> to vector<2x7xf32>
    %203 = arith.mulf %200, %202 : vector<2x7xf32>
    %204 = arith.addf %198, %203 : vector<2x7xf32>
    %205 = vector.extract_strided_slice %187 {offsets = [0, 3], sizes = [1, 1], strides = [1, 1]} : vector<1x4xf32> to vector<1x1xf32>
    %206 = vector.broadcast %205 : vector<1x1xf32> to vector<2x7xf32>
    %207 = arith.addf %204, %206 : vector<2x7xf32>
    %c31 = arith.constant 31 : index
    %c0_32 = arith.constant 0 : index
    %208 = vector.load %arg4[%c31, %c0_32] : memref<37x11xf32, #tpu.memory_space<vmem>>, vector<6x4xf32>
    %c27 = arith.constant 27 : index
    %c0_33 = arith.constant 0 : index
    %209 = vector.load %arg4[%c27, %c0_33] : memref<37x11xf32, #tpu.memory_space<vmem>>, vector<4x4xf32>
    %c25 = arith.constant 25 : index
    %c0_34 = arith.constant 0 : index
    %210 = vector.load %arg4[%c25, %c0_34] : memref<37x11xf32, #tpu.memory_space<vmem>>, vector<1x4xf32>
    %c26 = arith.constant 26 : index
    %c0_35 = arith.constant 0 : index
    %211 = vector.load %arg4[%c26, %c0_35] : memref<37x11xf32, #tpu.memory_space<vmem>>, vector<1x4xf32>
    %c0_36 = arith.constant 0 : index
    %c0_37 = arith.constant 0 : index
    %212 = vector.load %arg1[%c0_36, %c0_37] : memref<2x6xf32, #tpu.memory_space<vmem>>, vector<2x6xf32>
    %cst_38 = arith.constant dense<0.000000e+00> : vector<2x4xf32>
    %213 = tpu.matmul %212, %208, %cst_38 {dimension_numbers = #tpu.dot_dimension_numbers<[1], [0], [0], [1], [0, 0, 1, 1], [], []>} : vector<2x6xf32>, vector<6x4xf32>, vector<2x4xf32> -> vector<2x4xf32>
    %214 = vector.broadcast %210 : vector<1x4xf32> to vector<2x4xf32>
    %215 = arith.addf %213, %214 : vector<2x4xf32>
    %cst_39 = arith.constant 0.000000e+00 : f32
    %216 = vector.broadcast %cst_39 : f32 to vector<2x4xf32>
    %217 = arith.maximumf %215, %216 : vector<2x4xf32>
    %cst_40 = arith.constant dense<0.000000e+00> : vector<2x4xf32>
    %218 = tpu.matmul %217, %209, %cst_40 {dimension_numbers = #tpu.dot_dimension_numbers<[1], [0], [0], [1], [0, 0, 1, 1], [], []>} : vector<2x4xf32>, vector<4x4xf32>, vector<2x4xf32> -> vector<2x4xf32>
    %219 = vector.broadcast %211 : vector<1x4xf32> to vector<2x4xf32>
    %220 = arith.addf %218, %219 : vector<2x4xf32>
    %c0_41 = arith.constant 0 : index
    %c0_42 = arith.constant 0 : index
    %221 = vector.load %arg4[%c0_41, %c0_42] : memref<37x11xf32, #tpu.memory_space<vmem>>, vector<11x11xf32>
    %c11 = arith.constant 11 : index
    %c0_43 = arith.constant 0 : index
    %222 = vector.load %arg4[%c11, %c0_43] : memref<37x11xf32, #tpu.memory_space<vmem>>, vector<11x7xf32>
    %c22 = arith.constant 22 : index
    %c0_44 = arith.constant 0 : index
    %223 = vector.load %arg4[%c22, %c0_44] : memref<37x11xf32, #tpu.memory_space<vmem>>, vector<1x11xf32>
    %c23 = arith.constant 23 : index
    %c0_45 = arith.constant 0 : index
    %224 = vector.load %arg4[%c23, %c0_45] : memref<37x11xf32, #tpu.memory_space<vmem>>, vector<1x7xf32>
    %225 = tpu.concatenate %207, %220 in 1 : vector<2x7xf32>, vector<2x4xf32> -> vector<2x11xf32>
    %cst_46 = arith.constant dense<0.000000e+00> : vector<2x11xf32>
    %226 = tpu.matmul %225, %221, %cst_46 {dimension_numbers = #tpu.dot_dimension_numbers<[1], [0], [0], [1], [0, 0, 1, 1], [], []>} : vector<2x11xf32>, vector<11x11xf32>, vector<2x11xf32> -> vector<2x11xf32>
    %227 = vector.broadcast %223 : vector<1x11xf32> to vector<2x11xf32>
    %228 = arith.addf %226, %227 : vector<2x11xf32>
    %cst_47 = arith.constant 0.000000e+00 : f32
    %229 = vector.broadcast %cst_47 : f32 to vector<2x11xf32>
    %230 = arith.maximumf %228, %229 : vector<2x11xf32>
    %cst_48 = arith.constant dense<0.000000e+00> : vector<2x7xf32>
    %231 = tpu.matmul %230, %222, %cst_48 {dimension_numbers = #tpu.dot_dimension_numbers<[1], [0], [0], [1], [0, 0, 1, 1], [], []>} : vector<2x11xf32>, vector<11x7xf32>, vector<2x7xf32> -> vector<2x7xf32>
    %232 = vector.broadcast %224 : vector<1x7xf32> to vector<2x7xf32>
    %233 = arith.addf %231, %232 : vector<2x7xf32>
    %234 = vector.shape_cast %12 : vector<1x2x1xf32> to vector<2x1xf32>
    %235 = vector.broadcast %234 : vector<2x1xf32> to vector<2x7xf32>
    %236 = arith.mulf %233, %235 : vector<2x7xf32>
    %237 = vector.shape_cast %7 : vector<1x2x1xf32> to vector<2x1xf32>
    %238 = vector.broadcast %237 : vector<2x1xf32> to vector<2x7xf32>
    %239 = arith.addf %236, %238 : vector<2x7xf32>
    %c0_49 = arith.constant 0 : index
    %c0_50 = arith.constant 0 : index
    %240 = vector.load %arg5[%c0_49, %c0_50] : memref<2x7xf32, #tpu.memory_space<vmem>>, vector<2x7xf32>
    tpu.vector_store %arg5[%c0_49, %c0_50], %239 {strides = array<i32>} : memref<2x7xf32, #tpu.memory_space<vmem>>, vector<2x7xf32>,
    return
  }
}

</mosaic_0001>

<llo_original>
// kernel: tpu_custom_call.1
$region0: #{tpu_custom_call.1}
  #allocation0 [shape = 'u32[]', space=smem, size = 0x4, offset = 0x4, fixed_abs, tag = 'smem constant byte address 0x4 - core index']
  #allocation1 [shape = 'u32[144,128]{1,0:T(1,128)}', space=vmem, size = 0x12000, scoped, tag = 'internal scratch']
  %s0 = inlined_call_operand.vmem [shape: f32[6,7,5], index: 0, kind: input, shape index: {}]
  %s1 = inlined_call_operand.vmem [shape: f32[2,6], index: 1, kind: input, shape index: {}]
  %s2 = inlined_call_operand.vmem [shape: f32[38,128], index: 2, kind: input, shape index: {}]
  %s3 = inlined_call_operand.vmem [shape: f32[6,33], index: 3, kind: input, shape index: {}]
  %s4 = inlined_call_operand.vmem [shape: f32[37,11], index: 4, kind: input, shape index: {}]
  %s5 = inlined_call_operand.hbm [shape: f32[2,7], index: 5, kind: output, shape index: {}]
  %s6 = sld [smem:[#allocation0]]
  $region30: #{tpu_custom_call.1} parent=0
    _
  %s8 = ssub.s32 1, %s6
  %s9 = scalar_select 0, %s8, %s6
  $region1: #{tpu_custom_call.1} parent=0
    #allocation2 [shape = 'u8[1024]{0}', space=vmem, size = 0x400, scoped, tag = 'output window, operand 0, single buffered']
    #allocation3 [shape = 's32[1]{0}', space=sflag, size = 0x4, scoped, tag = 'scoped memory for tpu_custom_call.1']
    %10 = vsyncpa [#allocation3], 0
    // Predicated region
    $region2: #{tpu_custom_call.1} parent=1 // pred_check
      _
    $region3: #{tpu_custom_call.1} parent=1 // pred_check_branch
      %12 = sbr.rel (0) target = $region5
    $region4: #{tpu_custom_call.1} parent=1 // pred_region
      _
    $region5: #{tpu_custom_call.1} parent=1 // pred_fallthru
      _
    // Predicated region
    $region6: #{tpu_custom_call.1} parent=1 // pred_check
      _
    $region7: #{tpu_custom_call.1} parent=1 // pred_check_branch
      %14 = sbr.rel (0) target = $region9
    $region8: #{tpu_custom_call.1} parent=1 // pred_region
      _
    $region9: #{tpu_custom_call.1} parent=1 // pred_fallthru
      _
    // Predicated region
    $region10: #{tpu_custom_call.1} parent=1 // pred_check
      _
    $region11: #{tpu_custom_call.1} parent=1 // pred_check_branch
      %16 = sbr.rel (0) target = $region13
    $region12: #{tpu_custom_call.1} parent=1 // pred_region
      _
    $region13: #{tpu_custom_call.1} parent=1 // pred_fallthru
      _
    // Predicated region
    $region14: #{tpu_custom_call.1} parent=1 // pred_check
      _
    $region15: #{tpu_custom_call.1} parent=1 // pred_check_branch
      %18 = sbr.rel (0) target = $region17
    $region16: #{tpu_custom_call.1} parent=1 // pred_region
      _
    $region17: #{tpu_custom_call.1} parent=1 // pred_fallthru
      _
    // Predicated region
    $region18: #{tpu_custom_call.1} parent=1 // pred_check
      _
    $region19: #{tpu_custom_call.1} parent=1 // pred_check_branch
      %20 = sbr.rel (0) target = $region21
    $region20: #{tpu_custom_call.1} parent=1 // pred_region
      _
    $region21: #{tpu_custom_call.1} parent=1 // pred_fallthru
      _
    %v21 = vld [vmem:[%s0] sm:$0x7f]
    %v22 = vld [vmem:[%s0 + $0x8] sm:$0x7f]
    %v23 = vld [vmem:[%s0 + $0x10] sm:$0x7f]
    %v24 = vld [vmem:[%s0 + $0x18] sm:$0x7f]
    %v25 = vld [vmem:[%s0 + $0x20] sm:$0x7f]
    %v26 = vld [vmem:[%s0 + $0x28] sm:$0x7f]
    %33 = vset.pattern.permute.xlu0 4
    %34 = vperm.xlu0 %33, %v21
    %v35 = vpop.permute.xlu0 %34
    %36 = vset.pattern.permute.xlu0 4
    %37 = vperm.xlu0 %36, %v22
    %v38 = vpop.permute.xlu0 %37
    %39 = vset.pattern.permute.xlu0 4
    %40 = vperm.xlu0 %39, %v23
    %v41 = vpop.permute.xlu0 %40
    %42 = vset.pattern.permute.xlu0 4
    %43 = vperm.xlu0 %42, %v24
    %v44 = vpop.permute.xlu0 %43
    %45 = vset.pattern.permute.xlu0 4
    %46 = vperm.xlu0 %45, %v25
    %v47 = vpop.permute.xlu0 %46
    %48 = vset.pattern.permute.xlu0 4
    %49 = vperm.xlu0 %48, %v26
    %v50 = vpop.permute.xlu0 %49
    %v51 = vlaneseq
    %v52 = vand.u32 %v51, 127
    %v53 = vlaneseq
    %v54 = vshrl.u32 %v53, 7
    %v55 = vsub.s32 %v52, %v54
    %v56 = vrot.slane %v35, %v55
    %v57 = vlaneseq
    %v58 = vshrl.u32 %v57, 7
    %v59 = vsub.s32 %v52, %v58
    %v60 = vrot.slane %v38, %v59
    %v61 = vlaneseq
    %v62 = vshrl.u32 %v61, 7
    %v63 = vsub.s32 %v52, %v62
    %v64 = vrot.slane %v41, %v63
    %v65 = vlaneseq
    %v66 = vshrl.u32 %v65, 7
    %v67 = vsub.s32 %v52, %v66
    %v68 = vrot.slane %v44, %v67
    %v69 = vlaneseq
    %v70 = vshrl.u32 %v69, 7
    %v71 = vsub.s32 %v52, %v70
    %v72 = vrot.slane %v47, %v71
    %v73 = vlaneseq
    %v74 = vshrl.u32 %v73, 7
    %v75 = vsub.s32 %v52, %v74
    %v76 = vrot.slane %v50, %v75
    %vm77 = vcmask 1041409
    %v78 = vsel %vm77, %v60, %v56
    %v79 = vsel %vm77, %v68, %v64
    %v80 = vsel %vm77, %v76, %v72
    %vm84 = vcmask 50176
    %v85 = vsel %vm84, %v78, inf
    %86 = vmin.xlane.f32.xlu0 %v85
    %v87 = vpop.xlane.xlu0 %86
    %v88 = vsel %vm84, %v79, inf
    %89 = vmin.xlane.f32.xlu0 %v88
    %v90 = vpop.xlane.xlu0 %89
    %v91 = vsel %vm84, %v80, inf
    %92 = vmin.xlane.f32.xlu0 %v91
    %v93 = vpop.xlane.xlu0 %92
    %vm94 = vcmask 1041408
    %v95 = vsel %vm94, %v87, inf
    %v96 = vsel %vm94, %v90, inf
    %v97 = vsel %vm94, %v93, inf
    %v98 = vmin.f32 %v95, %v96
    %v99 = vmin.f32 %v98, %v97
    %v100 = vsel %vm84, %v78, -inf
    %101 = vmax.xlane.f32.xlu0 %v100
    %v102 = vpop.xlane.xlu0 %101
    %v103 = vsel %vm84, %v79, -inf
    %104 = vmax.xlane.f32.xlu0 %v103
    %v105 = vpop.xlane.xlu0 %104
    %v106 = vsel %vm84, %v80, -inf
    %107 = vmax.xlane.f32.xlu0 %v106
    %v108 = vpop.xlane.xlu0 %107
    %v109 = vsel %vm94, %v102, -inf
    %v110 = vsel %vm94, %v105, -inf
    %v111 = vsel %vm94, %v108, -inf
    %v112 = vmax.f32 %v109, %v110
    %v113 = vmax.f32 %v112, %v111
    %v114 = vsub.f32 %v113, %v99
    %v115 = vrcp.pop %v114
    %v116 = vmul.f32 1.0, %v115
    %v118 = vlaneseq
    %v119 = vshrl.u32 %v118, 7
    %v120 = vsub.s32 0, %v119
    %v121 = vrot.slane %v99, %v120
    %v122 = vlaneseq
    %v123 = vshrl.u32 %v122, 7
    %v124 = vsub.s32 1, %v123
    %v125 = vrot.slane %v99, %v124
    %v128 = vsub.f32 %v21, %v121
    %v129 = vsub.f32 %v22, %v125
    %v130 = vsub.f32 %v23, %v121
    %v131 = vsub.f32 %v24, %v125
    %v132 = vsub.f32 %v25, %v121
    %v133 = vsub.f32 %v26, %v125
    %v135 = vlaneseq
    %v136 = vshrl.u32 %v135, 7
    %v137 = vsub.s32 0, %v136
    %v138 = vrot.slane %v116, %v137
    %v139 = vlaneseq
    %v140 = vshrl.u32 %v139, 7
    %v141 = vsub.s32 1, %v140
    %v142 = vrot.slane %v116, %v141
    %v145 = vmul.f32 %v128, %v138
    %v146 = vmul.f32 %v129, %v142
    %v147 = vmul.f32 %v130, %v138
    %v148 = vmul.f32 %v131, %v142
    %v149 = vmul.f32 %v132, %v138
    %v150 = vmul.f32 %v133, %v142
    %v151 = vsub.f32 %v145, %v121
    %v152 = vsub.f32 %v146, %v125
    %v153 = vsub.f32 %v147, %v121
    %v154 = vsub.f32 %v148, %v125
    %v155 = vsub.f32 %v149, %v121
    %v156 = vsub.f32 %v150, %v125
    %v157 = vmul.f32 %v151, %v138
    %v158 = vmul.f32 %v152, %v142
    %v159 = vmul.f32 %v153, %v138
    %v160 = vmul.f32 %v154, %v142
    %v161 = vmul.f32 %v155, %v138
    %v162 = vmul.f32 %v156, %v142
    %v163 = vld [vmem:[%s2] sm:$0xff]
    %v164 = vld [vmem:[%s2 + $0x8] sm:$0xff]
    %v165 = vld [vmem:[%s2 + $0x10] sm:$0xff]
    %v166 = vld [vmem:[%s2 + $0x18] sm:$0xff]
    %v167 = vld [vmem:[%s2 + $0x20] sm:$0xf]
    %v168 = vld [vmem:[%s2 + $0x24] sm:$0x1]
    %v169 = vld [vmem:[%s2 + $0x25] sm:$0x1]
    %v170 = vcombine.high %v21, %v21
    %v172 = vunpack.c.l.s4 1966171168
    %v173 = vunpack.c.0.s8 %v172
    %v174 = vlaneseq
    %v175 = vshrl.u32 %v174, 7
    %v176 = vsub.s32 %v173, %v175
    %v177 = vrot.slane %v21, %v176
    %v179 = vunpack.c.l.s4 1966171168
    %v180 = vunpack.c.0.s8 %v179
    %v181 = vlaneseq
    %v182 = vshrl.u32 %v181, 7
    %v183 = vsub.s32 %v180, %v182
    %v184 = vrot.slane %v170, %v183
    %v185 = vcombine.high %v177, %v177
    %v186 = vcombine.high %v184, %v184
    %v188 = vunpack.c.l.s4 1966171168
    %v189 = vunpack.c.0.s8 %v188
    %v190 = vlaneseq
    %v191 = vshrl.u32 %v190, 7
    %v192 = vsub.s32 %v189, %v191
    %v193 = vrot.slane %v177, %v192
    %v195 = vunpack.c.l.s4 1966171168
    %v196 = vunpack.c.0.s8 %v195
    %v197 = vlaneseq
    %v198 = vshrl.u32 %v197, 7
    %v199 = vsub.s32 %v196, %v198
    %v200 = vrot.slane %v184, %v199
    %v202 = vunpack.c.l.s4 1966171168
    %v203 = vunpack.c.0.s8 %v202
    %v204 = vlaneseq
    %v205 = vshrl.u32 %v204, 7
    %v206 = vsub.s32 %v203, %v205
    %v207 = vrot.slane %v185, %v206
    %v209 = vunpack.c.l.s4 1966171168
    %v210 = vunpack.c.0.s8 %v209
    %v211 = vlaneseq
    %v212 = vshrl.u32 %v211, 7
    %v213 = vsub.s32 %v210, %v212
    %v214 = vrot.slane %v186, %v213
    %v215 = vcombine.high %v193, %v193
    %v216 = vcombine.high %v200, %v200
    %v217 = vcombine.high %v207, %v207
    %v218 = vcombine.high %v22, %v22
    %v220 = vunpack.c.l.s4 1966171168
    %v221 = vunpack.c.0.s8 %v220
    %v222 = vlaneseq
    %v223 = vshrl.u32 %v222, 7
    %v224 = vsub.s32 %v221, %v223
    %v225 = vrot.slane %v22, %v224
    %v227 = vunpack.c.l.s4 1966171168
    %v228 = vunpack.c.0.s8 %v227
    %v229 = vlaneseq
    %v230 = vshrl.u32 %v229, 7
    %v231 = vsub.s32 %v228, %v230
    %v232 = vrot.slane %v218, %v231
    %v233 = vcombine.high %v225, %v225
    %v234 = vcombine.high %v232, %v232
    %v236 = vunpack.c.l.s4 1966171168
    %v237 = vunpack.c.0.s8 %v236
    %v238 = vlaneseq
    %v239 = vshrl.u32 %v238, 7
    %v240 = vsub.s32 %v237, %v239
    %v241 = vrot.slane %v225, %v240
    %v243 = vunpack.c.l.s4 1966171168
    %v244 = vunpack.c.0.s8 %v243
    %v245 = vlaneseq
    %v246 = vshrl.u32 %v245, 7
    %v247 = vsub.s32 %v244, %v246
    %v248 = vrot.slane %v232, %v247
    %v250 = vunpack.c.l.s4 1966171168
    %v251 = vunpack.c.0.s8 %v250
    %v252 = vlaneseq
    %v253 = vshrl.u32 %v252, 7
    %v254 = vsub.s32 %v251, %v253
    %v255 = vrot.slane %v233, %v254
    %v257 = vunpack.c.l.s4 1966171168
    %v258 = vunpack.c.0.s8 %v257
    %v259 = vlaneseq
    %v260 = vshrl.u32 %v259, 7
    %v261 = vsub.s32 %v258, %v260
    %v262 = vrot.slane %v234, %v261
    %v263 = vcombine.high %v241, %v241
    %v264 = vcombine.high %v248, %v248
    %v265 = vcombine.high %v255, %v255
    %v266 = vcombine.high %v23, %v23
    %v268 = vunpack.c.l.s4 1966171168
    %v269 = vunpack.c.0.s8 %v268
    %v270 = vlaneseq
    %v271 = vshrl.u32 %v270, 7
    %v272 = vsub.s32 %v269, %v271
    %v273 = vrot.slane %v23, %v272
    %v275 = vunpack.c.l.s4 1966171168
    %v276 = vunpack.c.0.s8 %v275
    %v277 = vlaneseq
    %v278 = vshrl.u32 %v277, 7
    %v279 = vsub.s32 %v276, %v278
    %v280 = vrot.slane %v266, %v279
    %v281 = vcombine.high %v273, %v273
    %v282 = vcombine.high %v280, %v280
    %v284 = vunpack.c.l.s4 1966171168
    %v285 = vunpack.c.0.s8 %v284
    %v286 = vlaneseq
    %v287 = vshrl.u32 %v286, 7
    %v288 = vsub.s32 %v285, %v287
    %v289 = vrot.slane %v273, %v288
    %v291 = vunpack.c.l.s4 1966171168
    %v292 = vunpack.c.0.s8 %v291
    %v293 = vlaneseq
    %v294 = vshrl.u32 %v293, 7
    %v295 = vsub.s32 %v292, %v294
    %v296 = vrot.slane %v280, %v295
    %v298 = vunpack.c.l.s4 1966171168
    %v299 = vunpack.c.0.s8 %v298
    %v300 = vlaneseq
    %v301 = vshrl.u32 %v300, 7
    %v302 = vsub.s32 %v299, %v301
    %v303 = vrot.slane %v281, %v302
    %v305 = vunpack.c.l.s4 1966171168
    %v306 = vunpack.c.0.s8 %v305
    %v307 = vlaneseq
    %v308 = vshrl.u32 %v307, 7
    %v309 = vsub.s32 %v306, %v308
    %v310 = vrot.slane %v282, %v309
    %v311 = vcombine.high %v289, %v289
    %v312 = vcombine.high %v296, %v296
    %v313 = vcombine.high %v303, %v303
    %v314 = vcombine.high %v24, %v24
    %v316 = vunpack.c.l.s4 1966171168
    %v317 = vunpack.c.0.s8 %v316
    %v318 = vlaneseq
    %v319 = vshrl.u32 %v318, 7
    %v320 = vsub.s32 %v317, %v319
    %v321 = vrot.slane %v24, %v320
    %v323 = vunpack.c.l.s4 1966171168
    %v324 = vunpack.c.0.s8 %v323
    %v325 = vlaneseq
    %v326 = vshrl.u32 %v325, 7
    %v327 = vsub.s32 %v324, %v326
    %v328 = vrot.slane %v314, %v327
    %v329 = vcombine.high %v321, %v321
    %v330 = vcombine.high %v328, %v328
    %v332 = vunpack.c.l.s4 1966171168
    %v333 = vunpack.c.0.s8 %v332
    %v334 = vlaneseq
    %v335 = vshrl.u32 %v334, 7
    %v336 = vsub.s32 %v333, %v335
    %v337 = vrot.slane %v321, %v336
    %v339 = vunpack.c.l.s4 1966171168
    %v340 = vunpack.c.0.s8 %v339
    %v341 = vlaneseq
    %v342 = vshrl.u32 %v341, 7
    %v343 = vsub.s32 %v340, %v342
    %v344 = vrot.slane %v328, %v343
    %v346 = vunpack.c.l.s4 1966171168
    %v347 = vunpack.c.0.s8 %v346
    %v348 = vlaneseq
    %v349 = vshrl.u32 %v348, 7
    %v350 = vsub.s32 %v347, %v349
    %v351 = vrot.slane %v329, %v350
    %v353 = vunpack.c.l.s4 1966171168
    %v354 = vunpack.c.0.s8 %v353
    %v355 = vlaneseq
    %v356 = vshrl.u32 %v355, 7
    %v357 = vsub.s32 %v354, %v356
    %v358 = vrot.slane %v330, %v357
    %v359 = vcombine.high %v337, %v337
    %v360 = vcombine.high %v344, %v344
    %v361 = vcombine.high %v351, %v351
    %v362 = vcombine.high %v25, %v25
    %v364 = vunpack.c.l.s4 1966171168
    %v365 = vunpack.c.0.s8 %v364
    %v366 = vlaneseq
    %v367 = vshrl.u32 %v366, 7
    %v368 = vsub.s32 %v365, %v367
    %v369 = vrot.slane %v25, %v368
    %v371 = vunpack.c.l.s4 1966171168
    %v372 = vunpack.c.0.s8 %v371
    %v373 = vlaneseq
    %v374 = vshrl.u32 %v373, 7
    %v375 = vsub.s32 %v372, %v374
    %v376 = vrot.slane %v362, %v375
    %v377 = vcombine.high %v369, %v369
    %v378 = vcombine.high %v376, %v376
    %v380 = vunpack.c.l.s4 1966171168
    %v381 = vunpack.c.0.s8 %v380
    %v382 = vlaneseq
    %v383 = vshrl.u32 %v382, 7
    %v384 = vsub.s32 %v381, %v383
    %v385 = vrot.slane %v369, %v384
    %v387 = vunpack.c.l.s4 1966171168
    %v388 = vunpack.c.0.s8 %v387
    %v389 = vlaneseq
    %v390 = vshrl.u32 %v389, 7
    %v391 = vsub.s32 %v388, %v390
    %v392 = vrot.slane %v376, %v391
    %v394 = vunpack.c.l.s4 1966171168
    %v395 = vunpack.c.0.s8 %v394
    %v396 = vlaneseq
    %v397 = vshrl.u32 %v396, 7
    %v398 = vsub.s32 %v395, %v397
    %v399 = vrot.slane %v377, %v398
    %v401 = vunpack.c.l.s4 1966171168
    %v402 = vunpack.c.0.s8 %v401
    %v403 = vlaneseq
    %v404 = vshrl.u32 %v403, 7
    %v405 = vsub.s32 %v402, %v404
    %v406 = vrot.slane %v378, %v405
    %v407 = vcombine.high %v385, %v385
    %v408 = vcombine.high %v392, %v392
    %v409 = vcombine.high %v399, %v399
    %v410 = vcombine.high %v26, %v26
    %v412 = vunpack.c.l.s4 1966171168
    %v413 = vunpack.c.0.s8 %v412
    %v414 = vlaneseq
    %v415 = vshrl.u32 %v414, 7
    %v416 = vsub.s32 %v413, %v415
    %v417 = vrot.slane %v26, %v416
    %v419 = vunpack.c.l.s4 1966171168
    %v420 = vunpack.c.0.s8 %v419
    %v421 = vlaneseq
    %v422 = vshrl.u32 %v421, 7
    %v423 = vsub.s32 %v420, %v422
    %v424 = vrot.slane %v410, %v423
    %v425 = vcombine.high %v417, %v417
    %v426 = vcombine.high %v424, %v424
    %v428 = vunpack.c.l.s4 1966171168
    %v429 = vunpack.c.0.s8 %v428
    %v430 = vlaneseq
    %v431 = vshrl.u32 %v430, 7
    %v432 = vsub.s32 %v429, %v431
    %v433 = vrot.slane %v417, %v432
    %v435 = vunpack.c.l.s4 1966171168
    %v436 = vunpack.c.0.s8 %v435
    %v437 = vlaneseq
    %v438 = vshrl.u32 %v437, 7
    %v439 = vsub.s32 %v436, %v438
    %v440 = vrot.slane %v424, %v439
    %v442 = vunpack.c.l.s4 1966171168
    %v443 = vunpack.c.0.s8 %v442
    %v444 = vlaneseq
    %v445 = vshrl.u32 %v444, 7
    %v446 = vsub.s32 %v443, %v445
    %v447 = vrot.slane %v425, %v446
    %v449 = vunpack.c.l.s4 1966171168
    %v450 = vunpack.c.0.s8 %v449
    %v451 = vlaneseq
    %v452 = vshrl.u32 %v451, 7
    %v453 = vsub.s32 %v450, %v452
    %v454 = vrot.slane %v426, %v453
    %v455 = vcombine.high %v433, %v433
    %v456 = vcombine.high %v440, %v440
    %v457 = vcombine.high %v447, %v447
    %v464 = vcombine.high %v157, %v157
    %v466 = vunpack.c.l.s4 1966171168
    %v467 = vunpack.c.0.s8 %v466
    %v468 = vlaneseq
    %v469 = vshrl.u32 %v468, 7
    %v470 = vsub.s32 %v467, %v469
    %v471 = vrot.slane %v157, %v470
    %v473 = vunpack.c.l.s4 1966171168
    %v474 = vunpack.c.0.s8 %v473
    %v475 = vlaneseq
    %v476 = vshrl.u32 %v475, 7
    %v477 = vsub.s32 %v474, %v476
    %v478 = vrot.slane %v464, %v477
    %v479 = vcombine.high %v471, %v471
    %v480 = vcombine.high %v478, %v478
    %v482 = vunpack.c.l.s4 1966171168
    %v483 = vunpack.c.0.s8 %v482
    %v484 = vlaneseq
    %v485 = vshrl.u32 %v484, 7
    %v486 = vsub.s32 %v483, %v485
    %v487 = vrot.slane %v471, %v486
    %v489 = vunpack.c.l.s4 1966171168
    %v490 = vunpack.c.0.s8 %v489
    %v491 = vlaneseq
    %v492 = vshrl.u32 %v491, 7
    %v493 = vsub.s32 %v490, %v492
    %v494 = vrot.slane %v478, %v493
    %v496 = vunpack.c.l.s4 1966171168
    %v497 = vunpack.c.0.s8 %v496
    %v498 = vlaneseq
    %v499 = vshrl.u32 %v498, 7
    %v500 = vsub.s32 %v497, %v499
    %v501 = vrot.slane %v479, %v500
    %v503 = vunpack.c.l.s4 1966171168
    %v504 = vunpack.c.0.s8 %v503
    %v505 = vlaneseq
    %v506 = vshrl.u32 %v505, 7
    %v507 = vsub.s32 %v504, %v506
    %v508 = vrot.slane %v480, %v507
    %v509 = vcombine.high %v487, %v487
    %v510 = vcombine.high %v494, %v494
    %v511 = vcombine.high %v501, %v501
    %v512 = vcombine.high %v158, %v158
    %v514 = vunpack.c.l.s4 1966171168
    %v515 = vunpack.c.0.s8 %v514
    %v516 = vlaneseq
    %v517 = vshrl.u32 %v516, 7
    %v518 = vsub.s32 %v515, %v517
    %v519 = vrot.slane %v158, %v518
    %v521 = vunpack.c.l.s4 1966171168
    %v522 = vunpack.c.0.s8 %v521
    %v523 = vlaneseq
    %v524 = vshrl.u32 %v523, 7
    %v525 = vsub.s32 %v522, %v524
    %v526 = vrot.slane %v512, %v525
    %v527 = vcombine.high %v519, %v519
    %v528 = vcombine.high %v526, %v526
    %v530 = vunpack.c.l.s4 1966171168
    %v531 = vunpack.c.0.s8 %v530
    %v532 = vlaneseq
    %v533 = vshrl.u32 %v532, 7
    %v534 = vsub.s32 %v531, %v533
    %v535 = vrot.slane %v519, %v534
    %v537 = vunpack.c.l.s4 1966171168
    %v538 = vunpack.c.0.s8 %v537
    %v539 = vlaneseq
    %v540 = vshrl.u32 %v539, 7
    %v541 = vsub.s32 %v538, %v540
    %v542 = vrot.slane %v526, %v541
    %v544 = vunpack.c.l.s4 1966171168
    %v545 = vunpack.c.0.s8 %v544
    %v546 = vlaneseq
    %v547 = vshrl.u32 %v546, 7
    %v548 = vsub.s32 %v545, %v547
    %v549 = vrot.slane %v527, %v548
    %v551 = vunpack.c.l.s4 1966171168
    %v552 = vunpack.c.0.s8 %v551
    %v553 = vlaneseq
    %v554 = vshrl.u32 %v553, 7
    %v555 = vsub.s32 %v552, %v554
    %v556 = vrot.slane %v528, %v555
    %v557 = vcombine.high %v535, %v535
    %v558 = vcombine.high %v542, %v542
    %v559 = vcombine.high %v549, %v549
    %v560 = vcombine.high %v159, %v159
    %v562 = vunpack.c.l.s4 1966171168
    %v563 = vunpack.c.0.s8 %v562
    %v564 = vlaneseq
    %v565 = vshrl.u32 %v564, 7
    %v566 = vsub.s32 %v563, %v565
    %v567 = vrot.slane %v159, %v566
    %v569 = vunpack.c.l.s4 1966171168
    %v570 = vunpack.c.0.s8 %v569
    %v571 = vlaneseq
    %v572 = vshrl.u32 %v571, 7
    %v573 = vsub.s32 %v570, %v572
    %v574 = vrot.slane %v560, %v573
    %v575 = vcombine.high %v567, %v567
    %v576 = vcombine.high %v574, %v574
    %v578 = vunpack.c.l.s4 1966171168
    %v579 = vunpack.c.0.s8 %v578
    %v580 = vlaneseq
    %v581 = vshrl.u32 %v580, 7
    %v582 = vsub.s32 %v579, %v581
    %v583 = vrot.slane %v567, %v582
    %v585 = vunpack.c.l.s4 1966171168
    %v586 = vunpack.c.0.s8 %v585
    %v587 = vlaneseq
    %v588 = vshrl.u32 %v587, 7
    %v589 = vsub.s32 %v586, %v588
    %v590 = vrot.slane %v574, %v589
    %v592 = vunpack.c.l.s4 1966171168
    %v593 = vunpack.c.0.s8 %v592
    %v594 = vlaneseq
    %v595 = vshrl.u32 %v594, 7
    %v596 = vsub.s32 %v593, %v595
    %v597 = vrot.slane %v575, %v596
    %v599 = vunpack.c.l.s4 1966171168
    %v600 = vunpack.c.0.s8 %v599
    %v601 = vlaneseq
    %v602 = vshrl.u32 %v601, 7
    %v603 = vsub.s32 %v600, %v602
    %v604 = vrot.slane %v576, %v603
    %v605 = vcombine.high %v583, %v583
    %v606 = vcombine.high %v590, %v590
    %v607 = vcombine.high %v597, %v597
    %v608 = vcombine.high %v160, %v160
    %v610 = vunpack.c.l.s4 1966171168
    %v611 = vunpack.c.0.s8 %v610
    %v612 = vlaneseq
    %v613 = vshrl.u32 %v612, 7
    %v614 = vsub.s32 %v611, %v613
    %v615 = vrot.slane %v160, %v614
    %v617 = vunpack.c.l.s4 1966171168
    %v618 = vunpack.c.0.s8 %v617
    %v619 = vlaneseq
    %v620 = vshrl.u32 %v619, 7
    %v621 = vsub.s32 %v618, %v620
    %v622 = vrot.slane %v608, %v621
    %v623 = vcombine.high %v615, %v615
    %v624 = vcombine.high %v622, %v622
    %v626 = vunpack.c.l.s4 1966171168
    %v627 = vunpack.c.0.s8 %v626
    %v628 = vlaneseq
    %v629 = vshrl.u32 %v628, 7
    %v630 = vsub.s32 %v627, %v629
    %v631 = vrot.slane %v615, %v630
    %v633 = vunpack.c.l.s4 1966171168
    %v634 = vunpack.c.0.s8 %v633
    %v635 = vlaneseq
    %v636 = vshrl.u32 %v635, 7
    %v637 = vsub.s32 %v634, %v636
    %v638 = vrot.slane %v622, %v637
    %v640 = vunpack.c.l.s4 1966171168
    %v641 = vunpack.c.0.s8 %v640
    %v642 = vlaneseq
    %v643 = vshrl.u32 %v642, 7
    %v644 = vsub.s32 %v641, %v643
    %v645 = vrot.slane %v623, %v644
    %v647 = vunpack.c.l.s4 1966171168
    %v648 = vunpack.c.0.s8 %v647
    %v649 = vlaneseq
    %v650 = vshrl.u32 %v649, 7
    %v651 = vsub.s32 %v648, %v650
    %v652 = vrot.slane %v624, %v651
    %v653 = vcombine.high %v631, %v631
    %v654 = vcombine.high %v638, %v638
    %v655 = vcombine.high %v645, %v645
    %v656 = vcombine.high %v161, %v161
    %v658 = vunpack.c.l.s4 1966171168
    %v659 = vunpack.c.0.s8 %v658
    %v660 = vlaneseq
    %v661 = vshrl.u32 %v660, 7
    %v662 = vsub.s32 %v659, %v661
    %v663 = vrot.slane %v161, %v662
    %v665 = vunpack.c.l.s4 1966171168
    %v666 = vunpack.c.0.s8 %v665
    %v667 = vlaneseq
    %v668 = vshrl.u32 %v667, 7
    %v669 = vsub.s32 %v666, %v668
    %v670 = vrot.slane %v656, %v669
    %v671 = vcombine.high %v663, %v663
    %v672 = vcombine.high %v670, %v670
    %v674 = vunpack.c.l.s4 1966171168
    %v675 = vunpack.c.0.s8 %v674
    %v676 = vlaneseq
    %v677 = vshrl.u32 %v676, 7
    %v678 = vsub.s32 %v675, %v677
    %v679 = vrot.slane %v663, %v678
    %v681 = vunpack.c.l.s4 1966171168
    %v682 = vunpack.c.0.s8 %v681
    %v683 = vlaneseq
    %v684 = vshrl.u32 %v683, 7
    %v685 = vsub.s32 %v682, %v684
    %v686 = vrot.slane %v670, %v685
    %v688 = vunpack.c.l.s4 1966171168
    %v689 = vunpack.c.0.s8 %v688
    %v690 = vlaneseq
    %v691 = vshrl.u32 %v690, 7
    %v692 = vsub.s32 %v689, %v691
    %v693 = vrot.slane %v671, %v692
    %v695 = vunpack.c.l.s4 1966171168
    %v696 = vunpack.c.0.s8 %v695
    %v697 = vlaneseq
    %v698 = vshrl.u32 %v697, 7
    %v699 = vsub.s32 %v696, %v698
    %v700 = vrot.slane %v672, %v699
    %v701 = vcombine.high %v679, %v679
    %v702 = vcombine.high %v686, %v686
    %v703 = vcombine.high %v693, %v693
    %v704 = vcombine.high %v162, %v162
    %v706 = vunpack.c.l.s4 1966171168
    %v707 = vunpack.c.0.s8 %v706
    %v708 = vlaneseq
    %v709 = vshrl.u32 %v708, 7
    %v710 = vsub.s32 %v707, %v709
    %v711 = vrot.slane %v162, %v710
    %v713 = vunpack.c.l.s4 1966171168
    %v714 = vunpack.c.0.s8 %v713
    %v715 = vlaneseq
    %v716 = vshrl.u32 %v715, 7
    %v717 = vsub.s32 %v714, %v716
    %v718 = vrot.slane %v704, %v717
    %v719 = vcombine.high %v711, %v711
    %v720 = vcombine.high %v718, %v718
    %v722 = vunpack.c.l.s4 1966171168
    %v723 = vunpack.c.0.s8 %v722
    %v724 = vlaneseq
    %v725 = vshrl.u32 %v724, 7
    %v726 = vsub.s32 %v723, %v725
    %v727 = vrot.slane %v711, %v726
    %v729 = vunpack.c.l.s4 1966171168
    %v730 = vunpack.c.0.s8 %v729
    %v731 = vlaneseq
    %v732 = vshrl.u32 %v731, 7
    %v733 = vsub.s32 %v730, %v732
    %v734 = vrot.slane %v718, %v733
    %v736 = vunpack.c.l.s4 1966171168
    %v737 = vunpack.c.0.s8 %v736
    %v738 = vlaneseq
    %v739 = vshrl.u32 %v738, 7
    %v740 = vsub.s32 %v737, %v739
    %v741 = vrot.slane %v719, %v740
    %v743 = vunpack.c.l.s4 1966171168
    %v744 = vunpack.c.0.s8 %v743
    %v745 = vlaneseq
    %v746 = vshrl.u32 %v745, 7
    %v747 = vsub.s32 %v744, %v746
    %v748 = vrot.slane %v720, %v747
    %v749 = vcombine.high %v727, %v727
    %v750 = vcombine.high %v734, %v734
    %v751 = vcombine.high %v741, %v741
    %752 = vset.pattern.permute.xlu0 4
    %753 = vperm.xlu0 %752, %v487
    %v754 = vpop.permute.xlu0 %753
    %v756 = vlaneseq
    %v757 = vshrl.u32 %v756, 7
    %v758 = vsub.s32 0, %v757
    %v759 = vrot.slane %v754, %v758
    %760 = vset.pattern.permute.xlu0 4
    %761 = vperm.xlu0 %760, %v501
    %v762 = vpop.permute.xlu0 %761
    %v764 = vlaneseq
    %v765 = vshrl.u32 %v764, 7
    %v766 = vsub.s32 0, %v765
    %v767 = vrot.slane %v762, %v766
    %768 = vset.pattern.permute.xlu0 4
    %769 = vperm.xlu0 %768, %v509
    %v770 = vpop.permute.xlu0 %769
    %v772 = vlaneseq
    %v773 = vshrl.u32 %v772, 7
    %v774 = vsub.s32 0, %v773
    %v775 = vrot.slane %v770, %v774
    %776 = vset.pattern.permute.xlu0 4
    %777 = vperm.xlu0 %776, %v511
    %v778 = vpop.permute.xlu0 %777
    %v780 = vlaneseq
    %v781 = vshrl.u32 %v780, 7
    %v782 = vsub.s32 0, %v781
    %v783 = vrot.slane %v778, %v782
    %784 = vset.pattern.permute.xlu0 4
    %785 = vperm.xlu0 %784, %v494
    %v786 = vpop.permute.xlu0 %785
    %v788 = vlaneseq
    %v789 = vshrl.u32 %v788, 7
    %v790 = vsub.s32 0, %v789
    %v791 = vrot.slane %v786, %v790
    %792 = vset.pattern.permute.xlu0 4
    %793 = vperm.xlu0 %792, %v508
    %v794 = vpop.permute.xlu0 %793
    %v796 = vlaneseq
    %v797 = vshrl.u32 %v796, 7
    %v798 = vsub.s32 0, %v797
    %v799 = vrot.slane %v794, %v798
    %800 = vset.pattern.permute.xlu0 4
    %801 = vperm.xlu0 %800, %v510
    %v802 = vpop.permute.xlu0 %801
    %v804 = vlaneseq
    %v805 = vshrl.u32 %v804, 7
    %v806 = vsub.s32 0, %v805
    %v807 = vrot.slane %v802, %v806
    %808 = vset.pattern.permute.xlu0 4
    %809 = vperm.xlu0 %808, %v535
    %v810 = vpop.permute.xlu0 %809
    %v812 = vlaneseq
    %v813 = vshrl.u32 %v812, 7
    %v814 = vsub.s32 0, %v813
    %v815 = vrot.slane %v810, %v814
    %816 = vset.pattern.permute.xlu0 4
    %817 = vperm.xlu0 %816, %v549
    %v818 = vpop.permute.xlu0 %817
    %v820 = vlaneseq
    %v821 = vshrl.u32 %v820, 7
    %v822 = vsub.s32 0, %v821
    %v823 = vrot.slane %v818, %v822
    %824 = vset.pattern.permute.xlu0 4
    %825 = vperm.xlu0 %824, %v557
    %v826 = vpop.permute.xlu0 %825
    %v828 = vlaneseq
    %v829 = vshrl.u32 %v828, 7
    %v830 = vsub.s32 0, %v829
    %v831 = vrot.slane %v826, %v830
    %832 = vset.pattern.permute.xlu0 4
    %833 = vperm.xlu0 %832, %v559
    %v834 = vpop.permute.xlu0 %833
    %v836 = vlaneseq
    %v837 = vshrl.u32 %v836, 7
    %v838 = vsub.s32 0, %v837
    %v839 = vrot.slane %v834, %v838
    %840 = vset.pattern.permute.xlu0 4
    %841 = vperm.xlu0 %840, %v542
    %v842 = vpop.permute.xlu0 %841
    %v844 = vlaneseq
    %v845 = vshrl.u32 %v844, 7
    %v846 = vsub.s32 0, %v845
    %v847 = vrot.slane %v842, %v846
    %848 = vset.pattern.permute.xlu0 4
    %849 = vperm.xlu0 %848, %v556
    %v850 = vpop.permute.xlu0 %849
    %v852 = vlaneseq
    %v853 = vshrl.u32 %v852, 7
    %v854 = vsub.s32 0, %v853
    %v855 = vrot.slane %v850, %v854
    %856 = vset.pattern.permute.xlu0 4
    %857 = vperm.xlu0 %856, %v558
    %v858 = vpop.permute.xlu0 %857
    %v860 = vlaneseq
    %v861 = vshrl.u32 %v860, 7
    %v862 = vsub.s32 0, %v861
    %v863 = vrot.slane %v858, %v862
    %864 = vset.pattern.permute.xlu0 4
    %865 = vperm.xlu0 %864, %v583
    %v866 = vpop.permute.xlu0 %865
    %v868 = vlaneseq
    %v869 = vshrl.u32 %v868, 7
    %v870 = vsub.s32 0, %v869
    %v871 = vrot.slane %v866, %v870
    %872 = vset.pattern.permute.xlu0 4
    %873 = vperm.xlu0 %872, %v597
    %v874 = vpop.permute.xlu0 %873
    %v876 = vlaneseq
    %v877 = vshrl.u32 %v876, 7
    %v878 = vsub.s32 0, %v877
    %v879 = vrot.slane %v874, %v878
    %880 = vset.pattern.permute.xlu0 4
    %881 = vperm.xlu0 %880, %v605
    %v882 = vpop.permute.xlu0 %881
    %v884 = vlaneseq
    %v885 = vshrl.u32 %v884, 7
    %v886 = vsub.s32 0, %v885
    %v887 = vrot.slane %v882, %v886
    %888 = vset.pattern.permute.xlu0 4
    %889 = vperm.xlu0 %888, %v607
    %v890 = vpop.permute.xlu0 %889
    %v892 = vlaneseq
    %v893 = vshrl.u32 %v892, 7
    %v894 = vsub.s32 0, %v893
    %v895 = vrot.slane %v890, %v894
    %896 = vset.pattern.permute.xlu0 4
    %897 = vperm.xlu0 %896, %v590
    %v898 = vpop.permute.xlu0 %897
    %v900 = vlaneseq
    %v901 = vshrl.u32 %v900, 7
    %v902 = vsub.s32 0, %v901
    %v903 = vrot.slane %v898, %v902
    %904 = vset.pattern.permute.xlu0 4
    %905 = vperm.xlu0 %904, %v604
    %v906 = vpop.permute.xlu0 %905
    %v908 = vlaneseq
    %v909 = vshrl.u32 %v908, 7
    %v910 = vsub.s32 0, %v909
    %v911 = vrot.slane %v906, %v910
    %912 = vset.pattern.permute.xlu0 4
    %913 = vperm.xlu0 %912, %v606
    %v914 = vpop.permute.xlu0 %913
    %v916 = vlaneseq
    %v917 = vshrl.u32 %v916, 7
    %v918 = vsub.s32 0, %v917
    %v919 = vrot.slane %v914, %v918
    %920 = vset.pattern.permute.xlu0 4
    %921 = vperm.xlu0 %920, %v631
    %v922 = vpop.permute.xlu0 %921
    %v924 = vlaneseq
    %v925 = vshrl.u32 %v924, 7
    %v926 = vsub.s32 0, %v925
    %v927 = vrot.slane %v922, %v926
    %928 = vset.pattern.permute.xlu0 4
    %929 = vperm.xlu0 %928, %v645
    %v930 = vpop.permute.xlu0 %929
    %v932 = vlaneseq
    %v933 = vshrl.u32 %v932, 7
    %v934 = vsub.s32 0, %v933
    %v935 = vrot.slane %v930, %v934
    %936 = vset.pattern.permute.xlu0 4
    %937 = vperm.xlu0 %936, %v653
    %v938 = vpop.permute.xlu0 %937
    %v940 = vlaneseq
    %v941 = vshrl.u32 %v940, 7
    %v942 = vsub.s32 0, %v941
    %v943 = vrot.slane %v938, %v942
    %944 = vset.pattern.permute.xlu0 4
    %945 = vperm.xlu0 %944, %v655
    %v946 = vpop.permute.xlu0 %945
    %v948 = vlaneseq
    %v949 = vshrl.u32 %v948, 7
    %v950 = vsub.s32 0, %v949
    %v951 = vrot.slane %v946, %v950
    %952 = vset.pattern.permute.xlu0 4
    %953 = vperm.xlu0 %952, %v638
    %v954 = vpop.permute.xlu0 %953
    %v956 = vlaneseq
    %v957 = vshrl.u32 %v956, 7
    %v958 = vsub.s32 0, %v957
    %v959 = vrot.slane %v954, %v958
    %960 = vset.pattern.permute.xlu0 4
    %961 = vperm.xlu0 %960, %v652
    %v962 = vpop.permute.xlu0 %961
    %v964 = vlaneseq
    %v965 = vshrl.u32 %v964, 7
    %v966 = vsub.s32 0, %v965
    %v967 = vrot.slane %v962, %v966
    %968 = vset.pattern.permute.xlu0 4
    %969 = vperm.xlu0 %968, %v654
    %v970 = vpop.permute.xlu0 %969
    %v972 = vlaneseq
    %v973 = vshrl.u32 %v972, 7
    %v974 = vsub.s32 0, %v973
    %v975 = vrot.slane %v970, %v974
    %976 = vset.pattern.permute.xlu0 4
    %977 = vperm.xlu0 %976, %v679
    %v978 = vpop.permute.xlu0 %977
    %v980 = vlaneseq
    %v981 = vshrl.u32 %v980, 7
    %v982 = vsub.s32 0, %v981
    %v983 = vrot.slane %v978, %v982
    %984 = vset.pattern.permute.xlu0 4
    %985 = vperm.xlu0 %984, %v693
    %v986 = vpop.permute.xlu0 %985
    %v988 = vlaneseq
    %v989 = vshrl.u32 %v988, 7
    %v990 = vsub.s32 0, %v989
    %v991 = vrot.slane %v986, %v990
    %992 = vset.pattern.permute.xlu0 4
    %993 = vperm.xlu0 %992, %v701
    %v994 = vpop.permute.xlu0 %993
    %v996 = vlaneseq
    %v997 = vshrl.u32 %v996, 7
    %v998 = vsub.s32 0, %v997
    %v999 = vrot.slane %v994, %v998
    %1000 = vset.pattern.permute.xlu0 4
    %1001 = vperm.xlu0 %1000, %v703
    %v1002 = vpop.permute.xlu0 %1001
    %v1004 = vlaneseq
    %v1005 = vshrl.u32 %v1004, 7
    %v1006 = vsub.s32 0, %v1005
    %v1007 = vrot.slane %v1002, %v1006
    %1008 = vset.pattern.permute.xlu0 4
    %1009 = vperm.xlu0 %1008, %v686
    %v1010 = vpop.permute.xlu0 %1009
    %v1012 = vlaneseq
    %v1013 = vshrl.u32 %v1012, 7
    %v1014 = vsub.s32 0, %v1013
    %v1015 = vrot.slane %v1010, %v1014
    %1016 = vset.pattern.permute.xlu0 4
    %1017 = vperm.xlu0 %1016, %v700
    %v1018 = vpop.permute.xlu0 %1017
    %v1020 = vlaneseq
    %v1021 = vshrl.u32 %v1020, 7
    %v1022 = vsub.s32 0, %v1021
    %v1023 = vrot.slane %v1018, %v1022
    %1024 = vset.pattern.permute.xlu0 4
    %1025 = vperm.xlu0 %1024, %v702
    %v1026 = vpop.permute.xlu0 %1025
    %v1028 = vlaneseq
    %v1029 = vshrl.u32 %v1028, 7
    %v1030 = vsub.s32 0, %v1029
    %v1031 = vrot.slane %v1026, %v1030
    %1032 = vset.pattern.permute.xlu0 4
    %1033 = vperm.xlu0 %1032, %v727
    %v1034 = vpop.permute.xlu0 %1033
    %v1036 = vlaneseq
    %v1037 = vshrl.u32 %v1036, 7
    %v1038 = vsub.s32 0, %v1037
    %v1039 = vrot.slane %v1034, %v1038
    %1040 = vset.pattern.permute.xlu0 4
    %1041 = vperm.xlu0 %1040, %v741
    %v1042 = vpop.permute.xlu0 %1041
    %v1044 = vlaneseq
    %v1045 = vshrl.u32 %v1044, 7
    %v1046 = vsub.s32 0, %v1045
    %v1047 = vrot.slane %v1042, %v1046
    %1048 = vset.pattern.permute.xlu0 4
    %1049 = vperm.xlu0 %1048, %v749
    %v1050 = vpop.permute.xlu0 %1049
    %v1052 = vlaneseq
    %v1053 = vshrl.u32 %v1052, 7
    %v1054 = vsub.s32 0, %v1053
    %v1055 = vrot.slane %v1050, %v1054
    %1056 = vset.pattern.permute.xlu0 4
    %1057 = vperm.xlu0 %1056, %v751
    %v1058 = vpop.permute.xlu0 %1057
    %v1060 = vlaneseq
    %v1061 = vshrl.u32 %v1060, 7
    %v1062 = vsub.s32 0, %v1061
    %v1063 = vrot.slane %v1058, %v1062
    %1064 = vset.pattern.permute.xlu0 4
    %1065 = vperm.xlu0 %1064, %v734
    %v1066 = vpop.permute.xlu0 %1065
    %v1068 = vlaneseq
    %v1069 = vshrl.u32 %v1068, 7
    %v1070 = vsub.s32 0, %v1069
    %v1071 = vrot.slane %v1066, %v1070
    %1072 = vset.pattern.permute.xlu0 4
    %1073 = vperm.xlu0 %1072, %v748
    %v1074 = vpop.permute.xlu0 %1073
    %v1076 = vlaneseq
    %v1077 = vshrl.u32 %v1076, 7
    %v1078 = vsub.s32 0, %v1077
    %v1079 = vrot.slane %v1074, %v1078
    %1080 = vset.pattern.permute.xlu0 4
    %1081 = vperm.xlu0 %1080, %v750
    %v1082 = vpop.permute.xlu0 %1081
    %v1084 = vlaneseq
    %v1085 = vshrl.u32 %v1084, 7
    %v1086 = vsub.s32 0, %v1085
    %v1087 = vrot.slane %v1082, %v1086
    %v1088 = vlaneseq
    %v1089 = vshrl.u32 %v1088, 7
    %v1090 = vsub.s32 0, %v1089
    %v1091 = vrot.slane %v168, %v1090
    %v1093 = vcombine.high %v1091, %v1091
    %v1095 = vunpack.c.l.s4 1966171168
    %v1096 = vunpack.c.0.s8 %v1095
    %v1097 = vlaneseq
    %v1098 = vshrl.u32 %v1097, 7
    %v1099 = vsub.s32 %v1096, %v1098
    %v1100 = vrot.slane %v1091, %v1099
    %v1102 = vunpack.c.l.s4 1966171168
    %v1103 = vunpack.c.0.s8 %v1102
    %v1104 = vlaneseq
    %v1105 = vshrl.u32 %v1104, 7
    %v1106 = vsub.s32 %v1103, %v1105
    %v1107 = vrot.slane %v1093, %v1106
    %v1108 = vcombine.high %v1100, %v1100
    %v1109 = vcombine.high %v1107, %v1107
    %v1111 = vunpack.c.l.s4 1966171168
    %v1112 = vunpack.c.0.s8 %v1111
    %v1113 = vlaneseq
    %v1114 = vshrl.u32 %v1113, 7
    %v1115 = vsub.s32 %v1112, %v1114
    %v1116 = vrot.slane %v1100, %v1115
    %v1118 = vunpack.c.l.s4 1966171168
    %v1119 = vunpack.c.0.s8 %v1118
    %v1120 = vlaneseq
    %v1121 = vshrl.u32 %v1120, 7
    %v1122 = vsub.s32 %v1119, %v1121
    %v1123 = vrot.slane %v1107, %v1122
    %v1125 = vunpack.c.l.s4 1966171168
    %v1126 = vunpack.c.0.s8 %v1125
    %v1127 = vlaneseq
    %v1128 = vshrl.u32 %v1127, 7
    %v1129 = vsub.s32 %v1126, %v1128
    %v1130 = vrot.slane %v1108, %v1129
    %v1132 = vunpack.c.l.s4 1966171168
    %v1133 = vunpack.c.0.s8 %v1132
    %v1134 = vlaneseq
    %v1135 = vshrl.u32 %v1134, 7
    %v1136 = vsub.s32 %v1133, %v1135
    %v1137 = vrot.slane %v1109, %v1136
    %v1138 = vcombine.high %v1116, %v1116
    %v1139 = vcombine.high %v1123, %v1123
    %v1140 = vcombine.high %v1130, %v1130
    %v1141 = vcombine.high %v1137, %v1137
    %v1150 = vmul.f32 %v759, %v1116
    %v1151 = vmul.f32 %v767, %v1130
    %v1152 = vmul.f32 %v775, %v1138
    %v1153 = vmul.f32 %v783, %v1140
    %v1154 = vmul.f32 %v791, %v1123
    %v1155 = vmul.f32 %v799, %v1137
    %v1156 = vmul.f32 %v807, %v1139
    %v1157 = vmul.f32 %v815, %v1141
    %v1158 = vmul.f32 %v823, %v1116
    %v1159 = vmul.f32 %v831, %v1130
    %v1160 = vmul.f32 %v839, %v1138
    %v1161 = vmul.f32 %v847, %v1140
    %v1162 = vmul.f32 %v855, %v1123
    %v1163 = vmul.f32 %v863, %v1137
    %v1164 = vmul.f32 %v871, %v1139
    %v1165 = vmul.f32 %v879, %v1141
    %v1166 = vmul.f32 %v887, %v1116
    %v1167 = vmul.f32 %v895, %v1130
    %v1168 = vmul.f32 %v903, %v1138
    %v1169 = vmul.f32 %v911, %v1140
    %v1170 = vmul.f32 %v919, %v1123
    %v1171 = vmul.f32 %v927, %v1137
    %v1172 = vmul.f32 %v935, %v1139
    %v1173 = vmul.f32 %v943, %v1141
    %v1174 = vmul.f32 %v951, %v1116
    %v1175 = vmul.f32 %v959, %v1130
    %v1176 = vmul.f32 %v967, %v1138
    %v1177 = vmul.f32 %v975, %v1140
    %v1178 = vmul.f32 %v983, %v1123
    %v1179 = vmul.f32 %v991, %v1137
    %v1180 = vmul.f32 %v999, %v1139
    %v1181 = vmul.f32 %v1007, %v1141
    %v1182 = vmul.f32 %v1015, %v1116
    %v1183 = vmul.f32 %v1023, %v1130
    %v1184 = vmul.f32 %v1031, %v1138
    %v1185 = vmul.f32 %v1039, %v1140
    %v1186 = vmul.f32 %v1047, %v1123
    %v1187 = vmul.f32 %v1055, %v1137
    %v1188 = vmul.f32 %v1063, %v1139
    %v1189 = vmul.f32 %v1071, %v1141
    %v1190 = vmul.f32 %v1079, %v1116
    %v1191 = vmul.f32 %v1087, %v1130
    %v1192 = vcombine.low %v193, %v207
    %v1193 = vcombine.low %v215, %v217
    %v1194 = vcombine.low %v200, %v214
    %v1195 = vcombine.low %v216, %v241
    %v1197 = vunpack.c.l.s4 1966171168
    %v1198 = vunpack.c.0.s8 %v1197
    %v1199 = vlaneseq
    %v1200 = vshrl.u32 %v1199, 7
    %v1201 = vsub.s32 %v1198, %v1200
    %v1202 = vrot.slane %v1192, %v1201
    %v1204 = vunpack.c.l.s4 1966171168
    %v1205 = vunpack.c.0.s8 %v1204
    %v1206 = vlaneseq
    %v1207 = vshrl.u32 %v1206, 7
    %v1208 = vsub.s32 %v1205, %v1207
    %v1209 = vrot.slane %v1193, %v1208
    %v1211 = vunpack.c.l.s4 1966171168
    %v1212 = vunpack.c.0.s8 %v1211
    %v1213 = vlaneseq
    %v1214 = vshrl.u32 %v1213, 7
    %v1215 = vsub.s32 %v1212, %v1214
    %v1216 = vrot.slane %v1194, %v1215
    %v1218 = vunpack.c.l.s4 1966171168
    %v1219 = vunpack.c.0.s8 %v1218
    %v1220 = vlaneseq
    %v1221 = vshrl.u32 %v1220, 7
    %v1222 = vsub.s32 %v1219, %v1221
    %v1223 = vrot.slane %v1195, %v1222
    %v1224 = vcombine.low %v1202, %v1209
    %v1225 = vcombine.low %v1216, %v1223
    %v1227 = vunpack.c.l.s4 1966171168
    %v1228 = vunpack.c.0.s8 %v1227
    %v1229 = vlaneseq
    %v1230 = vshrl.u32 %v1229, 7
    %v1231 = vsub.s32 %v1228, %v1230
    %v1232 = vrot.slane %v1224, %v1231
    %v1234 = vunpack.c.l.s4 1966171168
    %v1235 = vunpack.c.0.s8 %v1234
    %v1236 = vlaneseq
    %v1237 = vshrl.u32 %v1236, 7
    %v1238 = vsub.s32 %v1235, %v1237
    %v1239 = vrot.slane %v1225, %v1238
    %v1240 = vcombine.low %v1232, %v1239
    %v1241 = vcombine.low %v255, %v263
    %v1242 = vcombine.low %v265, %v248
    %v1243 = vcombine.low %v262, %v264
    %v1244 = vcombine.low %v289, %v303
    %v1246 = vunpack.c.l.s4 1966171168
    %v1247 = vunpack.c.0.s8 %v1246
    %v1248 = vlaneseq
    %v1249 = vshrl.u32 %v1248, 7
    %v1250 = vsub.s32 %v1247, %v1249
    %v1251 = vrot.slane %v1241, %v1250
    %v1253 = vunpack.c.l.s4 1966171168
    %v1254 = vunpack.c.0.s8 %v1253
    %v1255 = vlaneseq
    %v1256 = vshrl.u32 %v1255, 7
    %v1257 = vsub.s32 %v1254, %v1256
    %v1258 = vrot.slane %v1242, %v1257
    %v1260 = vunpack.c.l.s4 1966171168
    %v1261 = vunpack.c.0.s8 %v1260
    %v1262 = vlaneseq
    %v1263 = vshrl.u32 %v1262, 7
    %v1264 = vsub.s32 %v1261, %v1263
    %v1265 = vrot.slane %v1243, %v1264
    %v1267 = vunpack.c.l.s4 1966171168
    %v1268 = vunpack.c.0.s8 %v1267
    %v1269 = vlaneseq
    %v1270 = vshrl.u32 %v1269, 7
    %v1271 = vsub.s32 %v1268, %v1270
    %v1272 = vrot.slane %v1244, %v1271
    %v1273 = vcombine.low %v1251, %v1258
    %v1274 = vcombine.low %v1265, %v1272
    %v1276 = vunpack.c.l.s4 1966171168
    %v1277 = vunpack.c.0.s8 %v1276
    %v1278 = vlaneseq
    %v1279 = vshrl.u32 %v1278, 7
    %v1280 = vsub.s32 %v1277, %v1279
    %v1281 = vrot.slane %v1273, %v1280
    %v1283 = vunpack.c.l.s4 1966171168
    %v1284 = vunpack.c.0.s8 %v1283
    %v1285 = vlaneseq
    %v1286 = vshrl.u32 %v1285, 7
    %v1287 = vsub.s32 %v1284, %v1286
    %v1288 = vrot.slane %v1274, %v1287
    %v1289 = vcombine.low %v1281, %v1288
    %v1290 = vcombine.low %v311, %v313
    %v1291 = vcombine.low %v296, %v310
    %v1292 = vcombine.low %v312, %v337
    %v1293 = vcombine.low %v351, %v359
    %v1295 = vunpack.c.l.s4 1966171168
    %v1296 = vunpack.c.0.s8 %v1295
    %v1297 = vlaneseq
    %v1298 = vshrl.u32 %v1297, 7
    %v1299 = vsub.s32 %v1296, %v1298
    %v1300 = vrot.slane %v1290, %v1299
    %v1302 = vunpack.c.l.s4 1966171168
    %v1303 = vunpack.c.0.s8 %v1302
    %v1304 = vlaneseq
    %v1305 = vshrl.u32 %v1304, 7
    %v1306 = vsub.s32 %v1303, %v1305
    %v1307 = vrot.slane %v1291, %v1306
    %v1309 = vunpack.c.l.s4 1966171168
    %v1310 = vunpack.c.0.s8 %v1309
    %v1311 = vlaneseq
    %v1312 = vshrl.u32 %v1311, 7
    %v1313 = vsub.s32 %v1310, %v1312
    %v1314 = vrot.slane %v1292, %v1313
    %v1316 = vunpack.c.l.s4 1966171168
    %v1317 = vunpack.c.0.s8 %v1316
    %v1318 = vlaneseq
    %v1319 = vshrl.u32 %v1318, 7
    %v1320 = vsub.s32 %v1317, %v1319
    %v1321 = vrot.slane %v1293, %v1320
    %v1322 = vcombine.low %v1300, %v1307
    %v1323 = vcombine.low %v1314, %v1321
    %v1325 = vunpack.c.l.s4 1966171168
    %v1326 = vunpack.c.0.s8 %v1325
    %v1327 = vlaneseq
    %v1328 = vshrl.u32 %v1327, 7
    %v1329 = vsub.s32 %v1326, %v1328
    %v1330 = vrot.slane %v1322, %v1329
    %v1332 = vunpack.c.l.s4 1966171168
    %v1333 = vunpack.c.0.s8 %v1332
    %v1334 = vlaneseq
    %v1335 = vshrl.u32 %v1334, 7
    %v1336 = vsub.s32 %v1333, %v1335
    %v1337 = vrot.slane %v1323, %v1336
    %v1338 = vcombine.low %v1330, %v1337
    %v1339 = vcombine.low %v361, %v344
    %v1340 = vcombine.low %v358, %v360
    %v1341 = vcombine.low %v385, %v399
    %v1342 = vcombine.low %v407, %v409
    %v1344 = vunpack.c.l.s4 1966171168
    %v1345 = vunpack.c.0.s8 %v1344
    %v1346 = vlaneseq
    %v1347 = vshrl.u32 %v1346, 7
    %v1348 = vsub.s32 %v1345, %v1347
    %v1349 = vrot.slane %v1339, %v1348
    %v1351 = vunpack.c.l.s4 1966171168
    %v1352 = vunpack.c.0.s8 %v1351
    %v1353 = vlaneseq
    %v1354 = vshrl.u32 %v1353, 7
    %v1355 = vsub.s32 %v1352, %v1354
    %v1356 = vrot.slane %v1340, %v1355
    %v1358 = vunpack.c.l.s4 1966171168
    %v1359 = vunpack.c.0.s8 %v1358
    %v1360 = vlaneseq
    %v1361 = vshrl.u32 %v1360, 7
    %v1362 = vsub.s32 %v1359, %v1361
    %v1363 = vrot.slane %v1341, %v1362
    %v1365 = vunpack.c.l.s4 1966171168
    %v1366 = vunpack.c.0.s8 %v1365
    %v1367 = vlaneseq
    %v1368 = vshrl.u32 %v1367, 7
    %v1369 = vsub.s32 %v1366, %v1368
    %v1370 = vrot.slane %v1342, %v1369
    %v1371 = vcombine.low %v1349, %v1356
    %v1372 = vcombine.low %v1363, %v1370
    %v1374 = vunpack.c.l.s4 1966171168
    %v1375 = vunpack.c.0.s8 %v1374
    %v1376 = vlaneseq
    %v1377 = vshrl.u32 %v1376, 7
    %v1378 = vsub.s32 %v1375, %v1377
    %v1379 = vrot.slane %v1371, %v1378
    %v1381 = vunpack.c.l.s4 1966171168
    %v1382 = vunpack.c.0.s8 %v1381
    %v1383 = vlaneseq
    %v1384 = vshrl.u32 %v1383, 7
    %v1385 = vsub.s32 %v1382, %v1384
    %v1386 = vrot.slane %v1372, %v1385
    %v1387 = vcombine.low %v1379, %v1386
    %v1388 = vcombine.low %v392, %v406
    %v1389 = vcombine.low %v408, %v433
    %v1390 = vcombine.low %v447, %v455
    %v1391 = vcombine.low %v457, %v440
    %v1393 = vunpack.c.l.s4 1966171168
    %v1394 = vunpack.c.0.s8 %v1393
    %v1395 = vlaneseq
    %v1396 = vshrl.u32 %v1395, 7
    %v1397 = vsub.s32 %v1394, %v1396
    %v1398 = vrot.slane %v1388, %v1397
    %v1400 = vunpack.c.l.s4 1966171168
    %v1401 = vunpack.c.0.s8 %v1400
    %v1402 = vlaneseq
    %v1403 = vshrl.u32 %v1402, 7
    %v1404 = vsub.s32 %v1401, %v1403
    %v1405 = vrot.slane %v1389, %v1404
    %v1407 = vunpack.c.l.s4 1966171168
    %v1408 = vunpack.c.0.s8 %v1407
    %v1409 = vlaneseq
    %v1410 = vshrl.u32 %v1409, 7
    %v1411 = vsub.s32 %v1408, %v1410
    %v1412 = vrot.slane %v1390, %v1411
    %v1414 = vunpack.c.l.s4 1966171168
    %v1415 = vunpack.c.0.s8 %v1414
    %v1416 = vlaneseq
    %v1417 = vshrl.u32 %v1416, 7
    %v1418 = vsub.s32 %v1415, %v1417
    %v1419 = vrot.slane %v1391, %v1418
    %v1420 = vcombine.low %v1398, %v1405
    %v1421 = vcombine.low %v1412, %v1419
    %v1423 = vunpack.c.l.s4 1966171168
    %v1424 = vunpack.c.0.s8 %v1423
    %v1425 = vlaneseq
    %v1426 = vshrl.u32 %v1425, 7
    %v1427 = vsub.s32 %v1424, %v1426
    %v1428 = vrot.slane %v1420, %v1427
    %v1430 = vunpack.c.l.s4 1966171168
    %v1431 = vunpack.c.0.s8 %v1430
    %v1432 = vlaneseq
    %v1433 = vshrl.u32 %v1432, 7
    %v1434 = vsub.s32 %v1431, %v1433
    %v1435 = vrot.slane %v1421, %v1434
    %v1436 = vcombine.low %v1428, %v1435
    %v1437 = vcombine.low %v454, %v456
    %v1439 = vunpack.c.l.s4 1966171168
    %v1440 = vunpack.c.0.s8 %v1439
    %v1441 = vlaneseq
    %v1442 = vshrl.u32 %v1441, 7
    %v1443 = vsub.s32 %v1440, %v1442
    %v1444 = vrot.slane %v1437, %v1443
    %v1446 = vunpack.c.l.s4 1966171168
    %v1447 = vunpack.c.0.s8 %v1446
    %v1448 = vlaneseq
    %v1449 = vshrl.u32 %v1448, 7
    %v1450 = vsub.s32 %v1447, %v1449
    %v1451 = vrot.slane %v1444, %v1450
    %v1494 = vcombine.low %v1150, %v1151
    %v1495 = vcombine.low %v1152, %v1153
    %v1496 = vcombine.low %v1154, %v1155
    %v1497 = vcombine.low %v1156, %v1157
    %v1499 = vunpack.c.l.s4 1966171168
    %v1500 = vunpack.c.0.s8 %v1499
    %v1501 = vlaneseq
    %v1502 = vshrl.u32 %v1501, 7
    %v1503 = vsub.s32 %v1500, %v1502
    %v1504 = vrot.slane %v1494, %v1503
    %v1506 = vunpack.c.l.s4 1966171168
    %v1507 = vunpack.c.0.s8 %v1506
    %v1508 = vlaneseq
    %v1509 = vshrl.u32 %v1508, 7
    %v1510 = vsub.s32 %v1507, %v1509
    %v1511 = vrot.slane %v1495, %v1510
    %v1513 = vunpack.c.l.s4 1966171168
    %v1514 = vunpack.c.0.s8 %v1513
    %v1515 = vlaneseq
    %v1516 = vshrl.u32 %v1515, 7
    %v1517 = vsub.s32 %v1514, %v1516
    %v1518 = vrot.slane %v1496, %v1517
    %v1520 = vunpack.c.l.s4 1966171168
    %v1521 = vunpack.c.0.s8 %v1520
    %v1522 = vlaneseq
    %v1523 = vshrl.u32 %v1522, 7
    %v1524 = vsub.s32 %v1521, %v1523
    %v1525 = vrot.slane %v1497, %v1524
    %v1526 = vcombine.low %v1504, %v1511
    %v1527 = vcombine.low %v1518, %v1525
    %v1529 = vunpack.c.l.s4 1966171168
    %v1530 = vunpack.c.0.s8 %v1529
    %v1531 = vlaneseq
    %v1532 = vshrl.u32 %v1531, 7
    %v1533 = vsub.s32 %v1530, %v1532
    %v1534 = vrot.slane %v1526, %v1533
    %v1536 = vunpack.c.l.s4 1966171168
    %v1537 = vunpack.c.0.s8 %v1536
    %v1538 = vlaneseq
    %v1539 = vshrl.u32 %v1538, 7
    %v1540 = vsub.s32 %v1537, %v1539
    %v1541 = vrot.slane %v1527, %v1540
    %v1542 = vcombine.low %v1534, %v1541
    %v1543 = vcombine.low %v1158, %v1159
    %v1544 = vcombine.low %v1160, %v1161
    %v1545 = vcombine.low %v1162, %v1163
    %v1546 = vcombine.low %v1164, %v1165
    %v1548 = vunpack.c.l.s4 1966171168
    %v1549 = vunpack.c.0.s8 %v1548
    %v1550 = vlaneseq
    %v1551 = vshrl.u32 %v1550, 7
    %v1552 = vsub.s32 %v1549, %v1551
    %v1553 = vrot.slane %v1543, %v1552
    %v1555 = vunpack.c.l.s4 1966171168
    %v1556 = vunpack.c.0.s8 %v1555
    %v1557 = vlaneseq
    %v1558 = vshrl.u32 %v1557, 7
    %v1559 = vsub.s32 %v1556, %v1558
    %v1560 = vrot.slane %v1544, %v1559
    %v1562 = vunpack.c.l.s4 1966171168
    %v1563 = vunpack.c.0.s8 %v1562
    %v1564 = vlaneseq
    %v1565 = vshrl.u32 %v1564, 7
    %v1566 = vsub.s32 %v1563, %v1565
    %v1567 = vrot.slane %v1545, %v1566
    %v1569 = vunpack.c.l.s4 1966171168
    %v1570 = vunpack.c.0.s8 %v1569
    %v1571 = vlaneseq
    %v1572 = vshrl.u32 %v1571, 7
    %v1573 = vsub.s32 %v1570, %v1572
    %v1574 = vrot.slane %v1546, %v1573
    %v1575 = vcombine.low %v1553, %v1560
    %v1576 = vcombine.low %v1567, %v1574
    %v1578 = vunpack.c.l.s4 1966171168
    %v1579 = vunpack.c.0.s8 %v1578
    %v1580 = vlaneseq
    %v1581 = vshrl.u32 %v1580, 7
    %v1582 = vsub.s32 %v1579, %v1581
    %v1583 = vrot.slane %v1575, %v1582
    %v1585 = vunpack.c.l.s4 1966171168
    %v1586 = vunpack.c.0.s8 %v1585
    %v1587 = vlaneseq
    %v1588 = vshrl.u32 %v1587, 7
    %v1589 = vsub.s32 %v1586, %v1588
    %v1590 = vrot.slane %v1576, %v1589
    %v1591 = vcombine.low %v1583, %v1590
    %v1592 = vcombine.low %v1166, %v1167
    %v1593 = vcombine.low %v1168, %v1169
    %v1594 = vcombine.low %v1170, %v1171
    %v1595 = vcombine.low %v1172, %v1173
    %v1597 = vunpack.c.l.s4 1966171168
    %v1598 = vunpack.c.0.s8 %v1597
    %v1599 = vlaneseq
    %v1600 = vshrl.u32 %v1599, 7
    %v1601 = vsub.s32 %v1598, %v1600
    %v1602 = vrot.slane %v1592, %v1601
    %v1604 = vunpack.c.l.s4 1966171168
    %v1605 = vunpack.c.0.s8 %v1604
    %v1606 = vlaneseq
    %v1607 = vshrl.u32 %v1606, 7
    %v1608 = vsub.s32 %v1605, %v1607
    %v1609 = vrot.slane %v1593, %v1608
    %v1611 = vunpack.c.l.s4 1966171168
    %v1612 = vunpack.c.0.s8 %v1611
    %v1613 = vlaneseq
    %v1614 = vshrl.u32 %v1613, 7
    %v1615 = vsub.s32 %v1612, %v1614
    %v1616 = vrot.slane %v1594, %v1615
    %v1618 = vunpack.c.l.s4 1966171168
    %v1619 = vunpack.c.0.s8 %v1618
    %v1620 = vlaneseq
    %v1621 = vshrl.u32 %v1620, 7
    %v1622 = vsub.s32 %v1619, %v1621
    %v1623 = vrot.slane %v1595, %v1622
    %v1624 = vcombine.low %v1602, %v1609
    %v1625 = vcombine.low %v1616, %v1623
    %v1627 = vunpack.c.l.s4 1966171168
    %v1628 = vunpack.c.0.s8 %v1627
    %v1629 = vlaneseq
    %v1630 = vshrl.u32 %v1629, 7
    %v1631 = vsub.s32 %v1628, %v1630
    %v1632 = vrot.slane %v1624, %v1631
    %v1634 = vunpack.c.l.s4 1966171168
    %v1635 = vunpack.c.0.s8 %v1634
    %v1636 = vlaneseq
    %v1637 = vshrl.u32 %v1636, 7
    %v1638 = vsub.s32 %v1635, %v1637
    %v1639 = vrot.slane %v1625, %v1638
    %v1640 = vcombine.low %v1632, %v1639
    %v1641 = vcombine.low %v1174, %v1175
    %v1642 = vcombine.low %v1176, %v1177
    %v1643 = vcombine.low %v1178, %v1179
    %v1644 = vcombine.low %v1180, %v1181
    %v1646 = vunpack.c.l.s4 1966171168
    %v1647 = vunpack.c.0.s8 %v1646
    %v1648 = vlaneseq
    %v1649 = vshrl.u32 %v1648, 7
    %v1650 = vsub.s32 %v1647, %v1649
    %v1651 = vrot.slane %v1641, %v1650
    %v1653 = vunpack.c.l.s4 1966171168
    %v1654 = vunpack.c.0.s8 %v1653
    %v1655 = vlaneseq
    %v1656 = vshrl.u32 %v1655, 7
    %v1657 = vsub.s32 %v1654, %v1656
    %v1658 = vrot.slane %v1642, %v1657
    %v1660 = vunpack.c.l.s4 1966171168
    %v1661 = vunpack.c.0.s8 %v1660
    %v1662 = vlaneseq
    %v1663 = vshrl.u32 %v1662, 7
    %v1664 = vsub.s32 %v1661, %v1663
    %v1665 = vrot.slane %v1643, %v1664
    %v1667 = vunpack.c.l.s4 1966171168
    %v1668 = vunpack.c.0.s8 %v1667
    %v1669 = vlaneseq
    %v1670 = vshrl.u32 %v1669, 7
    %v1671 = vsub.s32 %v1668, %v1670
    %v1672 = vrot.slane %v1644, %v1671
    %v1673 = vcombine.low %v1651, %v1658
    %v1674 = vcombine.low %v1665, %v1672
    %v1676 = vunpack.c.l.s4 1966171168
    %v1677 = vunpack.c.0.s8 %v1676
    %v1678 = vlaneseq
    %v1679 = vshrl.u32 %v1678, 7
    %v1680 = vsub.s32 %v1677, %v1679
    %v1681 = vrot.slane %v1673, %v1680
    %v1683 = vunpack.c.l.s4 1966171168
    %v1684 = vunpack.c.0.s8 %v1683
    %v1685 = vlaneseq
    %v1686 = vshrl.u32 %v1685, 7
    %v1687 = vsub.s32 %v1684, %v1686
    %v1688 = vrot.slane %v1674, %v1687
    %v1689 = vcombine.low %v1681, %v1688
    %v1690 = vcombine.low %v1182, %v1183
    %v1691 = vcombine.low %v1184, %v1185
    %v1692 = vcombine.low %v1186, %v1187
    %v1693 = vcombine.low %v1188, %v1189
    %v1695 = vunpack.c.l.s4 1966171168
    %v1696 = vunpack.c.0.s8 %v1695
    %v1697 = vlaneseq
    %v1698 = vshrl.u32 %v1697, 7
    %v1699 = vsub.s32 %v1696, %v1698
    %v1700 = vrot.slane %v1690, %v1699
    %v1702 = vunpack.c.l.s4 1966171168
    %v1703 = vunpack.c.0.s8 %v1702
    %v1704 = vlaneseq
    %v1705 = vshrl.u32 %v1704, 7
    %v1706 = vsub.s32 %v1703, %v1705
    %v1707 = vrot.slane %v1691, %v1706
    %v1709 = vunpack.c.l.s4 1966171168
    %v1710 = vunpack.c.0.s8 %v1709
    %v1711 = vlaneseq
    %v1712 = vshrl.u32 %v1711, 7
    %v1713 = vsub.s32 %v1710, %v1712
    %v1714 = vrot.slane %v1692, %v1713
    %v1716 = vunpack.c.l.s4 1966171168
    %v1717 = vunpack.c.0.s8 %v1716
    %v1718 = vlaneseq
    %v1719 = vshrl.u32 %v1718, 7
    %v1720 = vsub.s32 %v1717, %v1719
    %v1721 = vrot.slane %v1693, %v1720
    %v1722 = vcombine.low %v1700, %v1707
    %v1723 = vcombine.low %v1714, %v1721
    %v1725 = vunpack.c.l.s4 1966171168
    %v1726 = vunpack.c.0.s8 %v1725
    %v1727 = vlaneseq
    %v1728 = vshrl.u32 %v1727, 7
    %v1729 = vsub.s32 %v1726, %v1728
    %v1730 = vrot.slane %v1722, %v1729
    %v1732 = vunpack.c.l.s4 1966171168
    %v1733 = vunpack.c.0.s8 %v1732
    %v1734 = vlaneseq
    %v1735 = vshrl.u32 %v1734, 7
    %v1736 = vsub.s32 %v1733, %v1735
    %v1737 = vrot.slane %v1723, %v1736
    %v1738 = vcombine.low %v1730, %v1737
    %v1739 = vcombine.low %v1190, %v1191
    %v1741 = vunpack.c.l.s4 1966171168
    %v1742 = vunpack.c.0.s8 %v1741
    %v1743 = vlaneseq
    %v1744 = vshrl.u32 %v1743, 7
    %v1745 = vsub.s32 %v1742, %v1744
    %v1746 = vrot.slane %v1739, %v1745
    %v1748 = vunpack.c.l.s4 1966171168
    %v1749 = vunpack.c.0.s8 %v1748
    %v1750 = vlaneseq
    %v1751 = vshrl.u32 %v1750, 7
    %v1752 = vsub.s32 %v1749, %v1751
    %v1753 = vrot.slane %v1746, %v1752
    %vm1760 = vcmask 31744
    %v1761 = vsel %vm1760, %v1240, 0
    %v1763 = vsel %vm1760, %v1289, 0
    %v1765 = vsel %vm1760, %v1338, 0
    %v1767 = vsel %vm1760, %v1387, 0
    %v1769 = vsel %vm1760, %v1436, 0
    %v1771 = vsel %vm1760, %v1451, 0
    %vm1773 = vcmask 1043456
    %v1775 = vsel %vm1773, %v167, 0
    %1777 = vmatprep.subr.mxu0 0.0
    %1778 = vmatpush1.msra.mxu0 %v1775
    %1779 = vmatprep.subr.mxu0 0.0
    %1780 = vmatpush1.msra.mxu0 0.0
    %1781 = vmatprep.subr.mxu0 0.0
    %1782 = vmatpush1.msra.mxu0 0.0
    %1783 = vmatprep.subr.mxu0 0.0
    %1784 = vmatpush1.msra.mxu0 0.0
    %1785 = vmatprep.subr.mxu0 0.0
    %1786 = vmatpush1.msra.mxu0 0.0
    %1787 = vmatprep.subr.mxu0 0.0
    %1788 = vmatpush1.msra.mxu0 0.0
    %1789 = vmatprep.subr.mxu0 0.0
    %1790 = vmatpush1.msra.mxu0 0.0
    %1791 = vmatprep.subr.mxu0 0.0
    %1792 = vmatpush1.msra.mxu0 0.0
    %1793 = vmatprep.subr.mxu0 0.0
    %1794 = vmatpush1.msra.mxu0 0.0
    %1795 = vmatprep.subr.mxu0 0.0
    %1796 = vmatpush1.msra.mxu0 0.0
    %1797 = vmatprep.subr.mxu0 0.0
    %1798 = vmatpush1.msra.mxu0 0.0
    %1799 = vmatprep.subr.mxu0 0.0
    %1800 = vmatpush1.msra.mxu0 0.0
    %1801 = vmatprep.subr.mxu0 0.0
    %1802 = vmatpush1.msra.mxu0 0.0
    %1803 = vmatprep.subr.mxu0 0.0
    %1804 = vmatpush1.msra.mxu0 0.0
    %1805 = vmatprep.subr.mxu0 0.0
    %1806 = vmatpush1.msra.mxu0 0.0
    %1807 = vmatprep.subr.mxu0 0.0
    %1808 = vmatpush1.msra.mxu0 0.0
    %1809 = vmatprep.subr.mxu0 0.0
    %1810 = vmatpush1.msra.mxu0 0.0
    %1811 = vmatprep.subr.mxu0 0.0
    %1812 = vmatpush1.msra.mxu0 0.0
    %1813 = vmatprep.subr.mxu0 0.0
    %1814 = vmatpush1.msra.mxu0 0.0
    %1815 = vmatprep.subr.mxu0 0.0
    %1816 = vmatpush1.msra.mxu0 0.0
    %1817 = vmatprep.subr.mxu0 0.0
    %1818 = vmatpush1.msra.mxu0 0.0
    %1819 = vmatprep.subr.mxu0 0.0
    %1820 = vmatpush1.msra.mxu0 0.0
    %1821 = vmatprep.subr.mxu0 0.0
    %1822 = vmatpush1.msra.mxu0 0.0
    %1823 = vmatprep.subr.mxu0 0.0
    %1824 = vmatpush1.msra.mxu0 0.0
    %1825 = vmatprep.subr.mxu0 0.0
    %1826 = vmatpush1.msra.mxu0 0.0
    %1827 = vmatprep.subr.mxu0 0.0
    %1828 = vmatpush1.msra.mxu0 0.0
    %1829 = vmatprep.subr.mxu0 0.0
    %1830 = vmatpush1.msra.mxu0 0.0
    %1831 = vmatprep.subr.mxu0 0.0
    %1832 = vmatpush1.msra.mxu0 0.0
    %1833 = vmatprep.subr.mxu0 0.0
    %1834 = vmatpush1.msra.mxu0 0.0
    %1835 = vmatprep.subr.mxu0 0.0
    %1836 = vmatpush1.msra.mxu0 0.0
    %1837 = vmatprep.subr.mxu0 0.0
    %1838 = vmatpush1.msra.mxu0 0.0
    %1839 = vmatprep.subr.mxu0 0.0
    %1840 = vmatpush1.msra.mxu0 0.0
    %1841 = vmatprep.mubr.f32.mxu0 0.0
    %1842 = vmatmul.mubr.f32.gmra.mrb[0].mxu0 %v1761
    %v1843 = vpop.f32.mrb[0].mxu0
    %v1844 = vadd.f32 %v1542, %v1843
    %v1845 = vpop.f32.mrb[0].mxu0
    %1846 = vmatprep.mubr.f32.mxu0 0.0
    %1847 = vmatmul.mubr.f32.gmra.mrb[0].mxu0 %v1763
    %v1848 = vpop.f32.mrb[0].mxu0
    %v1849 = vadd.f32 %v1591, %v1848
    %v1850 = vpop.f32.mrb[0].mxu0
    %1851 = vmatprep.mubr.f32.mxu0 0.0
    %1852 = vmatmul.mubr.f32.gmra.mrb[0].mxu0 %v1765
    %v1853 = vpop.f32.mrb[0].mxu0
    %v1854 = vadd.f32 %v1640, %v1853
    %v1855 = vpop.f32.mrb[0].mxu0
    %1856 = vmatprep.mubr.f32.mxu0 0.0
    %1857 = vmatmul.mubr.f32.gmra.mrb[0].mxu0 %v1767
    %v1858 = vpop.f32.mrb[0].mxu0
    %v1859 = vadd.f32 %v1689, %v1858
    %v1860 = vpop.f32.mrb[0].mxu0
    %1861 = vmatprep.mubr.f32.mxu0 0.0
    %1862 = vmatmul.mubr.f32.gmra.mrb[0].mxu0 %v1769
    %v1863 = vpop.f32.mrb[0].mxu0
    %v1864 = vadd.f32 %v1738, %v1863
    %v1865 = vpop.f32.mrb[0].mxu0
    %1866 = vmatprep.mubr.f32.mxu0 0.0
    %1867 = vmatmul.mubr.f32.gmra.mrb[0].mxu0 %v1771
    %v1868 = vpop.f32.mrb[0].mxu0
    %v1869 = vadd.f32 %v1753, %v1868
    %v1870 = vpop.f32.mrb[0].mxu0
    %1871 = vdwg.mxu0
    %v1872 = vlaneseq
    %v1873 = vshrl.u32 %v1872, 7
    %v1874 = vsub.s32 0, %v1873
    %v1875 = vrot.slane %v169, %v1874
    %v1876 = vadd.f32 %v1844, %v1875
    %v1877 = vadd.f32 %v1849, %v1875
    %v1878 = vadd.f32 %v1854, %v1875
    %v1879 = vadd.f32 %v1859, %v1875
    %v1880 = vadd.f32 %v1864, %v1875
    %v1881 = vadd.f32 %v1869, %v1875
    %v1888 = vcombine.high %v1876, %v1876
    %v1890 = vunpack.c.l.s4 1966171168
    %v1891 = vunpack.c.0.s8 %v1890
    %v1892 = vlaneseq
    %v1893 = vshrl.u32 %v1892, 7
    %v1894 = vsub.s32 %v1891, %v1893
    %v1895 = vrot.slane %v1876, %v1894
    %v1897 = vunpack.c.l.s4 1966171168
    %v1898 = vunpack.c.0.s8 %v1897
    %v1899 = vlaneseq
    %v1900 = vshrl.u32 %v1899, 7
    %v1901 = vsub.s32 %v1898, %v1900
    %v1902 = vrot.slane %v1888, %v1901
    %v1903 = vcombine.high %v1895, %v1895
    %v1904 = vcombine.high %v1902, %v1902
    %v1906 = vunpack.c.l.s4 1966171168
    %v1907 = vunpack.c.0.s8 %v1906
    %v1908 = vlaneseq
    %v1909 = vshrl.u32 %v1908, 7
    %v1910 = vsub.s32 %v1907, %v1909
    %v1911 = vrot.slane %v1895, %v1910
    %v1913 = vunpack.c.l.s4 1966171168
    %v1914 = vunpack.c.0.s8 %v1913
    %v1915 = vlaneseq
    %v1916 = vshrl.u32 %v1915, 7
    %v1917 = vsub.s32 %v1914, %v1916
    %v1918 = vrot.slane %v1902, %v1917
    %v1920 = vunpack.c.l.s4 1966171168
    %v1921 = vunpack.c.0.s8 %v1920
    %v1922 = vlaneseq
    %v1923 = vshrl.u32 %v1922, 7
    %v1924 = vsub.s32 %v1921, %v1923
    %v1925 = vrot.slane %v1903, %v1924
    %v1927 = vunpack.c.l.s4 1966171168
    %v1928 = vunpack.c.0.s8 %v1927
    %v1929 = vlaneseq
    %v1930 = vshrl.u32 %v1929, 7
    %v1931 = vsub.s32 %v1928, %v1930
    %v1932 = vrot.slane %v1904, %v1931
    %v1933 = vcombine.high %v1911, %v1911
    %v1934 = vcombine.high %v1918, %v1918
    %v1935 = vcombine.high %v1925, %v1925
    %v1936 = vcombine.high %v1932, %v1932
    %v1937 = vcombine.high %v1877, %v1877
    %v1939 = vunpack.c.l.s4 1966171168
    %v1940 = vunpack.c.0.s8 %v1939
    %v1941 = vlaneseq
    %v1942 = vshrl.u32 %v1941, 7
    %v1943 = vsub.s32 %v1940, %v1942
    %v1944 = vrot.slane %v1877, %v1943
    %v1946 = vunpack.c.l.s4 1966171168
    %v1947 = vunpack.c.0.s8 %v1946
    %v1948 = vlaneseq
    %v1949 = vshrl.u32 %v1948, 7
    %v1950 = vsub.s32 %v1947, %v1949
    %v1951 = vrot.slane %v1937, %v1950
    %v1952 = vcombine.high %v1944, %v1944
    %v1953 = vcombine.high %v1951, %v1951
    %v1955 = vunpack.c.l.s4 1966171168
    %v1956 = vunpack.c.0.s8 %v1955
    %v1957 = vlaneseq
    %v1958 = vshrl.u32 %v1957, 7
    %v1959 = vsub.s32 %v1956, %v1958
    %v1960 = vrot.slane %v1944, %v1959
    %v1962 = vunpack.c.l.s4 1966171168
    %v1963 = vunpack.c.0.s8 %v1962
    %v1964 = vlaneseq
    %v1965 = vshrl.u32 %v1964, 7
    %v1966 = vsub.s32 %v1963, %v1965
    %v1967 = vrot.slane %v1951, %v1966
    %v1969 = vunpack.c.l.s4 1966171168
    %v1970 = vunpack.c.0.s8 %v1969
    %v1971 = vlaneseq
    %v1972 = vshrl.u32 %v1971, 7
    %v1973 = vsub.s32 %v1970, %v1972
    %v1974 = vrot.slane %v1952, %v1973
    %v1976 = vunpack.c.l.s4 1966171168
    %v1977 = vunpack.c.0.s8 %v1976
    %v1978 = vlaneseq
    %v1979 = vshrl.u32 %v1978, 7
    %v1980 = vsub.s32 %v1977, %v1979
    %v1981 = vrot.slane %v1953, %v1980
    %v1982 = vcombine.high %v1960, %v1960
    %v1983 = vcombine.high %v1967, %v1967
    %v1984 = vcombine.high %v1974, %v1974
    %v1985 = vcombine.high %v1981, %v1981
    %v1986 = vcombine.high %v1878, %v1878
    %v1988 = vunpack.c.l.s4 1966171168
    %v1989 = vunpack.c.0.s8 %v1988
    %v1990 = vlaneseq
    %v1991 = vshrl.u32 %v1990, 7
    %v1992 = vsub.s32 %v1989, %v1991
    %v1993 = vrot.slane %v1878, %v1992
    %v1995 = vunpack.c.l.s4 1966171168
    %v1996 = vunpack.c.0.s8 %v1995
    %v1997 = vlaneseq
    %v1998 = vshrl.u32 %v1997, 7
    %v1999 = vsub.s32 %v1996, %v1998
    %v2000 = vrot.slane %v1986, %v1999
    %v2001 = vcombine.high %v1993, %v1993
    %v2002 = vcombine.high %v2000, %v2000
    %v2004 = vunpack.c.l.s4 1966171168
    %v2005 = vunpack.c.0.s8 %v2004
    %v2006 = vlaneseq
    %v2007 = vshrl.u32 %v2006, 7
    %v2008 = vsub.s32 %v2005, %v2007
    %v2009 = vrot.slane %v1993, %v2008
    %v2011 = vunpack.c.l.s4 1966171168
    %v2012 = vunpack.c.0.s8 %v2011
    %v2013 = vlaneseq
    %v2014 = vshrl.u32 %v2013, 7
    %v2015 = vsub.s32 %v2012, %v2014
    %v2016 = vrot.slane %v2000, %v2015
    %v2018 = vunpack.c.l.s4 1966171168
    %v2019 = vunpack.c.0.s8 %v2018
    %v2020 = vlaneseq
    %v2021 = vshrl.u32 %v2020, 7
    %v2022 = vsub.s32 %v2019, %v2021
    %v2023 = vrot.slane %v2001, %v2022
    %v2025 = vunpack.c.l.s4 1966171168
    %v2026 = vunpack.c.0.s8 %v2025
    %v2027 = vlaneseq
    %v2028 = vshrl.u32 %v2027, 7
    %v2029 = vsub.s32 %v2026, %v2028
    %v2030 = vrot.slane %v2002, %v2029
    %v2031 = vcombine.high %v2009, %v2009
    %v2032 = vcombine.high %v2016, %v2016
    %v2033 = vcombine.high %v2023, %v2023
    %v2034 = vcombine.high %v2030, %v2030
    %v2035 = vcombine.high %v1879, %v1879
    %v2037 = vunpack.c.l.s4 1966171168
    %v2038 = vunpack.c.0.s8 %v2037
    %v2039 = vlaneseq
    %v2040 = vshrl.u32 %v2039, 7
    %v2041 = vsub.s32 %v2038, %v2040
    %v2042 = vrot.slane %v1879, %v2041
    %v2044 = vunpack.c.l.s4 1966171168
    %v2045 = vunpack.c.0.s8 %v2044
    %v2046 = vlaneseq
    %v2047 = vshrl.u32 %v2046, 7
    %v2048 = vsub.s32 %v2045, %v2047
    %v2049 = vrot.slane %v2035, %v2048
    %v2050 = vcombine.high %v2042, %v2042
    %v2051 = vcombine.high %v2049, %v2049
    %v2053 = vunpack.c.l.s4 1966171168
    %v2054 = vunpack.c.0.s8 %v2053
    %v2055 = vlaneseq
    %v2056 = vshrl.u32 %v2055, 7
    %v2057 = vsub.s32 %v2054, %v2056
    %v2058 = vrot.slane %v2042, %v2057
    %v2060 = vunpack.c.l.s4 1966171168
    %v2061 = vunpack.c.0.s8 %v2060
    %v2062 = vlaneseq
    %v2063 = vshrl.u32 %v2062, 7
    %v2064 = vsub.s32 %v2061, %v2063
    %v2065 = vrot.slane %v2049, %v2064
    %v2067 = vunpack.c.l.s4 1966171168
    %v2068 = vunpack.c.0.s8 %v2067
    %v2069 = vlaneseq
    %v2070 = vshrl.u32 %v2069, 7
    %v2071 = vsub.s32 %v2068, %v2070
    %v2072 = vrot.slane %v2050, %v2071
    %v2074 = vunpack.c.l.s4 1966171168
    %v2075 = vunpack.c.0.s8 %v2074
    %v2076 = vlaneseq
    %v2077 = vshrl.u32 %v2076, 7
    %v2078 = vsub.s32 %v2075, %v2077
    %v2079 = vrot.slane %v2051, %v2078
    %v2080 = vcombine.high %v2058, %v2058
    %v2081 = vcombine.high %v2065, %v2065
    %v2082 = vcombine.high %v2072, %v2072
    %v2083 = vcombine.high %v2079, %v2079
    %v2084 = vcombine.high %v1880, %v1880
    %v2086 = vunpack.c.l.s4 1966171168
    %v2087 = vunpack.c.0.s8 %v2086
    %v2088 = vlaneseq
    %v2089 = vshrl.u32 %v2088, 7
    %v2090 = vsub.s32 %v2087, %v2089
    %v2091 = vrot.slane %v1880, %v2090
    %v2093 = vunpack.c.l.s4 1966171168
    %v2094 = vunpack.c.0.s8 %v2093
    %v2095 = vlaneseq
    %v2096 = vshrl.u32 %v2095, 7
    %v2097 = vsub.s32 %v2094, %v2096
    %v2098 = vrot.slane %v2084, %v2097
    %v2099 = vcombine.high %v2091, %v2091
    %v2100 = vcombine.high %v2098, %v2098
    %v2102 = vunpack.c.l.s4 1966171168
    %v2103 = vunpack.c.0.s8 %v2102
    %v2104 = vlaneseq
    %v2105 = vshrl.u32 %v2104, 7
    %v2106 = vsub.s32 %v2103, %v2105
    %v2107 = vrot.slane %v2091, %v2106
    %v2109 = vunpack.c.l.s4 1966171168
    %v2110 = vunpack.c.0.s8 %v2109
    %v2111 = vlaneseq
    %v2112 = vshrl.u32 %v2111, 7
    %v2113 = vsub.s32 %v2110, %v2112
    %v2114 = vrot.slane %v2098, %v2113
    %v2116 = vunpack.c.l.s4 1966171168
    %v2117 = vunpack.c.0.s8 %v2116
    %v2118 = vlaneseq
    %v2119 = vshrl.u32 %v2118, 7
    %v2120 = vsub.s32 %v2117, %v2119
    %v2121 = vrot.slane %v2099, %v2120
    %v2123 = vunpack.c.l.s4 1966171168
    %v2124 = vunpack.c.0.s8 %v2123
    %v2125 = vlaneseq
    %v2126 = vshrl.u32 %v2125, 7
    %v2127 = vsub.s32 %v2124, %v2126
    %v2128 = vrot.slane %v2100, %v2127
    %v2129 = vcombine.high %v2107, %v2107
    %v2130 = vcombine.high %v2114, %v2114
    %v2131 = vcombine.high %v2121, %v2121
    %v2132 = vcombine.high %v2128, %v2128
    %v2134 = vunpack.c.l.s4 1966171168
    %v2135 = vunpack.c.0.s8 %v2134
    %v2136 = vlaneseq
    %v2137 = vshrl.u32 %v2136, 7
    %v2138 = vsub.s32 %v2135, %v2137
    %v2139 = vrot.slane %v1881, %v2138
    %v2140 = vcombine.high %v2139, %v2139
    %v2142 = vunpack.c.l.s4 1966171168
    %v2143 = vunpack.c.0.s8 %v2142
    %v2144 = vlaneseq
    %v2145 = vshrl.u32 %v2144, 7
    %v2146 = vsub.s32 %v2143, %v2145
    %v2147 = vrot.slane %v2139, %v2146
    %v2149 = vunpack.c.l.s4 1966171168
    %v2150 = vunpack.c.0.s8 %v2149
    %v2151 = vlaneseq
    %v2152 = vshrl.u32 %v2151, 7
    %v2153 = vsub.s32 %v2150, %v2152
    %v2154 = vrot.slane %v2140, %v2153
    %v2197 = vxor.u32 %v1911, 2147483648
    %v2198 = vxor.u32 %v1936, 2147483648
    %v2199 = vxor.u32 %v1983, 2147483648
    %v2200 = vxor.u32 %v2030, 2147483648
    %v2201 = vxor.u32 %v2065, 2147483648
    %v2202 = vxor.u32 %v2131, 2147483648
    %v2203 = vmul.f32 %v2197, 1.442695
    %v2204 = vpow.pop %v2203
    %v2205 = vmul.f32 %v2198, 1.442695
    %v2206 = vpow.pop %v2205
    %v2207 = vmul.f32 %v2199, 1.442695
    %v2208 = vpow.pop %v2207
    %v2209 = vmul.f32 %v2200, 1.442695
    %v2210 = vpow.pop %v2209
    %v2211 = vmul.f32 %v2201, 1.442695
    %v2212 = vpow.pop %v2211
    %v2213 = vmul.f32 %v2202, 1.442695
    %v2214 = vpow.pop %v2213
    %v2215 = vadd.f32 %v2204, 1.0
    %v2216 = vadd.f32 %v2206, 1.0
    %v2217 = vadd.f32 %v2208, 1.0
    %v2218 = vadd.f32 %v2210, 1.0
    %v2219 = vadd.f32 %v2212, 1.0
    %v2220 = vadd.f32 %v2214, 1.0
    %v2221 = vrcp.pop %v2215
    %v2222 = vmul.f32 1.0, %v2221
    %v2223 = vrcp.pop %v2216
    %v2224 = vmul.f32 1.0, %v2223
    %v2225 = vrcp.pop %v2217
    %v2226 = vmul.f32 1.0, %v2225
    %v2227 = vrcp.pop %v2218
    %v2228 = vmul.f32 1.0, %v2227
    %v2229 = vrcp.pop %v2219
    %v2230 = vmul.f32 1.0, %v2229
    %v2231 = vrcp.pop %v2220
    %v2232 = vmul.f32 1.0, %v2231
    %v2233 = vtanh.pop %v1911
    %v2234 = vtanh.pop %v1936
    %v2235 = vtanh.pop %v1983
    %v2236 = vtanh.pop %v2030
    %v2237 = vtanh.pop %v2065
    %v2238 = vtanh.pop %v2131
    %v2239 = vmul.f32 %v2222, 0.0
    %v2240 = vmul.f32 %v2224, 0.0
    %v2241 = vmul.f32 %v2226, 0.0
    %v2242 = vmul.f32 %v2228, 0.0
    %v2243 = vmul.f32 %v2230, 0.0
    %v2244 = vmul.f32 %v2232, 0.0
    %2251 = vrot.lane.b32.xlu0 %v2233, 64
    %v2252 = vpop.permute.xlu0 %2251
    %2253 = vrot.lane.b32.xlu0 %v2234, 64
    %v2254 = vpop.permute.xlu0 %2253
    %2255 = vrot.lane.b32.xlu0 %v2235, 64
    %v2256 = vpop.permute.xlu0 %2255
    %2257 = vrot.lane.b32.xlu0 %v2236, 64
    %v2258 = vpop.permute.xlu0 %2257
    %2259 = vrot.lane.b32.xlu0 %v2237, 64
    %v2260 = vpop.permute.xlu0 %2259
    %2261 = vrot.lane.b32.xlu0 %v2238, 64
    %v2262 = vpop.permute.xlu0 %2261
    %v2269 = vmul.f32 %v2222, %v2252
    %v2270 = vmul.f32 %v2224, %v2254
    %v2271 = vmul.f32 %v2226, %v2256
    %v2272 = vmul.f32 %v2228, %v2258
    %v2273 = vmul.f32 %v2230, %v2260
    %v2274 = vmul.f32 %v2232, %v2262
    %2281 = vrot.lane.b32.xlu0 %v2269, 32
    %v2282 = vpop.permute.xlu0 %2281
    %2283 = vrot.lane.b32.xlu0 %v2270, 32
    %v2284 = vpop.permute.xlu0 %2283
    %2285 = vrot.lane.b32.xlu0 %v2271, 32
    %v2286 = vpop.permute.xlu0 %2285
    %2287 = vrot.lane.b32.xlu0 %v2272, 32
    %v2288 = vpop.permute.xlu0 %2287
    %2289 = vrot.lane.b32.xlu0 %v2273, 32
    %v2290 = vpop.permute.xlu0 %2289
    %2291 = vrot.lane.b32.xlu0 %v2274, 32
    %v2292 = vpop.permute.xlu0 %2291
    %v2299 = vadd.f32 %v2239, %v2282
    %v2300 = vadd.f32 %v2240, %v2284
    %v2301 = vadd.f32 %v2241, %v2286
    %v2302 = vadd.f32 %v2242, %v2288
    %v2303 = vadd.f32 %v2243, %v2290
    %v2304 = vadd.f32 %v2244, %v2292
    %v2305 = vtanh.pop %v2299
    %v2306 = vtanh.pop %v2300
    %v2307 = vtanh.pop %v2301
    %v2308 = vtanh.pop %v2302
    %v2309 = vtanh.pop %v2303
    %v2310 = vtanh.pop %v2304
    %2317 = vrot.lane.b32.xlu0 %v2305, 64
    %v2318 = vpop.permute.xlu0 %2317
    %2319 = vrot.lane.b32.xlu0 %v2306, 64
    %v2320 = vpop.permute.xlu0 %2319
    %2321 = vrot.lane.b32.xlu0 %v2307, 64
    %v2322 = vpop.permute.xlu0 %2321
    %2323 = vrot.lane.b32.xlu0 %v2308, 64
    %v2324 = vpop.permute.xlu0 %2323
    %2325 = vrot.lane.b32.xlu0 %v2309, 64
    %v2326 = vpop.permute.xlu0 %2325
    %2327 = vrot.lane.b32.xlu0 %v2310, 64
    %v2328 = vpop.permute.xlu0 %2327
    %v2335 = vmul.f32 %v2222, %v2318
    %v2336 = vmul.f32 %v2224, %v2320
    %v2337 = vmul.f32 %v2226, %v2322
    %v2338 = vmul.f32 %v2228, %v2324
    %v2339 = vmul.f32 %v2230, %v2326
    %v2340 = vmul.f32 %v2232, %v2328
    %v2347 = vcombine.low %v2335, %v2336
    %v2348 = vcombine.low %v2337, %v2338
    %v2349 = vcombine.low %v2339, %v2340
    %v2351 = vunpack.c.l.s4 1966171168
    %v2352 = vunpack.c.0.s8 %v2351
    %v2353 = vlaneseq
    %v2354 = vshrl.u32 %v2353, 7
    %v2355 = vsub.s32 %v2352, %v2354
    %v2356 = vrot.slane %v2347, %v2355
    %v2358 = vunpack.c.l.s4 1966171168
    %v2359 = vunpack.c.0.s8 %v2358
    %v2360 = vlaneseq
    %v2361 = vshrl.u32 %v2360, 7
    %v2362 = vsub.s32 %v2359, %v2361
    %v2363 = vrot.slane %v2348, %v2362
    %v2365 = vunpack.c.l.s4 1966171168
    %v2366 = vunpack.c.0.s8 %v2365
    %v2367 = vlaneseq
    %v2368 = vshrl.u32 %v2367, 7
    %v2369 = vsub.s32 %v2366, %v2368
    %v2370 = vrot.slane %v2349, %v2369
    %v2371 = vcombine.low %v2356, %v2363
    %v2373 = vunpack.c.l.s4 1966171168
    %v2374 = vunpack.c.0.s8 %v2373
    %v2375 = vlaneseq
    %v2376 = vshrl.u32 %v2375, 7
    %v2377 = vsub.s32 %v2374, %v2376
    %v2378 = vrot.slane %v2371, %v2377
    %v2380 = vunpack.c.l.s4 1966171168
    %v2381 = vunpack.c.0.s8 %v2380
    %v2382 = vlaneseq
    %v2383 = vshrl.u32 %v2382, 7
    %v2384 = vsub.s32 %v2381, %v2383
    %v2385 = vrot.slane %v2370, %v2384
    %v2386 = vcombine.low %v2378, %v2385
    %2387 = vrot.lane.b32.xlu0 %v2386, 32
    %v2388 = vpop.permute.xlu0 %2387
    %vm2389 = vcmask 261120
    %v2390 = vsel %vm2389, %v2388, 0
    %2392 = vmatprep.subr.mxu0 0.0
    %2393 = vmatpush1.msra.mxu0 %v163
    %2394 = vmatprep.subr.mxu0 0.0
    %2395 = vmatpush1.msra.mxu0 %v164
    %2396 = vmatprep.subr.mxu0 0.0
    %2397 = vmatpush1.msra.mxu0 %v165
    %2398 = vmatprep.subr.mxu0 0.0
    %2399 = vmatpush1.msra.mxu0 %v166
    %2400 = vmatprep.subr.mxu0 0.0
    %2401 = vmatpush1.msra.mxu0 0.0
    %2402 = vmatprep.subr.mxu0 0.0
    %2403 = vmatpush1.msra.mxu0 0.0
    %2404 = vmatprep.subr.mxu0 0.0
    %2405 = vmatpush1.msra.mxu0 0.0
    %2406 = vmatprep.subr.mxu0 0.0
    %2407 = vmatpush1.msra.mxu0 0.0
    %2408 = vmatprep.subr.mxu0 0.0
    %2409 = vmatpush1.msra.mxu0 0.0
    %2410 = vmatprep.subr.mxu0 0.0
    %2411 = vmatpush1.msra.mxu0 0.0
    %2412 = vmatprep.subr.mxu0 0.0
    %2413 = vmatpush1.msra.mxu0 0.0
    %2414 = vmatprep.subr.mxu0 0.0
    %2415 = vmatpush1.msra.mxu0 0.0
    %2416 = vmatprep.subr.mxu0 0.0
    %2417 = vmatpush1.msra.mxu0 0.0
    %2418 = vmatprep.subr.mxu0 0.0
    %2419 = vmatpush1.msra.mxu0 0.0
    %2420 = vmatprep.subr.mxu0 0.0
    %2421 = vmatpush1.msra.mxu0 0.0
    %2422 = vmatprep.subr.mxu0 0.0
    %2423 = vmatpush1.msra.mxu0 0.0
    %2424 = vmatprep.subr.mxu0 0.0
    %2425 = vmatpush1.msra.mxu0 0.0
    %2426 = vmatprep.subr.mxu0 0.0
    %2427 = vmatpush1.msra.mxu0 0.0
    %2428 = vmatprep.subr.mxu0 0.0
    %2429 = vmatpush1.msra.mxu0 0.0
    %2430 = vmatprep.subr.mxu0 0.0
    %2431 = vmatpush1.msra.mxu0 0.0
    %2432 = vmatprep.subr.mxu0 0.0
    %2433 = vmatpush1.msra.mxu0 0.0
    %2434 = vmatprep.subr.mxu0 0.0
    %2435 = vmatpush1.msra.mxu0 0.0
    %2436 = vmatprep.subr.mxu0 0.0
    %2437 = vmatpush1.msra.mxu0 0.0
    %2438 = vmatprep.subr.mxu0 0.0
    %2439 = vmatpush1.msra.mxu0 0.0
    %2440 = vmatprep.subr.mxu0 0.0
    %2441 = vmatpush1.msra.mxu0 0.0
    %2442 = vmatprep.subr.mxu0 0.0
    %2443 = vmatpush1.msra.mxu0 0.0
    %2444 = vmatprep.subr.mxu0 0.0
    %2445 = vmatpush1.msra.mxu0 0.0
    %2446 = vmatprep.subr.mxu0 0.0
    %2447 = vmatpush1.msra.mxu0 0.0
    %2448 = vmatprep.subr.mxu0 0.0
    %2449 = vmatpush1.msra.mxu0 0.0
    %2450 = vmatprep.subr.mxu0 0.0
    %2451 = vmatpush1.msra.mxu0 0.0
    %2452 = vmatprep.subr.mxu0 0.0
    %2453 = vmatpush1.msra.mxu0 0.0
    %2454 = vmatprep.subr.mxu0 0.0
    %2455 = vmatpush1.msra.mxu0 0.0
    %2456 = vmatprep.mubr.f32.mxu0 0.0
    %2457 = vmatmul.mubr.f32.gmra.mrb[0].mxu0 %v2390
    %v2458 = vpop.f32.mrb[0].mxu0
    %v2459 = vadd.f32 0.0, %v2458
    %v2460 = vpop.f32.mrb[0].mxu0
    %2461 = vdwg.mxu0
    %v2463 = vcombine.high %v2459, %v2459
    %v2465 = vunpack.c.l.s4 1966171168
    %v2466 = vunpack.c.0.s8 %v2465
    %v2467 = vlaneseq
    %v2468 = vshrl.u32 %v2467, 7
    %v2469 = vsub.s32 %v2466, %v2468
    %v2470 = vrot.slane %v2459, %v2469
    %v2472 = vunpack.c.l.s4 1966171168
    %v2473 = vunpack.c.0.s8 %v2472
    %v2474 = vlaneseq
    %v2475 = vshrl.u32 %v2474, 7
    %v2476 = vsub.s32 %v2473, %v2475
    %v2477 = vrot.slane %v2463, %v2476
    %v2478 = vcombine.high %v2470, %v2470
    %v2479 = vcombine.high %v2477, %v2477
    %v2481 = vunpack.c.l.s4 1966171168
    %v2482 = vunpack.c.0.s8 %v2481
    %v2483 = vlaneseq
    %v2484 = vshrl.u32 %v2483, 7
    %v2485 = vsub.s32 %v2482, %v2484
    %v2486 = vrot.slane %v2470, %v2485
    %v2488 = vunpack.c.l.s4 1966171168
    %v2489 = vunpack.c.0.s8 %v2488
    %v2490 = vlaneseq
    %v2491 = vshrl.u32 %v2490, 7
    %v2492 = vsub.s32 %v2489, %v2491
    %v2493 = vrot.slane %v2477, %v2492
    %v2495 = vunpack.c.l.s4 1966171168
    %v2496 = vunpack.c.0.s8 %v2495
    %v2497 = vlaneseq
    %v2498 = vshrl.u32 %v2497, 7
    %v2499 = vsub.s32 %v2496, %v2498
    %v2500 = vrot.slane %v2478, %v2499
    %v2502 = vunpack.c.l.s4 1966171168
    %v2503 = vunpack.c.0.s8 %v2502
    %v2504 = vlaneseq
    %v2505 = vshrl.u32 %v2504, 7
    %v2506 = vsub.s32 %v2503, %v2505
    %v2507 = vrot.slane %v2479, %v2506
    %v2508 = vcombine.high %v2486, %v2486
    %v2509 = vcombine.high %v2500, %v2500
    %v2516 = vadd.f32 %v1925, %v2486
    %v2517 = vadd.f32 %v1960, %v2500
    %v2518 = vadd.f32 %v1985, %v2508
    %v2519 = vadd.f32 %v2032, %v2509
    %v2520 = vadd.f32 %v2079, %v2493
    %v2521 = vadd.f32 %v2114, %v2507
    %v2522 = vxor.u32 %v2516, 2147483648
    %v2523 = vxor.u32 %v2517, 2147483648
    %v2524 = vxor.u32 %v2518, 2147483648
    %v2525 = vxor.u32 %v2519, 2147483648
    %v2526 = vxor.u32 %v2520, 2147483648
    %v2527 = vxor.u32 %v2521, 2147483648
    %v2528 = vmul.f32 %v2522, 1.442695
    %v2529 = vpow.pop %v2528
    %v2530 = vmul.f32 %v2523, 1.442695
    %v2531 = vpow.pop %v2530
    %v2532 = vmul.f32 %v2524, 1.442695
    %v2533 = vpow.pop %v2532
    %v2534 = vmul.f32 %v2525, 1.442695
    %v2535 = vpow.pop %v2534
    %v2536 = vmul.f32 %v2526, 1.442695
    %v2537 = vpow.pop %v2536
    %v2538 = vmul.f32 %v2527, 1.442695
    %v2539 = vpow.pop %v2538
    %v2540 = vadd.f32 %v2529, 1.0
    %v2541 = vadd.f32 %v2531, 1.0
    %v2542 = vadd.f32 %v2533, 1.0
    %v2543 = vadd.f32 %v2535, 1.0
    %v2544 = vadd.f32 %v2537, 1.0
    %v2545 = vadd.f32 %v2539, 1.0
    %v2546 = vrcp.pop %v2540
    %v2547 = vmul.f32 1.0, %v2546
    %v2548 = vrcp.pop %v2541
    %v2549 = vmul.f32 1.0, %v2548
    %v2550 = vrcp.pop %v2542
    %v2551 = vmul.f32 1.0, %v2550
    %v2552 = vrcp.pop %v2543
    %v2553 = vmul.f32 1.0, %v2552
    %v2554 = vrcp.pop %v2544
    %v2555 = vmul.f32 1.0, %v2554
    %v2556 = vrcp.pop %v2545
    %v2557 = vmul.f32 1.0, %v2556
    %v2558 = vtanh.pop %v2516
    %v2559 = vtanh.pop %v2517
    %v2560 = vtanh.pop %v2518
    %v2561 = vtanh.pop %v2519
    %v2562 = vtanh.pop %v2520
    %v2563 = vtanh.pop %v2521
    %v2564 = vmul.f32 %v2547, %v2299
    %v2565 = vmul.f32 %v2549, %v2300
    %v2566 = vmul.f32 %v2551, %v2301
    %v2567 = vmul.f32 %v2553, %v2302
    %v2568 = vmul.f32 %v2555, %v2303
    %v2569 = vmul.f32 %v2557, %v2304
    %2576 = vrot.lane.b32.xlu0 %v2558, 64
    %v2577 = vpop.permute.xlu0 %2576
    %2578 = vrot.lane.b32.xlu0 %v2559, 64
    %v2579 = vpop.permute.xlu0 %2578
    %2580 = vrot.lane.b32.xlu0 %v2560, 64
    %v2581 = vpop.permute.xlu0 %2580
    %2582 = vrot.lane.b32.xlu0 %v2561, 64
    %v2583 = vpop.permute.xlu0 %2582
    %2584 = vrot.lane.b32.xlu0 %v2562, 64
    %v2585 = vpop.permute.xlu0 %2584
    %2586 = vrot.lane.b32.xlu0 %v2563, 64
    %v2587 = vpop.permute.xlu0 %2586
    %v2594 = vmul.f32 %v2547, %v2577
    %v2595 = vmul.f32 %v2549, %v2579
    %v2596 = vmul.f32 %v2551, %v2581
    %v2597 = vmul.f32 %v2553, %v2583
    %v2598 = vmul.f32 %v2555, %v2585
    %v2599 = vmul.f32 %v2557, %v2587
    %2606 = vrot.lane.b32.xlu0 %v2594, 32
    %v2607 = vpop.permute.xlu0 %2606
    %2608 = vrot.lane.b32.xlu0 %v2595, 32
    %v2609 = vpop.permute.xlu0 %2608
    %2610 = vrot.lane.b32.xlu0 %v2596, 32
    %v2611 = vpop.permute.xlu0 %2610
    %2612 = vrot.lane.b32.xlu0 %v2597, 32
    %v2613 = vpop.permute.xlu0 %2612
    %2614 = vrot.lane.b32.xlu0 %v2598, 32
    %v2615 = vpop.permute.xlu0 %2614
    %2616 = vrot.lane.b32.xlu0 %v2599, 32
    %v2617 = vpop.permute.xlu0 %2616
    %v2624 = vadd.f32 %v2564, %v2607
    %v2625 = vadd.f32 %v2565, %v2609
    %v2626 = vadd.f32 %v2566, %v2611
    %v2627 = vadd.f32 %v2567, %v2613
    %v2628 = vadd.f32 %v2568, %v2615
    %v2629 = vadd.f32 %v2569, %v2617
    %v2630 = vtanh.pop %v2624
    %v2631 = vtanh.pop %v2625
    %v2632 = vtanh.pop %v2626
    %v2633 = vtanh.pop %v2627
    %v2634 = vtanh.pop %v2628
    %v2635 = vtanh.pop %v2629
    %2642 = vrot.lane.b32.xlu0 %v2630, 64
    %v2643 = vpop.permute.xlu0 %2642
    %2644 = vrot.lane.b32.xlu0 %v2631, 64
    %v2645 = vpop.permute.xlu0 %2644
    %2646 = vrot.lane.b32.xlu0 %v2632, 64
    %v2647 = vpop.permute.xlu0 %2646
    %2648 = vrot.lane.b32.xlu0 %v2633, 64
    %v2649 = vpop.permute.xlu0 %2648
    %2650 = vrot.lane.b32.xlu0 %v2634, 64
    %v2651 = vpop.permute.xlu0 %2650
    %2652 = vrot.lane.b32.xlu0 %v2635, 64
    %v2653 = vpop.permute.xlu0 %2652
    %v2660 = vmul.f32 %v2547, %v2643
    %v2661 = vmul.f32 %v2549, %v2645
    %v2662 = vmul.f32 %v2551, %v2647
    %v2663 = vmul.f32 %v2553, %v2649
    %v2664 = vmul.f32 %v2555, %v2651
    %v2665 = vmul.f32 %v2557, %v2653
    %v2672 = vcombine.low %v2660, %v2661
    %v2673 = vcombine.low %v2662, %v2663
    %v2674 = vcombine.low %v2664, %v2665
    %v2676 = vunpack.c.l.s4 1966171168
    %v2677 = vunpack.c.0.s8 %v2676
    %v2678 = vlaneseq
    %v2679 = vshrl.u32 %v2678, 7
    %v2680 = vsub.s32 %v2677, %v2679
    %v2681 = vrot.slane %v2672, %v2680
    %v2683 = vunpack.c.l.s4 1966171168
    %v2684 = vunpack.c.0.s8 %v2683
    %v2685 = vlaneseq
    %v2686 = vshrl.u32 %v2685, 7
    %v2687 = vsub.s32 %v2684, %v2686
    %v2688 = vrot.slane %v2673, %v2687
    %v2690 = vunpack.c.l.s4 1966171168
    %v2691 = vunpack.c.0.s8 %v2690
    %v2692 = vlaneseq
    %v2693 = vshrl.u32 %v2692, 7
    %v2694 = vsub.s32 %v2691, %v2693
    %v2695 = vrot.slane %v2674, %v2694
    %v2696 = vcombine.low %v2681, %v2688
    %v2698 = vunpack.c.l.s4 1966171168
    %v2699 = vunpack.c.0.s8 %v2698
    %v2700 = vlaneseq
    %v2701 = vshrl.u32 %v2700, 7
    %v2702 = vsub.s32 %v2699, %v2701
    %v2703 = vrot.slane %v2696, %v2702
    %v2705 = vunpack.c.l.s4 1966171168
    %v2706 = vunpack.c.0.s8 %v2705
    %v2707 = vlaneseq
    %v2708 = vshrl.u32 %v2707, 7
    %v2709 = vsub.s32 %v2706, %v2708
    %v2710 = vrot.slane %v2695, %v2709
    %v2711 = vcombine.low %v2703, %v2710
    %2712 = vrot.lane.b32.xlu0 %v2711, 32
    %v2713 = vpop.permute.xlu0 %2712
    %v2714 = vsel %vm2389, %v2713, 0
    %2716 = vmatprep.subr.mxu0 0.0
    %2717 = vmatpush1.msra.mxu0 %v163
    %2718 = vmatprep.subr.mxu0 0.0
    %2719 = vmatpush1.msra.mxu0 %v164
    %2720 = vmatprep.subr.mxu0 0.0
    %2721 = vmatpush1.msra.mxu0 %v165
    %2722 = vmatprep.subr.mxu0 0.0
    %2723 = vmatpush1.msra.mxu0 %v166
    %2724 = vmatprep.subr.mxu0 0.0
    %2725 = vmatpush1.msra.mxu0 0.0
    %2726 = vmatprep.subr.mxu0 0.0
    %2727 = vmatpush1.msra.mxu0 0.0
    %2728 = vmatprep.subr.mxu0 0.0
    %2729 = vmatpush1.msra.mxu0 0.0
    %2730 = vmatprep.subr.mxu0 0.0
    %2731 = vmatpush1.msra.mxu0 0.0
    %2732 = vmatprep.subr.mxu0 0.0
    %2733 = vmatpush1.msra.mxu0 0.0
    %2734 = vmatprep.subr.mxu0 0.0
    %2735 = vmatpush1.msra.mxu0 0.0
    %2736 = vmatprep.subr.mxu0 0.0
    %2737 = vmatpush1.msra.mxu0 0.0
    %2738 = vmatprep.subr.mxu0 0.0
    %2739 = vmatpush1.msra.mxu0 0.0
    %2740 = vmatprep.subr.mxu0 0.0
    %2741 = vmatpush1.msra.mxu0 0.0
    %2742 = vmatprep.subr.mxu0 0.0
    %2743 = vmatpush1.msra.mxu0 0.0
    %2744 = vmatprep.subr.mxu0 0.0
    %2745 = vmatpush1.msra.mxu0 0.0
    %2746 = vmatprep.subr.mxu0 0.0
    %2747 = vmatpush1.msra.mxu0 0.0
    %2748 = vmatprep.subr.mxu0 0.0
    %2749 = vmatpush1.msra.mxu0 0.0
    %2750 = vmatprep.subr.mxu0 0.0
    %2751 = vmatpush1.msra.mxu0 0.0
    %2752 = vmatprep.subr.mxu0 0.0
    %2753 = vmatpush1.msra.mxu0 0.0
    %2754 = vmatprep.subr.mxu0 0.0
    %2755 = vmatpush1.msra.mxu0 0.0
    %2756 = vmatprep.subr.mxu0 0.0
    %2757 = vmatpush1.msra.mxu0 0.0
    %2758 = vmatprep.subr.mxu0 0.0
    %2759 = vmatpush1.msra.mxu0 0.0
    %2760 = vmatprep.subr.mxu0 0.0
    %2761 = vmatpush1.msra.mxu0 0.0
    %2762 = vmatprep.subr.mxu0 0.0
    %2763 = vmatpush1.msra.mxu0 0.0
    %2764 = vmatprep.subr.mxu0 0.0
    %2765 = vmatpush1.msra.mxu0 0.0
    %2766 = vmatprep.subr.mxu0 0.0
    %2767 = vmatpush1.msra.mxu0 0.0
    %2768 = vmatprep.subr.mxu0 0.0
    %2769 = vmatpush1.msra.mxu0 0.0
    %2770 = vmatprep.subr.mxu0 0.0
    %2771 = vmatpush1.msra.mxu0 0.0
    %2772 = vmatprep.subr.mxu0 0.0
    %2773 = vmatpush1.msra.mxu0 0.0
    %2774 = vmatprep.subr.mxu0 0.0
    %2775 = vmatpush1.msra.mxu0 0.0
    %2776 = vmatprep.subr.mxu0 0.0
    %2777 = vmatpush1.msra.mxu0 0.0
    %2778 = vmatprep.subr.mxu0 0.0
    %2779 = vmatpush1.msra.mxu0 0.0
    %2780 = vmatprep.mubr.f32.mxu0 0.0
    %2781 = vmatmul.mubr.f32.gmra.mrb[0].mxu0 %v2714
    %v2782 = vpop.f32.mrb[0].mxu0
    %v2783 = vadd.f32 0.0, %v2782
    %v2784 = vpop.f32.mrb[0].mxu0
    %2785 = vdwg.mxu0
    %v2787 = vcombine.high %v2783, %v2783
    %v2789 = vunpack.c.l.s4 1966171168
    %v2790 = vunpack.c.0.s8 %v2789
    %v2791 = vlaneseq
    %v2792 = vshrl.u32 %v2791, 7
    %v2793 = vsub.s32 %v2790, %v2792
    %v2794 = vrot.slane %v2783, %v2793
    %v2796 = vunpack.c.l.s4 1966171168
    %v2797 = vunpack.c.0.s8 %v2796
    %v2798 = vlaneseq
    %v2799 = vshrl.u32 %v2798, 7
    %v2800 = vsub.s32 %v2797, %v2799
    %v2801 = vrot.slane %v2787, %v2800
    %v2802 = vcombine.high %v2794, %v2794
    %v2803 = vcombine.high %v2801, %v2801
    %v2805 = vunpack.c.l.s4 1966171168
    %v2806 = vunpack.c.0.s8 %v2805
    %v2807 = vlaneseq
    %v2808 = vshrl.u32 %v2807, 7
    %v2809 = vsub.s32 %v2806, %v2808
    %v2810 = vrot.slane %v2794, %v2809
    %v2812 = vunpack.c.l.s4 1966171168
    %v2813 = vunpack.c.0.s8 %v2812
    %v2814 = vlaneseq
    %v2815 = vshrl.u32 %v2814, 7
    %v2816 = vsub.s32 %v2813, %v2815
    %v2817 = vrot.slane %v2801, %v2816
    %v2819 = vunpack.c.l.s4 1966171168
    %v2820 = vunpack.c.0.s8 %v2819
    %v2821 = vlaneseq
    %v2822 = vshrl.u32 %v2821, 7
    %v2823 = vsub.s32 %v2820, %v2822
    %v2824 = vrot.slane %v2802, %v2823
    %v2826 = vunpack.c.l.s4 1966171168
    %v2827 = vunpack.c.0.s8 %v2826
    %v2828 = vlaneseq
    %v2829 = vshrl.u32 %v2828, 7
    %v2830 = vsub.s32 %v2827, %v2829
    %v2831 = vrot.slane %v2803, %v2830
    %v2832 = vcombine.high %v2810, %v2810
    %v2833 = vcombine.high %v2824, %v2824
    %v2840 = vadd.f32 %v1933, %v2810
    %v2841 = vadd.f32 %v1974, %v2824
    %v2842 = vadd.f32 %v2009, %v2832
    %v2843 = vadd.f32 %v2034, %v2833
    %v2844 = vadd.f32 %v2081, %v2817
    %v2845 = vadd.f32 %v2128, %v2831
    %v2846 = vxor.u32 %v2840, 2147483648
    %v2847 = vxor.u32 %v2841, 2147483648
    %v2848 = vxor.u32 %v2842, 2147483648
    %v2849 = vxor.u32 %v2843, 2147483648
    %v2850 = vxor.u32 %v2844, 2147483648
    %v2851 = vxor.u32 %v2845, 2147483648
    %v2852 = vmul.f32 %v2846, 1.442695
    %v2853 = vpow.pop %v2852
    %v2854 = vmul.f32 %v2847, 1.442695
    %v2855 = vpow.pop %v2854
    %v2856 = vmul.f32 %v2848, 1.442695
    %v2857 = vpow.pop %v2856
    %v2858 = vmul.f32 %v2849, 1.442695
    %v2859 = vpow.pop %v2858
    %v2860 = vmul.f32 %v2850, 1.442695
    %v2861 = vpow.pop %v2860
    %v2862 = vmul.f32 %v2851, 1.442695
    %v2863 = vpow.pop %v2862
    %v2864 = vadd.f32 %v2853, 1.0
    %v2865 = vadd.f32 %v2855, 1.0
    %v2866 = vadd.f32 %v2857, 1.0
    %v2867 = vadd.f32 %v2859, 1.0
    %v2868 = vadd.f32 %v2861, 1.0
    %v2869 = vadd.f32 %v2863, 1.0
    %v2870 = vrcp.pop %v2864
    %v2871 = vmul.f32 1.0, %v2870
    %v2872 = vrcp.pop %v2865
    %v2873 = vmul.f32 1.0, %v2872
    %v2874 = vrcp.pop %v2866
    %v2875 = vmul.f32 1.0, %v2874
    %v2876 = vrcp.pop %v2867
    %v2877 = vmul.f32 1.0, %v2876
    %v2878 = vrcp.pop %v2868
    %v2879 = vmul.f32 1.0, %v2878
    %v2880 = vrcp.pop %v2869
    %v2881 = vmul.f32 1.0, %v2880
    %v2882 = vtanh.pop %v2840
    %v2883 = vtanh.pop %v2841
    %v2884 = vtanh.pop %v2842
    %v2885 = vtanh.pop %v2843
    %v2886 = vtanh.pop %v2844
    %v2887 = vtanh.pop %v2845
    %v2888 = vmul.f32 %v2871, %v2624
    %v2889 = vmul.f32 %v2873, %v2625
    %v2890 = vmul.f32 %v2875, %v2626
    %v2891 = vmul.f32 %v2877, %v2627
    %v2892 = vmul.f32 %v2879, %v2628
    %v2893 = vmul.f32 %v2881, %v2629
    %2900 = vrot.lane.b32.xlu0 %v2882, 64
    %v2901 = vpop.permute.xlu0 %2900
    %2902 = vrot.lane.b32.xlu0 %v2883, 64
    %v2903 = vpop.permute.xlu0 %2902
    %2904 = vrot.lane.b32.xlu0 %v2884, 64
    %v2905 = vpop.permute.xlu0 %2904
    %2906 = vrot.lane.b32.xlu0 %v2885, 64
    %v2907 = vpop.permute.xlu0 %2906
    %2908 = vrot.lane.b32.xlu0 %v2886, 64
    %v2909 = vpop.permute.xlu0 %2908
    %2910 = vrot.lane.b32.xlu0 %v2887, 64
    %v2911 = vpop.permute.xlu0 %2910
    %v2918 = vmul.f32 %v2871, %v2901
    %v2919 = vmul.f32 %v2873, %v2903
    %v2920 = vmul.f32 %v2875, %v2905
    %v2921 = vmul.f32 %v2877, %v2907
    %v2922 = vmul.f32 %v2879, %v2909
    %v2923 = vmul.f32 %v2881, %v2911
    %2930 = vrot.lane.b32.xlu0 %v2918, 32
    %v2931 = vpop.permute.xlu0 %2930
    %2932 = vrot.lane.b32.xlu0 %v2919, 32
    %v2933 = vpop.permute.xlu0 %2932
    %2934 = vrot.lane.b32.xlu0 %v2920, 32
    %v2935 = vpop.permute.xlu0 %2934
    %2936 = vrot.lane.b32.xlu0 %v2921, 32
    %v2937 = vpop.permute.xlu0 %2936
    %2938 = vrot.lane.b32.xlu0 %v2922, 32
    %v2939 = vpop.permute.xlu0 %2938
    %2940 = vrot.lane.b32.xlu0 %v2923, 32
    %v2941 = vpop.permute.xlu0 %2940
    %v2948 = vadd.f32 %v2888, %v2931
    %v2949 = vadd.f32 %v2889, %v2933
    %v2950 = vadd.f32 %v2890, %v2935
    %v2951 = vadd.f32 %v2891, %v2937
    %v2952 = vadd.f32 %v2892, %v2939
    %v2953 = vadd.f32 %v2893, %v2941
    %v2954 = vtanh.pop %v2948
    %v2955 = vtanh.pop %v2949
    %v2956 = vtanh.pop %v2950
    %v2957 = vtanh.pop %v2951
    %v2958 = vtanh.pop %v2952
    %v2959 = vtanh.pop %v2953
    %2966 = vrot.lane.b32.xlu0 %v2954, 64
    %v2967 = vpop.permute.xlu0 %2966
    %2968 = vrot.lane.b32.xlu0 %v2955, 64
    %v2969 = vpop.permute.xlu0 %2968
    %2970 = vrot.lane.b32.xlu0 %v2956, 64
    %v2971 = vpop.permute.xlu0 %2970
    %2972 = vrot.lane.b32.xlu0 %v2957, 64
    %v2973 = vpop.permute.xlu0 %2972
    %2974 = vrot.lane.b32.xlu0 %v2958, 64
    %v2975 = vpop.permute.xlu0 %2974
    %2976 = vrot.lane.b32.xlu0 %v2959, 64
    %v2977 = vpop.permute.xlu0 %2976
    %v2984 = vmul.f32 %v2871, %v2967
    %v2985 = vmul.f32 %v2873, %v2969
    %v2986 = vmul.f32 %v2875, %v2971
    %v2987 = vmul.f32 %v2877, %v2973
    %v2988 = vmul.f32 %v2879, %v2975
    %v2989 = vmul.f32 %v2881, %v2977
    %v2996 = vcombine.low %v2984, %v2985
    %v2997 = vcombine.low %v2986, %v2987
    %v2998 = vcombine.low %v2988, %v2989
    %v3000 = vunpack.c.l.s4 1966171168
    %v3001 = vunpack.c.0.s8 %v3000
    %v3002 = vlaneseq
    %v3003 = vshrl.u32 %v3002, 7
    %v3004 = vsub.s32 %v3001, %v3003
    %v3005 = vrot.slane %v2996, %v3004
    %v3007 = vunpack.c.l.s4 1966171168
    %v3008 = vunpack.c.0.s8 %v3007
    %v3009 = vlaneseq
    %v3010 = vshrl.u32 %v3009, 7
    %v3011 = vsub.s32 %v3008, %v3010
    %v3012 = vrot.slane %v2997, %v3011
    %v3014 = vunpack.c.l.s4 1966171168
    %v3015 = vunpack.c.0.s8 %v3014
    %v3016 = vlaneseq
    %v3017 = vshrl.u32 %v3016, 7
    %v3018 = vsub.s32 %v3015, %v3017
    %v3019 = vrot.slane %v2998, %v3018
    %v3020 = vcombine.low %v3005, %v3012
    %v3022 = vunpack.c.l.s4 1966171168
    %v3023 = vunpack.c.0.s8 %v3022
    %v3024 = vlaneseq
    %v3025 = vshrl.u32 %v3024, 7
    %v3026 = vsub.s32 %v3023, %v3025
    %v3027 = vrot.slane %v3020, %v3026
    %v3029 = vunpack.c.l.s4 1966171168
    %v3030 = vunpack.c.0.s8 %v3029
    %v3031 = vlaneseq
    %v3032 = vshrl.u32 %v3031, 7
    %v3033 = vsub.s32 %v3030, %v3032
    %v3034 = vrot.slane %v3019, %v3033
    %v3035 = vcombine.low %v3027, %v3034
    %3036 = vrot.lane.b32.xlu0 %v3035, 32
    %v3037 = vpop.permute.xlu0 %3036
    %v3038 = vsel %vm2389, %v3037, 0
    %3040 = vmatprep.subr.mxu0 0.0
    %3041 = vmatpush1.msra.mxu0 %v163
    %3042 = vmatprep.subr.mxu0 0.0
    %3043 = vmatpush1.msra.mxu0 %v164
    %3044 = vmatprep.subr.mxu0 0.0
    %3045 = vmatpush1.msra.mxu0 %v165
    %3046 = vmatprep.subr.mxu0 0.0
    %3047 = vmatpush1.msra.mxu0 %v166
    %3048 = vmatprep.subr.mxu0 0.0
    %3049 = vmatpush1.msra.mxu0 0.0
    %3050 = vmatprep.subr.mxu0 0.0
    %3051 = vmatpush1.msra.mxu0 0.0
    %3052 = vmatprep.subr.mxu0 0.0
    %3053 = vmatpush1.msra.mxu0 0.0
    %3054 = vmatprep.subr.mxu0 0.0
    %3055 = vmatpush1.msra.mxu0 0.0
    %3056 = vmatprep.subr.mxu0 0.0
    %3057 = vmatpush1.msra.mxu0 0.0
    %3058 = vmatprep.subr.mxu0 0.0
    %3059 = vmatpush1.msra.mxu0 0.0
    %3060 = vmatprep.subr.mxu0 0.0
    %3061 = vmatpush1.msra.mxu0 0.0
    %3062 = vmatprep.subr.mxu0 0.0
    %3063 = vmatpush1.msra.mxu0 0.0
    %3064 = vmatprep.subr.mxu0 0.0
    %3065 = vmatpush1.msra.mxu0 0.0
    %3066 = vmatprep.subr.mxu0 0.0
    %3067 = vmatpush1.msra.mxu0 0.0
    %3068 = vmatprep.subr.mxu0 0.0
    %3069 = vmatpush1.msra.mxu0 0.0
    %3070 = vmatprep.subr.mxu0 0.0
    %3071 = vmatpush1.msra.mxu0 0.0
    %3072 = vmatprep.subr.mxu0 0.0
    %3073 = vmatpush1.msra.mxu0 0.0
    %3074 = vmatprep.subr.mxu0 0.0
    %3075 = vmatpush1.msra.mxu0 0.0
    %3076 = vmatprep.subr.mxu0 0.0
    %3077 = vmatpush1.msra.mxu0 0.0
    %3078 = vmatprep.subr.mxu0 0.0
    %3079 = vmatpush1.msra.mxu0 0.0
    %3080 = vmatprep.subr.mxu0 0.0
    %3081 = vmatpush1.msra.mxu0 0.0
    %3082 = vmatprep.subr.mxu0 0.0
    %3083 = vmatpush1.msra.mxu0 0.0
    %3084 = vmatprep.subr.mxu0 0.0
    %3085 = vmatpush1.msra.mxu0 0.0
    %3086 = vmatprep.subr.mxu0 0.0
    %3087 = vmatpush1.msra.mxu0 0.0
    %3088 = vmatprep.subr.mxu0 0.0
    %3089 = vmatpush1.msra.mxu0 0.0
    %3090 = vmatprep.subr.mxu0 0.0
    %3091 = vmatpush1.msra.mxu0 0.0
    %3092 = vmatprep.subr.mxu0 0.0
    %3093 = vmatpush1.msra.mxu0 0.0
    %3094 = vmatprep.subr.mxu0 0.0
    %3095 = vmatpush1.msra.mxu0 0.0
    %3096 = vmatprep.subr.mxu0 0.0
    %3097 = vmatpush1.msra.mxu0 0.0
    %3098 = vmatprep.subr.mxu0 0.0
    %3099 = vmatpush1.msra.mxu0 0.0
    %3100 = vmatprep.subr.mxu0 0.0
    %3101 = vmatpush1.msra.mxu0 0.0
    %3102 = vmatprep.subr.mxu0 0.0
    %3103 = vmatpush1.msra.mxu0 0.0
    %3104 = vmatprep.mubr.f32.mxu0 0.0
    %3105 = vmatmul.mubr.f32.gmra.mrb[0].mxu0 %v3038
    %v3106 = vpop.f32.mrb[0].mxu0
    %v3107 = vadd.f32 0.0, %v3106
    %v3108 = vpop.f32.mrb[0].mxu0
    %3109 = vdwg.mxu0
    %v3111 = vcombine.high %v3107, %v3107
    %v3113 = vunpack.c.l.s4 1966171168
    %v3114 = vunpack.c.0.s8 %v3113
    %v3115 = vlaneseq
    %v3116 = vshrl.u32 %v3115, 7
    %v3117 = vsub.s32 %v3114, %v3116
    %v3118 = vrot.slane %v3107, %v3117
    %v3120 = vunpack.c.l.s4 1966171168
    %v3121 = vunpack.c.0.s8 %v3120
    %v3122 = vlaneseq
    %v3123 = vshrl.u32 %v3122, 7
    %v3124 = vsub.s32 %v3121, %v3123
    %v3125 = vrot.slane %v3111, %v3124
    %v3126 = vcombine.high %v3118, %v3118
    %v3127 = vcombine.high %v3125, %v3125
    %v3129 = vunpack.c.l.s4 1966171168
    %v3130 = vunpack.c.0.s8 %v3129
    %v3131 = vlaneseq
    %v3132 = vshrl.u32 %v3131, 7
    %v3133 = vsub.s32 %v3130, %v3132
    %v3134 = vrot.slane %v3118, %v3133
    %v3136 = vunpack.c.l.s4 1966171168
    %v3137 = vunpack.c.0.s8 %v3136
    %v3138 = vlaneseq
    %v3139 = vshrl.u32 %v3138, 7
    %v3140 = vsub.s32 %v3137, %v3139
    %v3141 = vrot.slane %v3125, %v3140
    %v3143 = vunpack.c.l.s4 1966171168
    %v3144 = vunpack.c.0.s8 %v3143
    %v3145 = vlaneseq
    %v3146 = vshrl.u32 %v3145, 7
    %v3147 = vsub.s32 %v3144, %v3146
    %v3148 = vrot.slane %v3126, %v3147
    %v3150 = vunpack.c.l.s4 1966171168
    %v3151 = vunpack.c.0.s8 %v3150
    %v3152 = vlaneseq
    %v3153 = vshrl.u32 %v3152, 7
    %v3154 = vsub.s32 %v3151, %v3153
    %v3155 = vrot.slane %v3127, %v3154
    %v3156 = vcombine.high %v3134, %v3134
    %v3157 = vcombine.high %v3148, %v3148
    %v3164 = vadd.f32 %v1935, %v3134
    %v3165 = vadd.f32 %v1982, %v3148
    %v3166 = vadd.f32 %v2023, %v3156
    %v3167 = vadd.f32 %v2058, %v3157
    %v3168 = vadd.f32 %v2083, %v3141
    %v3169 = vadd.f32 %v2130, %v3155
    %v3170 = vxor.u32 %v3164, 2147483648
    %v3171 = vxor.u32 %v3165, 2147483648
    %v3172 = vxor.u32 %v3166, 2147483648
    %v3173 = vxor.u32 %v3167, 2147483648
    %v3174 = vxor.u32 %v3168, 2147483648
    %v3175 = vxor.u32 %v3169, 2147483648
    %v3176 = vmul.f32 %v3170, 1.442695
    %v3177 = vpow.pop %v3176
    %v3178 = vmul.f32 %v3171, 1.442695
    %v3179 = vpow.pop %v3178
    %v3180 = vmul.f32 %v3172, 1.442695
    %v3181 = vpow.pop %v3180
    %v3182 = vmul.f32 %v3173, 1.442695
    %v3183 = vpow.pop %v3182
    %v3184 = vmul.f32 %v3174, 1.442695
    %v3185 = vpow.pop %v3184
    %v3186 = vmul.f32 %v3175, 1.442695
    %v3187 = vpow.pop %v3186
    %v3188 = vadd.f32 %v3177, 1.0
    %v3189 = vadd.f32 %v3179, 1.0
    %v3190 = vadd.f32 %v3181, 1.0
    %v3191 = vadd.f32 %v3183, 1.0
    %v3192 = vadd.f32 %v3185, 1.0
    %v3193 = vadd.f32 %v3187, 1.0
    %v3194 = vrcp.pop %v3188
    %v3195 = vmul.f32 1.0, %v3194
    %v3196 = vrcp.pop %v3189
    %v3197 = vmul.f32 1.0, %v3196
    %v3198 = vrcp.pop %v3190
    %v3199 = vmul.f32 1.0, %v3198
    %v3200 = vrcp.pop %v3191
    %v3201 = vmul.f32 1.0, %v3200
    %v3202 = vrcp.pop %v3192
    %v3203 = vmul.f32 1.0, %v3202
    %v3204 = vrcp.pop %v3193
    %v3205 = vmul.f32 1.0, %v3204
    %v3206 = vtanh.pop %v3164
    %v3207 = vtanh.pop %v3165
    %v3208 = vtanh.pop %v3166
    %v3209 = vtanh.pop %v3167
    %v3210 = vtanh.pop %v3168
    %v3211 = vtanh.pop %v3169
    %v3212 = vmul.f32 %v3195, %v2948
    %v3213 = vmul.f32 %v3197, %v2949
    %v3214 = vmul.f32 %v3199, %v2950
    %v3215 = vmul.f32 %v3201, %v2951
    %v3216 = vmul.f32 %v3203, %v2952
    %v3217 = vmul.f32 %v3205, %v2953
    %3224 = vrot.lane.b32.xlu0 %v3206, 64
    %v3225 = vpop.permute.xlu0 %3224
    %3226 = vrot.lane.b32.xlu0 %v3207, 64
    %v3227 = vpop.permute.xlu0 %3226
    %3228 = vrot.lane.b32.xlu0 %v3208, 64
    %v3229 = vpop.permute.xlu0 %3228
    %3230 = vrot.lane.b32.xlu0 %v3209, 64
    %v3231 = vpop.permute.xlu0 %3230
    %3232 = vrot.lane.b32.xlu0 %v3210, 64
    %v3233 = vpop.permute.xlu0 %3232
    %3234 = vrot.lane.b32.xlu0 %v3211, 64
    %v3235 = vpop.permute.xlu0 %3234
    %v3242 = vmul.f32 %v3195, %v3225
    %v3243 = vmul.f32 %v3197, %v3227
    %v3244 = vmul.f32 %v3199, %v3229
    %v3245 = vmul.f32 %v3201, %v3231
    %v3246 = vmul.f32 %v3203, %v3233
    %v3247 = vmul.f32 %v3205, %v3235
    %3254 = vrot.lane.b32.xlu0 %v3242, 32
    %v3255 = vpop.permute.xlu0 %3254
    %3256 = vrot.lane.b32.xlu0 %v3243, 32
    %v3257 = vpop.permute.xlu0 %3256
    %3258 = vrot.lane.b32.xlu0 %v3244, 32
    %v3259 = vpop.permute.xlu0 %3258
    %3260 = vrot.lane.b32.xlu0 %v3245, 32
    %v3261 = vpop.permute.xlu0 %3260
    %3262 = vrot.lane.b32.xlu0 %v3246, 32
    %v3263 = vpop.permute.xlu0 %3262
    %3264 = vrot.lane.b32.xlu0 %v3247, 32
    %v3265 = vpop.permute.xlu0 %3264
    %v3272 = vadd.f32 %v3212, %v3255
    %v3273 = vadd.f32 %v3213, %v3257
    %v3274 = vadd.f32 %v3214, %v3259
    %v3275 = vadd.f32 %v3215, %v3261
    %v3276 = vadd.f32 %v3216, %v3263
    %v3277 = vadd.f32 %v3217, %v3265
    %v3278 = vtanh.pop %v3272
    %v3279 = vtanh.pop %v3273
    %v3280 = vtanh.pop %v3274
    %v3281 = vtanh.pop %v3275
    %v3282 = vtanh.pop %v3276
    %v3283 = vtanh.pop %v3277
    %3290 = vrot.lane.b32.xlu0 %v3278, 64
    %v3291 = vpop.permute.xlu0 %3290
    %3292 = vrot.lane.b32.xlu0 %v3279, 64
    %v3293 = vpop.permute.xlu0 %3292
    %3294 = vrot.lane.b32.xlu0 %v3280, 64
    %v3295 = vpop.permute.xlu0 %3294
    %3296 = vrot.lane.b32.xlu0 %v3281, 64
    %v3297 = vpop.permute.xlu0 %3296
    %3298 = vrot.lane.b32.xlu0 %v3282, 64
    %v3299 = vpop.permute.xlu0 %3298
    %3300 = vrot.lane.b32.xlu0 %v3283, 64
    %v3301 = vpop.permute.xlu0 %3300
    %v3308 = vmul.f32 %v3195, %v3291
    %v3309 = vmul.f32 %v3197, %v3293
    %v3310 = vmul.f32 %v3199, %v3295
    %v3311 = vmul.f32 %v3201, %v3297
    %v3312 = vmul.f32 %v3203, %v3299
    %v3313 = vmul.f32 %v3205, %v3301
    %v3320 = vcombine.low %v3308, %v3309
    %v3321 = vcombine.low %v3310, %v3311
    %v3322 = vcombine.low %v3312, %v3313
    %v3324 = vunpack.c.l.s4 1966171168
    %v3325 = vunpack.c.0.s8 %v3324
    %v3326 = vlaneseq
    %v3327 = vshrl.u32 %v3326, 7
    %v3328 = vsub.s32 %v3325, %v3327
    %v3329 = vrot.slane %v3320, %v3328
    %v3331 = vunpack.c.l.s4 1966171168
    %v3332 = vunpack.c.0.s8 %v3331
    %v3333 = vlaneseq
    %v3334 = vshrl.u32 %v3333, 7
    %v3335 = vsub.s32 %v3332, %v3334
    %v3336 = vrot.slane %v3321, %v3335
    %v3338 = vunpack.c.l.s4 1966171168
    %v3339 = vunpack.c.0.s8 %v3338
    %v3340 = vlaneseq
    %v3341 = vshrl.u32 %v3340, 7
    %v3342 = vsub.s32 %v3339, %v3341
    %v3343 = vrot.slane %v3322, %v3342
    %v3344 = vcombine.low %v3329, %v3336
    %v3346 = vunpack.c.l.s4 1966171168
    %v3347 = vunpack.c.0.s8 %v3346
    %v3348 = vlaneseq
    %v3349 = vshrl.u32 %v3348, 7
    %v3350 = vsub.s32 %v3347, %v3349
    %v3351 = vrot.slane %v3344, %v3350
    %v3353 = vunpack.c.l.s4 1966171168
    %v3354 = vunpack.c.0.s8 %v3353
    %v3355 = vlaneseq
    %v3356 = vshrl.u32 %v3355, 7
    %v3357 = vsub.s32 %v3354, %v3356
    %v3358 = vrot.slane %v3343, %v3357
    %v3359 = vcombine.low %v3351, %v3358
    %3360 = vrot.lane.b32.xlu0 %v3359, 32
    %v3361 = vpop.permute.xlu0 %3360
    %v3362 = vsel %vm2389, %v3361, 0
    %3364 = vmatprep.subr.mxu0 0.0
    %3365 = vmatpush1.msra.mxu0 %v163
    %3366 = vmatprep.subr.mxu0 0.0
    %3367 = vmatpush1.msra.mxu0 %v164
    %3368 = vmatprep.subr.mxu0 0.0
    %3369 = vmatpush1.msra.mxu0 %v165
    %3370 = vmatprep.subr.mxu0 0.0
    %3371 = vmatpush1.msra.mxu0 %v166
    %3372 = vmatprep.subr.mxu0 0.0
    %3373 = vmatpush1.msra.mxu0 0.0
    %3374 = vmatprep.subr.mxu0 0.0
    %3375 = vmatpush1.msra.mxu0 0.0
    %3376 = vmatprep.subr.mxu0 0.0
    %3377 = vmatpush1.msra.mxu0 0.0
    %3378 = vmatprep.subr.mxu0 0.0
    %3379 = vmatpush1.msra.mxu0 0.0
    %3380 = vmatprep.subr.mxu0 0.0
    %3381 = vmatpush1.msra.mxu0 0.0
    %3382 = vmatprep.subr.mxu0 0.0
    %3383 = vmatpush1.msra.mxu0 0.0
    %3384 = vmatprep.subr.mxu0 0.0
    %3385 = vmatpush1.msra.mxu0 0.0
    %3386 = vmatprep.subr.mxu0 0.0
    %3387 = vmatpush1.msra.mxu0 0.0
    %3388 = vmatprep.subr.mxu0 0.0
    %3389 = vmatpush1.msra.mxu0 0.0
    %3390 = vmatprep.subr.mxu0 0.0
    %3391 = vmatpush1.msra.mxu0 0.0
    %3392 = vmatprep.subr.mxu0 0.0
    %3393 = vmatpush1.msra.mxu0 0.0
    %3394 = vmatprep.subr.mxu0 0.0
    %3395 = vmatpush1.msra.mxu0 0.0
    %3396 = vmatprep.subr.mxu0 0.0
    %3397 = vmatpush1.msra.mxu0 0.0
    %3398 = vmatprep.subr.mxu0 0.0
    %3399 = vmatpush1.msra.mxu0 0.0
    %3400 = vmatprep.subr.mxu0 0.0
    %3401 = vmatpush1.msra.mxu0 0.0
    %3402 = vmatprep.subr.mxu0 0.0
    %3403 = vmatpush1.msra.mxu0 0.0
    %3404 = vmatprep.subr.mxu0 0.0
    %3405 = vmatpush1.msra.mxu0 0.0
    %3406 = vmatprep.subr.mxu0 0.0
    %3407 = vmatpush1.msra.mxu0 0.0
    %3408 = vmatprep.subr.mxu0 0.0
    %3409 = vmatpush1.msra.mxu0 0.0
    %3410 = vmatprep.subr.mxu0 0.0
    %3411 = vmatpush1.msra.mxu0 0.0
    %3412 = vmatprep.subr.mxu0 0.0
    %3413 = vmatpush1.msra.mxu0 0.0
    %3414 = vmatprep.subr.mxu0 0.0
    %3415 = vmatpush1.msra.mxu0 0.0
    %3416 = vmatprep.subr.mxu0 0.0
    %3417 = vmatpush1.msra.mxu0 0.0
    %3418 = vmatprep.subr.mxu0 0.0
    %3419 = vmatpush1.msra.mxu0 0.0
    %3420 = vmatprep.subr.mxu0 0.0
    %3421 = vmatpush1.msra.mxu0 0.0
    %3422 = vmatprep.subr.mxu0 0.0
    %3423 = vmatpush1.msra.mxu0 0.0
    %3424 = vmatprep.subr.mxu0 0.0
    %3425 = vmatpush1.msra.mxu0 0.0
    %3426 = vmatprep.subr.mxu0 0.0
    %3427 = vmatpush1.msra.mxu0 0.0
    %3428 = vmatprep.mubr.f32.mxu0 0.0
    %3429 = vmatmul.mubr.f32.gmra.mrb[0].mxu0 %v3362
    %v3430 = vpop.f32.mrb[0].mxu0
    %v3431 = vadd.f32 0.0, %v3430
    %v3432 = vpop.f32.mrb[0].mxu0
    %3433 = vdwg.mxu0
    %v3435 = vcombine.high %v3431, %v3431
    %v3437 = vunpack.c.l.s4 1966171168
    %v3438 = vunpack.c.0.s8 %v3437
    %v3439 = vlaneseq
    %v3440 = vshrl.u32 %v3439, 7
    %v3441 = vsub.s32 %v3438, %v3440
    %v3442 = vrot.slane %v3431, %v3441
    %v3444 = vunpack.c.l.s4 1966171168
    %v3445 = vunpack.c.0.s8 %v3444
    %v3446 = vlaneseq
    %v3447 = vshrl.u32 %v3446, 7
    %v3448 = vsub.s32 %v3445, %v3447
    %v3449 = vrot.slane %v3435, %v3448
    %v3450 = vcombine.high %v3442, %v3442
    %v3451 = vcombine.high %v3449, %v3449
    %v3453 = vunpack.c.l.s4 1966171168
    %v3454 = vunpack.c.0.s8 %v3453
    %v3455 = vlaneseq
    %v3456 = vshrl.u32 %v3455, 7
    %v3457 = vsub.s32 %v3454, %v3456
    %v3458 = vrot.slane %v3442, %v3457
    %v3460 = vunpack.c.l.s4 1966171168
    %v3461 = vunpack.c.0.s8 %v3460
    %v3462 = vlaneseq
    %v3463 = vshrl.u32 %v3462, 7
    %v3464 = vsub.s32 %v3461, %v3463
    %v3465 = vrot.slane %v3449, %v3464
    %v3467 = vunpack.c.l.s4 1966171168
    %v3468 = vunpack.c.0.s8 %v3467
    %v3469 = vlaneseq
    %v3470 = vshrl.u32 %v3469, 7
    %v3471 = vsub.s32 %v3468, %v3470
    %v3472 = vrot.slane %v3450, %v3471
    %v3474 = vunpack.c.l.s4 1966171168
    %v3475 = vunpack.c.0.s8 %v3474
    %v3476 = vlaneseq
    %v3477 = vshrl.u32 %v3476, 7
    %v3478 = vsub.s32 %v3475, %v3477
    %v3479 = vrot.slane %v3451, %v3478
    %v3480 = vcombine.high %v3458, %v3458
    %v3481 = vcombine.high %v3472, %v3472
    %v3488 = vadd.f32 %v1918, %v3458
    %v3489 = vadd.f32 %v1984, %v3472
    %v3490 = vadd.f32 %v2031, %v3480
    %v3491 = vadd.f32 %v2072, %v3481
    %v3492 = vadd.f32 %v2107, %v3465
    %v3493 = vadd.f32 %v2132, %v3479
    %v3494 = vxor.u32 %v3488, 2147483648
    %v3495 = vxor.u32 %v3489, 2147483648
    %v3496 = vxor.u32 %v3490, 2147483648
    %v3497 = vxor.u32 %v3491, 2147483648
    %v3498 = vxor.u32 %v3492, 2147483648
    %v3499 = vxor.u32 %v3493, 2147483648
    %v3500 = vmul.f32 %v3494, 1.442695
    %v3501 = vpow.pop %v3500
    %v3502 = vmul.f32 %v3495, 1.442695
    %v3503 = vpow.pop %v3502
    %v3504 = vmul.f32 %v3496, 1.442695
    %v3505 = vpow.pop %v3504
    %v3506 = vmul.f32 %v3497, 1.442695
    %v3507 = vpow.pop %v3506
    %v3508 = vmul.f32 %v3498, 1.442695
    %v3509 = vpow.pop %v3508
    %v3510 = vmul.f32 %v3499, 1.442695
    %v3511 = vpow.pop %v3510
    %v3512 = vadd.f32 %v3501, 1.0
    %v3513 = vadd.f32 %v3503, 1.0
    %v3514 = vadd.f32 %v3505, 1.0
    %v3515 = vadd.f32 %v3507, 1.0
    %v3516 = vadd.f32 %v3509, 1.0
    %v3517 = vadd.f32 %v3511, 1.0
    %v3518 = vrcp.pop %v3512
    %v3519 = vmul.f32 1.0, %v3518
    %v3520 = vrcp.pop %v3513
    %v3521 = vmul.f32 1.0, %v3520
    %v3522 = vrcp.pop %v3514
    %v3523 = vmul.f32 1.0, %v3522
    %v3524 = vrcp.pop %v3515
    %v3525 = vmul.f32 1.0, %v3524
    %v3526 = vrcp.pop %v3516
    %v3527 = vmul.f32 1.0, %v3526
    %v3528 = vrcp.pop %v3517
    %v3529 = vmul.f32 1.0, %v3528
    %v3530 = vtanh.pop %v3488
    %v3531 = vtanh.pop %v3489
    %v3532 = vtanh.pop %v3490
    %v3533 = vtanh.pop %v3491
    %v3534 = vtanh.pop %v3492
    %v3535 = vtanh.pop %v3493
    %v3536 = vmul.f32 %v3519, %v3272
    %v3537 = vmul.f32 %v3521, %v3273
    %v3538 = vmul.f32 %v3523, %v3274
    %v3539 = vmul.f32 %v3525, %v3275
    %v3540 = vmul.f32 %v3527, %v3276
    %v3541 = vmul.f32 %v3529, %v3277
    %3548 = vrot.lane.b32.xlu0 %v3530, 64
    %v3549 = vpop.permute.xlu0 %3548
    %3550 = vrot.lane.b32.xlu0 %v3531, 64
    %v3551 = vpop.permute.xlu0 %3550
    %3552 = vrot.lane.b32.xlu0 %v3532, 64
    %v3553 = vpop.permute.xlu0 %3552
    %3554 = vrot.lane.b32.xlu0 %v3533, 64
    %v3555 = vpop.permute.xlu0 %3554
    %3556 = vrot.lane.b32.xlu0 %v3534, 64
    %v3557 = vpop.permute.xlu0 %3556
    %3558 = vrot.lane.b32.xlu0 %v3535, 64
    %v3559 = vpop.permute.xlu0 %3558
    %v3566 = vmul.f32 %v3519, %v3549
    %v3567 = vmul.f32 %v3521, %v3551
    %v3568 = vmul.f32 %v3523, %v3553
    %v3569 = vmul.f32 %v3525, %v3555
    %v3570 = vmul.f32 %v3527, %v3557
    %v3571 = vmul.f32 %v3529, %v3559
    %3578 = vrot.lane.b32.xlu0 %v3566, 32
    %v3579 = vpop.permute.xlu0 %3578
    %3580 = vrot.lane.b32.xlu0 %v3567, 32
    %v3581 = vpop.permute.xlu0 %3580
    %3582 = vrot.lane.b32.xlu0 %v3568, 32
    %v3583 = vpop.permute.xlu0 %3582
    %3584 = vrot.lane.b32.xlu0 %v3569, 32
    %v3585 = vpop.permute.xlu0 %3584
    %3586 = vrot.lane.b32.xlu0 %v3570, 32
    %v3587 = vpop.permute.xlu0 %3586
    %3588 = vrot.lane.b32.xlu0 %v3571, 32
    %v3589 = vpop.permute.xlu0 %3588
    %v3596 = vadd.f32 %v3536, %v3579
    %v3597 = vadd.f32 %v3537, %v3581
    %v3598 = vadd.f32 %v3538, %v3583
    %v3599 = vadd.f32 %v3539, %v3585
    %v3600 = vadd.f32 %v3540, %v3587
    %v3601 = vadd.f32 %v3541, %v3589
    %v3602 = vtanh.pop %v3596
    %v3603 = vtanh.pop %v3597
    %v3604 = vtanh.pop %v3598
    %v3605 = vtanh.pop %v3599
    %v3606 = vtanh.pop %v3600
    %v3607 = vtanh.pop %v3601
    %3614 = vrot.lane.b32.xlu0 %v3602, 64
    %v3615 = vpop.permute.xlu0 %3614
    %3616 = vrot.lane.b32.xlu0 %v3603, 64
    %v3617 = vpop.permute.xlu0 %3616
    %3618 = vrot.lane.b32.xlu0 %v3604, 64
    %v3619 = vpop.permute.xlu0 %3618
    %3620 = vrot.lane.b32.xlu0 %v3605, 64
    %v3621 = vpop.permute.xlu0 %3620
    %3622 = vrot.lane.b32.xlu0 %v3606, 64
    %v3623 = vpop.permute.xlu0 %3622
    %3624 = vrot.lane.b32.xlu0 %v3607, 64
    %v3625 = vpop.permute.xlu0 %3624
    %v3632 = vmul.f32 %v3519, %v3615
    %v3633 = vmul.f32 %v3521, %v3617
    %v3634 = vmul.f32 %v3523, %v3619
    %v3635 = vmul.f32 %v3525, %v3621
    %v3636 = vmul.f32 %v3527, %v3623
    %v3637 = vmul.f32 %v3529, %v3625
    %v3644 = vcombine.low %v3632, %v3633
    %v3645 = vcombine.low %v3634, %v3635
    %v3646 = vcombine.low %v3636, %v3637
    %v3648 = vunpack.c.l.s4 1966171168
    %v3649 = vunpack.c.0.s8 %v3648
    %v3650 = vlaneseq
    %v3651 = vshrl.u32 %v3650, 7
    %v3652 = vsub.s32 %v3649, %v3651
    %v3653 = vrot.slane %v3644, %v3652
    %v3655 = vunpack.c.l.s4 1966171168
    %v3656 = vunpack.c.0.s8 %v3655
    %v3657 = vlaneseq
    %v3658 = vshrl.u32 %v3657, 7
    %v3659 = vsub.s32 %v3656, %v3658
    %v3660 = vrot.slane %v3645, %v3659
    %v3662 = vunpack.c.l.s4 1966171168
    %v3663 = vunpack.c.0.s8 %v3662
    %v3664 = vlaneseq
    %v3665 = vshrl.u32 %v3664, 7
    %v3666 = vsub.s32 %v3663, %v3665
    %v3667 = vrot.slane %v3646, %v3666
    %v3668 = vcombine.low %v3653, %v3660
    %v3670 = vunpack.c.l.s4 1966171168
    %v3671 = vunpack.c.0.s8 %v3670
    %v3672 = vlaneseq
    %v3673 = vshrl.u32 %v3672, 7
    %v3674 = vsub.s32 %v3671, %v3673
    %v3675 = vrot.slane %v3668, %v3674
    %v3677 = vunpack.c.l.s4 1966171168
    %v3678 = vunpack.c.0.s8 %v3677
    %v3679 = vlaneseq
    %v3680 = vshrl.u32 %v3679, 7
    %v3681 = vsub.s32 %v3678, %v3680
    %v3682 = vrot.slane %v3667, %v3681
    %v3683 = vcombine.low %v3675, %v3682
    %3684 = vrot.lane.b32.xlu0 %v3683, 32
    %v3685 = vpop.permute.xlu0 %3684
    %v3686 = vsel %vm2389, %v3685, 0
    %3688 = vmatprep.subr.mxu0 0.0
    %3689 = vmatpush1.msra.mxu0 %v163
    %3690 = vmatprep.subr.mxu0 0.0
    %3691 = vmatpush1.msra.mxu0 %v164
    %3692 = vmatprep.subr.mxu0 0.0
    %3693 = vmatpush1.msra.mxu0 %v165
    %3694 = vmatprep.subr.mxu0 0.0
    %3695 = vmatpush1.msra.mxu0 %v166
    %3696 = vmatprep.subr.mxu0 0.0
    %3697 = vmatpush1.msra.mxu0 0.0
    %3698 = vmatprep.subr.mxu0 0.0
    %3699 = vmatpush1.msra.mxu0 0.0
    %3700 = vmatprep.subr.mxu0 0.0
    %3701 = vmatpush1.msra.mxu0 0.0
    %3702 = vmatprep.subr.mxu0 0.0
    %3703 = vmatpush1.msra.mxu0 0.0
    %3704 = vmatprep.subr.mxu0 0.0
    %3705 = vmatpush1.msra.mxu0 0.0
    %3706 = vmatprep.subr.mxu0 0.0
    %3707 = vmatpush1.msra.mxu0 0.0
    %3708 = vmatprep.subr.mxu0 0.0
    %3709 = vmatpush1.msra.mxu0 0.0
    %3710 = vmatprep.subr.mxu0 0.0
    %3711 = vmatpush1.msra.mxu0 0.0
    %3712 = vmatprep.subr.mxu0 0.0
    %3713 = vmatpush1.msra.mxu0 0.0
    %3714 = vmatprep.subr.mxu0 0.0
    %3715 = vmatpush1.msra.mxu0 0.0
    %3716 = vmatprep.subr.mxu0 0.0
    %3717 = vmatpush1.msra.mxu0 0.0
    %3718 = vmatprep.subr.mxu0 0.0
    %3719 = vmatpush1.msra.mxu0 0.0
    %3720 = vmatprep.subr.mxu0 0.0
    %3721 = vmatpush1.msra.mxu0 0.0
    %3722 = vmatprep.subr.mxu0 0.0
    %3723 = vmatpush1.msra.mxu0 0.0
    %3724 = vmatprep.subr.mxu0 0.0
    %3725 = vmatpush1.msra.mxu0 0.0
    %3726 = vmatprep.subr.mxu0 0.0
    %3727 = vmatpush1.msra.mxu0 0.0
    %3728 = vmatprep.subr.mxu0 0.0
    %3729 = vmatpush1.msra.mxu0 0.0
    %3730 = vmatprep.subr.mxu0 0.0
    %3731 = vmatpush1.msra.mxu0 0.0
    %3732 = vmatprep.subr.mxu0 0.0
    %3733 = vmatpush1.msra.mxu0 0.0
    %3734 = vmatprep.subr.mxu0 0.0
    %3735 = vmatpush1.msra.mxu0 0.0
    %3736 = vmatprep.subr.mxu0 0.0
    %3737 = vmatpush1.msra.mxu0 0.0
    %3738 = vmatprep.subr.mxu0 0.0
    %3739 = vmatpush1.msra.mxu0 0.0
    %3740 = vmatprep.subr.mxu0 0.0
    %3741 = vmatpush1.msra.mxu0 0.0
    %3742 = vmatprep.subr.mxu0 0.0
    %3743 = vmatpush1.msra.mxu0 0.0
    %3744 = vmatprep.subr.mxu0 0.0
    %3745 = vmatpush1.msra.mxu0 0.0
    %3746 = vmatprep.subr.mxu0 0.0
    %3747 = vmatpush1.msra.mxu0 0.0
    %3748 = vmatprep.subr.mxu0 0.0
    %3749 = vmatpush1.msra.mxu0 0.0
    %3750 = vmatprep.subr.mxu0 0.0
    %3751 = vmatpush1.msra.mxu0 0.0
    %3752 = vmatprep.mubr.f32.mxu0 0.0
    %3753 = vmatmul.mubr.f32.gmra.mrb[0].mxu0 %v3686
    %v3754 = vpop.f32.mrb[0].mxu0
    %v3755 = vadd.f32 0.0, %v3754
    %v3756 = vpop.f32.mrb[0].mxu0
    %3757 = vdwg.mxu0
    %v3759 = vcombine.high %v3755, %v3755
    %v3761 = vunpack.c.l.s4 1966171168
    %v3762 = vunpack.c.0.s8 %v3761
    %v3763 = vlaneseq
    %v3764 = vshrl.u32 %v3763, 7
    %v3765 = vsub.s32 %v3762, %v3764
    %v3766 = vrot.slane %v3755, %v3765
    %v3768 = vunpack.c.l.s4 1966171168
    %v3769 = vunpack.c.0.s8 %v3768
    %v3770 = vlaneseq
    %v3771 = vshrl.u32 %v3770, 7
    %v3772 = vsub.s32 %v3769, %v3771
    %v3773 = vrot.slane %v3759, %v3772
    %v3774 = vcombine.high %v3766, %v3766
    %v3775 = vcombine.high %v3773, %v3773
    %v3777 = vunpack.c.l.s4 1966171168
    %v3778 = vunpack.c.0.s8 %v3777
    %v3779 = vlaneseq
    %v3780 = vshrl.u32 %v3779, 7
    %v3781 = vsub.s32 %v3778, %v3780
    %v3782 = vrot.slane %v3766, %v3781
    %v3784 = vunpack.c.l.s4 1966171168
    %v3785 = vunpack.c.0.s8 %v3784
    %v3786 = vlaneseq
    %v3787 = vshrl.u32 %v3786, 7
    %v3788 = vsub.s32 %v3785, %v3787
    %v3789 = vrot.slane %v3773, %v3788
    %v3791 = vunpack.c.l.s4 1966171168
    %v3792 = vunpack.c.0.s8 %v3791
    %v3793 = vlaneseq
    %v3794 = vshrl.u32 %v3793, 7
    %v3795 = vsub.s32 %v3792, %v3794
    %v3796 = vrot.slane %v3774, %v3795
    %v3798 = vunpack.c.l.s4 1966171168
    %v3799 = vunpack.c.0.s8 %v3798
    %v3800 = vlaneseq
    %v3801 = vshrl.u32 %v3800, 7
    %v3802 = vsub.s32 %v3799, %v3801
    %v3803 = vrot.slane %v3775, %v3802
    %v3804 = vcombine.high %v3782, %v3782
    %v3805 = vcombine.high %v3796, %v3796
    %v3812 = vadd.f32 %v1932, %v3782
    %v3813 = vadd.f32 %v1967, %v3796
    %v3814 = vadd.f32 %v2033, %v3804
    %v3815 = vadd.f32 %v2080, %v3805
    %v3816 = vadd.f32 %v2121, %v3789
    %v3817 = vadd.f32 %v2147, %v3803
    %v3818 = vxor.u32 %v3812, 2147483648
    %v3819 = vxor.u32 %v3813, 2147483648
    %v3820 = vxor.u32 %v3814, 2147483648
    %v3821 = vxor.u32 %v3815, 2147483648
    %v3822 = vxor.u32 %v3816, 2147483648
    %v3823 = vxor.u32 %v3817, 2147483648
    %v3824 = vmul.f32 %v3818, 1.442695
    %v3825 = vpow.pop %v3824
    %v3826 = vmul.f32 %v3819, 1.442695
    %v3827 = vpow.pop %v3826
    %v3828 = vmul.f32 %v3820, 1.442695
    %v3829 = vpow.pop %v3828
    %v3830 = vmul.f32 %v3821, 1.442695
    %v3831 = vpow.pop %v3830
    %v3832 = vmul.f32 %v3822, 1.442695
    %v3833 = vpow.pop %v3832
    %v3834 = vmul.f32 %v3823, 1.442695
    %v3835 = vpow.pop %v3834
    %v3836 = vadd.f32 %v3825, 1.0
    %v3837 = vadd.f32 %v3827, 1.0
    %v3838 = vadd.f32 %v3829, 1.0
    %v3839 = vadd.f32 %v3831, 1.0
    %v3840 = vadd.f32 %v3833, 1.0
    %v3841 = vadd.f32 %v3835, 1.0
    %v3842 = vrcp.pop %v3836
    %v3843 = vmul.f32 1.0, %v3842
    %v3844 = vrcp.pop %v3837
    %v3845 = vmul.f32 1.0, %v3844
    %v3846 = vrcp.pop %v3838
    %v3847 = vmul.f32 1.0, %v3846
    %v3848 = vrcp.pop %v3839
    %v3849 = vmul.f32 1.0, %v3848
    %v3850 = vrcp.pop %v3840
    %v3851 = vmul.f32 1.0, %v3850
    %v3852 = vrcp.pop %v3841
    %v3853 = vmul.f32 1.0, %v3852
    %v3854 = vtanh.pop %v3812
    %v3855 = vtanh.pop %v3813
    %v3856 = vtanh.pop %v3814
    %v3857 = vtanh.pop %v3815
    %v3858 = vtanh.pop %v3816
    %v3859 = vtanh.pop %v3817
    %v3860 = vmul.f32 %v3843, %v3596
    %v3861 = vmul.f32 %v3845, %v3597
    %v3862 = vmul.f32 %v3847, %v3598
    %v3863 = vmul.f32 %v3849, %v3599
    %v3864 = vmul.f32 %v3851, %v3600
    %v3865 = vmul.f32 %v3853, %v3601
    %3872 = vrot.lane.b32.xlu0 %v3854, 64
    %v3873 = vpop.permute.xlu0 %3872
    %3874 = vrot.lane.b32.xlu0 %v3855, 64
    %v3875 = vpop.permute.xlu0 %3874
    %3876 = vrot.lane.b32.xlu0 %v3856, 64
    %v3877 = vpop.permute.xlu0 %3876
    %3878 = vrot.lane.b32.xlu0 %v3857, 64
    %v3879 = vpop.permute.xlu0 %3878
    %3880 = vrot.lane.b32.xlu0 %v3858, 64
    %v3881 = vpop.permute.xlu0 %3880
    %3882 = vrot.lane.b32.xlu0 %v3859, 64
    %v3883 = vpop.permute.xlu0 %3882
    %v3890 = vmul.f32 %v3843, %v3873
    %v3891 = vmul.f32 %v3845, %v3875
    %v3892 = vmul.f32 %v3847, %v3877
    %v3893 = vmul.f32 %v3849, %v3879
    %v3894 = vmul.f32 %v3851, %v3881
    %v3895 = vmul.f32 %v3853, %v3883
    %3902 = vrot.lane.b32.xlu0 %v3890, 32
    %v3903 = vpop.permute.xlu0 %3902
    %3904 = vrot.lane.b32.xlu0 %v3891, 32
    %v3905 = vpop.permute.xlu0 %3904
    %3906 = vrot.lane.b32.xlu0 %v3892, 32
    %v3907 = vpop.permute.xlu0 %3906
    %3908 = vrot.lane.b32.xlu0 %v3893, 32
    %v3909 = vpop.permute.xlu0 %3908
    %3910 = vrot.lane.b32.xlu0 %v3894, 32
    %v3911 = vpop.permute.xlu0 %3910
    %3912 = vrot.lane.b32.xlu0 %v3895, 32
    %v3913 = vpop.permute.xlu0 %3912
    %v3920 = vadd.f32 %v3860, %v3903
    %v3921 = vadd.f32 %v3861, %v3905
    %v3922 = vadd.f32 %v3862, %v3907
    %v3923 = vadd.f32 %v3863, %v3909
    %v3924 = vadd.f32 %v3864, %v3911
    %v3925 = vadd.f32 %v3865, %v3913
    %v3926 = vtanh.pop %v3920
    %v3927 = vtanh.pop %v3921
    %v3928 = vtanh.pop %v3922
    %v3929 = vtanh.pop %v3923
    %v3930 = vtanh.pop %v3924
    %v3931 = vtanh.pop %v3925
    %3938 = vrot.lane.b32.xlu0 %v3926, 64
    %v3939 = vpop.permute.xlu0 %3938
    %3940 = vrot.lane.b32.xlu0 %v3927, 64
    %v3941 = vpop.permute.xlu0 %3940
    %3942 = vrot.lane.b32.xlu0 %v3928, 64
    %v3943 = vpop.permute.xlu0 %3942
    %3944 = vrot.lane.b32.xlu0 %v3929, 64
    %v3945 = vpop.permute.xlu0 %3944
    %3946 = vrot.lane.b32.xlu0 %v3930, 64
    %v3947 = vpop.permute.xlu0 %3946
    %3948 = vrot.lane.b32.xlu0 %v3931, 64
    %v3949 = vpop.permute.xlu0 %3948
    %v3956 = vmul.f32 %v3843, %v3939
    %v3957 = vmul.f32 %v3845, %v3941
    %v3958 = vmul.f32 %v3847, %v3943
    %v3959 = vmul.f32 %v3849, %v3945
    %v3960 = vmul.f32 %v3851, %v3947
    %v3961 = vmul.f32 %v3853, %v3949
    %v3968 = vcombine.low %v3956, %v3957
    %v3969 = vcombine.low %v3958, %v3959
    %v3970 = vcombine.low %v3960, %v3961
    %v3972 = vunpack.c.l.s4 1966171168
    %v3973 = vunpack.c.0.s8 %v3972
    %v3974 = vlaneseq
    %v3975 = vshrl.u32 %v3974, 7
    %v3976 = vsub.s32 %v3973, %v3975
    %v3977 = vrot.slane %v3968, %v3976
    %v3979 = vunpack.c.l.s4 1966171168
    %v3980 = vunpack.c.0.s8 %v3979
    %v3981 = vlaneseq
    %v3982 = vshrl.u32 %v3981, 7
    %v3983 = vsub.s32 %v3980, %v3982
    %v3984 = vrot.slane %v3969, %v3983
    %v3986 = vunpack.c.l.s4 1966171168
    %v3987 = vunpack.c.0.s8 %v3986
    %v3988 = vlaneseq
    %v3989 = vshrl.u32 %v3988, 7
    %v3990 = vsub.s32 %v3987, %v3989
    %v3991 = vrot.slane %v3970, %v3990
    %v3992 = vcombine.low %v3977, %v3984
    %v3994 = vunpack.c.l.s4 1966171168
    %v3995 = vunpack.c.0.s8 %v3994
    %v3996 = vlaneseq
    %v3997 = vshrl.u32 %v3996, 7
    %v3998 = vsub.s32 %v3995, %v3997
    %v3999 = vrot.slane %v3992, %v3998
    %v4001 = vunpack.c.l.s4 1966171168
    %v4002 = vunpack.c.0.s8 %v4001
    %v4003 = vlaneseq
    %v4004 = vshrl.u32 %v4003, 7
    %v4005 = vsub.s32 %v4002, %v4004
    %v4006 = vrot.slane %v3991, %v4005
    %v4007 = vcombine.low %v3999, %v4006
    %4008 = vrot.lane.b32.xlu0 %v4007, 32
    %v4009 = vpop.permute.xlu0 %4008
    %v4010 = vsel %vm2389, %v4009, 0
    %4012 = vmatprep.subr.mxu0 0.0
    %4013 = vmatpush1.msra.mxu0 %v163
    %4014 = vmatprep.subr.mxu0 0.0
    %4015 = vmatpush1.msra.mxu0 %v164
    %4016 = vmatprep.subr.mxu0 0.0
    %4017 = vmatpush1.msra.mxu0 %v165
    %4018 = vmatprep.subr.mxu0 0.0
    %4019 = vmatpush1.msra.mxu0 %v166
    %4020 = vmatprep.subr.mxu0 0.0
    %4021 = vmatpush1.msra.mxu0 0.0
    %4022 = vmatprep.subr.mxu0 0.0
    %4023 = vmatpush1.msra.mxu0 0.0
    %4024 = vmatprep.subr.mxu0 0.0
    %4025 = vmatpush1.msra.mxu0 0.0
    %4026 = vmatprep.subr.mxu0 0.0
    %4027 = vmatpush1.msra.mxu0 0.0
    %4028 = vmatprep.subr.mxu0 0.0
    %4029 = vmatpush1.msra.mxu0 0.0
    %4030 = vmatprep.subr.mxu0 0.0
    %4031 = vmatpush1.msra.mxu0 0.0
    %4032 = vmatprep.subr.mxu0 0.0
    %4033 = vmatpush1.msra.mxu0 0.0
    %4034 = vmatprep.subr.mxu0 0.0
    %4035 = vmatpush1.msra.mxu0 0.0
    %4036 = vmatprep.subr.mxu0 0.0
    %4037 = vmatpush1.msra.mxu0 0.0
    %4038 = vmatprep.subr.mxu0 0.0
    %4039 = vmatpush1.msra.mxu0 0.0
    %4040 = vmatprep.subr.mxu0 0.0
    %4041 = vmatpush1.msra.mxu0 0.0
    %4042 = vmatprep.subr.mxu0 0.0
    %4043 = vmatpush1.msra.mxu0 0.0
    %4044 = vmatprep.subr.mxu0 0.0
    %4045 = vmatpush1.msra.mxu0 0.0
    %4046 = vmatprep.subr.mxu0 0.0
    %4047 = vmatpush1.msra.mxu0 0.0
    %4048 = vmatprep.subr.mxu0 0.0
    %4049 = vmatpush1.msra.mxu0 0.0
    %4050 = vmatprep.subr.mxu0 0.0
    %4051 = vmatpush1.msra.mxu0 0.0
    %4052 = vmatprep.subr.mxu0 0.0
    %4053 = vmatpush1.msra.mxu0 0.0
    %4054 = vmatprep.subr.mxu0 0.0
    %4055 = vmatpush1.msra.mxu0 0.0
    %4056 = vmatprep.subr.mxu0 0.0
    %4057 = vmatpush1.msra.mxu0 0.0
    %4058 = vmatprep.subr.mxu0 0.0
    %4059 = vmatpush1.msra.mxu0 0.0
    %4060 = vmatprep.subr.mxu0 0.0
    %4061 = vmatpush1.msra.mxu0 0.0
    %4062 = vmatprep.subr.mxu0 0.0
    %4063 = vmatpush1.msra.mxu0 0.0
    %4064 = vmatprep.subr.mxu0 0.0
    %4065 = vmatpush1.msra.mxu0 0.0
    %4066 = vmatprep.subr.mxu0 0.0
    %4067 = vmatpush1.msra.mxu0 0.0
    %4068 = vmatprep.subr.mxu0 0.0
    %4069 = vmatpush1.msra.mxu0 0.0
    %4070 = vmatprep.subr.mxu0 0.0
    %4071 = vmatpush1.msra.mxu0 0.0
    %4072 = vmatprep.subr.mxu0 0.0
    %4073 = vmatpush1.msra.mxu0 0.0
    %4074 = vmatprep.subr.mxu0 0.0
    %4075 = vmatpush1.msra.mxu0 0.0
    %4076 = vmatprep.mubr.f32.mxu0 0.0
    %4077 = vmatmul.mubr.f32.gmra.mrb[0].mxu0 %v4010
    %v4078 = vpop.f32.mrb[0].mxu0
    %v4079 = vadd.f32 0.0, %v4078
    %v4080 = vpop.f32.mrb[0].mxu0
    %4081 = vdwg.mxu0
    %v4083 = vcombine.high %v4079, %v4079
    %v4085 = vunpack.c.l.s4 1966171168
    %v4086 = vunpack.c.0.s8 %v4085
    %v4087 = vlaneseq
    %v4088 = vshrl.u32 %v4087, 7
    %v4089 = vsub.s32 %v4086, %v4088
    %v4090 = vrot.slane %v4079, %v4089
    %v4092 = vunpack.c.l.s4 1966171168
    %v4093 = vunpack.c.0.s8 %v4092
    %v4094 = vlaneseq
    %v4095 = vshrl.u32 %v4094, 7
    %v4096 = vsub.s32 %v4093, %v4095
    %v4097 = vrot.slane %v4083, %v4096
    %v4098 = vcombine.high %v4090, %v4090
    %v4099 = vcombine.high %v4097, %v4097
    %v4101 = vunpack.c.l.s4 1966171168
    %v4102 = vunpack.c.0.s8 %v4101
    %v4103 = vlaneseq
    %v4104 = vshrl.u32 %v4103, 7
    %v4105 = vsub.s32 %v4102, %v4104
    %v4106 = vrot.slane %v4090, %v4105
    %v4108 = vunpack.c.l.s4 1966171168
    %v4109 = vunpack.c.0.s8 %v4108
    %v4110 = vlaneseq
    %v4111 = vshrl.u32 %v4110, 7
    %v4112 = vsub.s32 %v4109, %v4111
    %v4113 = vrot.slane %v4097, %v4112
    %v4115 = vunpack.c.l.s4 1966171168
    %v4116 = vunpack.c.0.s8 %v4115
    %v4117 = vlaneseq
    %v4118 = vshrl.u32 %v4117, 7
    %v4119 = vsub.s32 %v4116, %v4118
    %v4120 = vrot.slane %v4098, %v4119
    %v4122 = vunpack.c.l.s4 1966171168
    %v4123 = vunpack.c.0.s8 %v4122
    %v4124 = vlaneseq
    %v4125 = vshrl.u32 %v4124, 7
    %v4126 = vsub.s32 %v4123, %v4125
    %v4127 = vrot.slane %v4099, %v4126
    %v4128 = vcombine.high %v4106, %v4106
    %v4129 = vcombine.high %v4120, %v4120
    %v4136 = vadd.f32 %v1934, %v4106
    %v4137 = vadd.f32 %v1981, %v4120
    %v4138 = vadd.f32 %v2016, %v4128
    %v4139 = vadd.f32 %v2082, %v4129
    %v4140 = vadd.f32 %v2129, %v4113
    %v4141 = vadd.f32 %v2154, %v4127
    %v4142 = vxor.u32 %v4136, 2147483648
    %v4143 = vxor.u32 %v4137, 2147483648
    %v4144 = vxor.u32 %v4138, 2147483648
    %v4145 = vxor.u32 %v4139, 2147483648
    %v4146 = vxor.u32 %v4140, 2147483648
    %v4147 = vxor.u32 %v4141, 2147483648
    %v4148 = vmul.f32 %v4142, 1.442695
    %v4149 = vpow.pop %v4148
    %v4150 = vmul.f32 %v4143, 1.442695
    %v4151 = vpow.pop %v4150
    %v4152 = vmul.f32 %v4144, 1.442695
    %v4153 = vpow.pop %v4152
    %v4154 = vmul.f32 %v4145, 1.442695
    %v4155 = vpow.pop %v4154
    %v4156 = vmul.f32 %v4146, 1.442695
    %v4157 = vpow.pop %v4156
    %v4158 = vmul.f32 %v4147, 1.442695
    %v4159 = vpow.pop %v4158
    %v4160 = vadd.f32 %v4149, 1.0
    %v4161 = vadd.f32 %v4151, 1.0
    %v4162 = vadd.f32 %v4153, 1.0
    %v4163 = vadd.f32 %v4155, 1.0
    %v4164 = vadd.f32 %v4157, 1.0
    %v4165 = vadd.f32 %v4159, 1.0
    %v4166 = vrcp.pop %v4160
    %v4167 = vmul.f32 1.0, %v4166
    %v4168 = vrcp.pop %v4161
    %v4169 = vmul.f32 1.0, %v4168
    %v4170 = vrcp.pop %v4162
    %v4171 = vmul.f32 1.0, %v4170
    %v4172 = vrcp.pop %v4163
    %v4173 = vmul.f32 1.0, %v4172
    %v4174 = vrcp.pop %v4164
    %v4175 = vmul.f32 1.0, %v4174
    %v4176 = vrcp.pop %v4165
    %v4177 = vmul.f32 1.0, %v4176
    %v4178 = vtanh.pop %v4136
    %v4179 = vtanh.pop %v4137
    %v4180 = vtanh.pop %v4138
    %v4181 = vtanh.pop %v4139
    %v4182 = vtanh.pop %v4140
    %v4183 = vtanh.pop %v4141
    %v4184 = vmul.f32 %v4167, %v3920
    %v4185 = vmul.f32 %v4169, %v3921
    %v4186 = vmul.f32 %v4171, %v3922
    %v4187 = vmul.f32 %v4173, %v3923
    %v4188 = vmul.f32 %v4175, %v3924
    %v4189 = vmul.f32 %v4177, %v3925
    %4196 = vrot.lane.b32.xlu0 %v4178, 64
    %v4197 = vpop.permute.xlu0 %4196
    %4198 = vrot.lane.b32.xlu0 %v4179, 64
    %v4199 = vpop.permute.xlu0 %4198
    %4200 = vrot.lane.b32.xlu0 %v4180, 64
    %v4201 = vpop.permute.xlu0 %4200
    %4202 = vrot.lane.b32.xlu0 %v4181, 64
    %v4203 = vpop.permute.xlu0 %4202
    %4204 = vrot.lane.b32.xlu0 %v4182, 64
    %v4205 = vpop.permute.xlu0 %4204
    %4206 = vrot.lane.b32.xlu0 %v4183, 64
    %v4207 = vpop.permute.xlu0 %4206
    %v4214 = vmul.f32 %v4167, %v4197
    %v4215 = vmul.f32 %v4169, %v4199
    %v4216 = vmul.f32 %v4171, %v4201
    %v4217 = vmul.f32 %v4173, %v4203
    %v4218 = vmul.f32 %v4175, %v4205
    %v4219 = vmul.f32 %v4177, %v4207
    %4226 = vrot.lane.b32.xlu0 %v4214, 32
    %v4227 = vpop.permute.xlu0 %4226
    %4228 = vrot.lane.b32.xlu0 %v4215, 32
    %v4229 = vpop.permute.xlu0 %4228
    %4230 = vrot.lane.b32.xlu0 %v4216, 32
    %v4231 = vpop.permute.xlu0 %4230
    %4232 = vrot.lane.b32.xlu0 %v4217, 32
    %v4233 = vpop.permute.xlu0 %4232
    %4234 = vrot.lane.b32.xlu0 %v4218, 32
    %v4235 = vpop.permute.xlu0 %4234
    %4236 = vrot.lane.b32.xlu0 %v4219, 32
    %v4237 = vpop.permute.xlu0 %4236
    %v4244 = vadd.f32 %v4184, %v4227
    %v4245 = vadd.f32 %v4185, %v4229
    %v4246 = vadd.f32 %v4186, %v4231
    %v4247 = vadd.f32 %v4187, %v4233
    %v4248 = vadd.f32 %v4188, %v4235
    %v4249 = vadd.f32 %v4189, %v4237
    %v4250 = vtanh.pop %v4244
    %v4251 = vtanh.pop %v4245
    %v4252 = vtanh.pop %v4246
    %v4253 = vtanh.pop %v4247
    %v4254 = vtanh.pop %v4248
    %v4255 = vtanh.pop %v4249
    %4262 = vrot.lane.b32.xlu0 %v4250, 64
    %v4263 = vpop.permute.xlu0 %4262
    %4264 = vrot.lane.b32.xlu0 %v4251, 64
    %v4265 = vpop.permute.xlu0 %4264
    %4266 = vrot.lane.b32.xlu0 %v4252, 64
    %v4267 = vpop.permute.xlu0 %4266
    %4268 = vrot.lane.b32.xlu0 %v4253, 64
    %v4269 = vpop.permute.xlu0 %4268
    %4270 = vrot.lane.b32.xlu0 %v4254, 64
    %v4271 = vpop.permute.xlu0 %4270
    %4272 = vrot.lane.b32.xlu0 %v4255, 64
    %v4273 = vpop.permute.xlu0 %4272
    %v4280 = vmul.f32 %v4167, %v4263
    %v4281 = vmul.f32 %v4169, %v4265
    %v4282 = vmul.f32 %v4171, %v4267
    %v4283 = vmul.f32 %v4173, %v4269
    %v4284 = vmul.f32 %v4175, %v4271
    %v4285 = vmul.f32 %v4177, %v4273
    %v4286 = vlaneseq
    %v4287 = vshrl.u32 %v4286, 7
    %v4288 = vsub.s32 0, %v4287
    %v4289 = vrot.slane %v2660, %v4288
    %v4290 = vlaneseq
    %v4291 = vshrl.u32 %v4290, 7
    %v4292 = vsub.s32 0, %v4291
    %v4293 = vrot.slane %v2661, %v4292
    %v4294 = vlaneseq
    %v4295 = vshrl.u32 %v4294, 7
    %v4296 = vsub.s32 0, %v4295
    %v4297 = vrot.slane %v2662, %v4296
    %v4298 = vlaneseq
    %v4299 = vshrl.u32 %v4298, 7
    %v4300 = vsub.s32 0, %v4299
    %v4301 = vrot.slane %v2663, %v4300
    %v4302 = vlaneseq
    %v4303 = vshrl.u32 %v4302, 7
    %v4304 = vsub.s32 0, %v4303
    %v4305 = vrot.slane %v2664, %v4304
    %v4306 = vlaneseq
    %v4307 = vshrl.u32 %v4306, 7
    %v4308 = vsub.s32 0, %v4307
    %v4309 = vrot.slane %v2665, %v4308
    %v4316 = vlaneseq
    %v4317 = vshrl.u32 %v4316, 7
    %v4318 = vsub.s32 0, %v4317
    %v4319 = vrot.slane %v2984, %v4318
    %v4320 = vlaneseq
    %v4321 = vshrl.u32 %v4320, 7
    %v4322 = vsub.s32 0, %v4321
    %v4323 = vrot.slane %v2985, %v4322
    %v4324 = vlaneseq
    %v4325 = vshrl.u32 %v4324, 7
    %v4326 = vsub.s32 0, %v4325
    %v4327 = vrot.slane %v2986, %v4326
    %v4328 = vlaneseq
    %v4329 = vshrl.u32 %v4328, 7
    %v4330 = vsub.s32 0, %v4329
    %v4331 = vrot.slane %v2987, %v4330
    %v4332 = vlaneseq
    %v4333 = vshrl.u32 %v4332, 7
    %v4334 = vsub.s32 0, %v4333
    %v4335 = vrot.slane %v2988, %v4334
    %v4336 = vlaneseq
    %v4337 = vshrl.u32 %v4336, 7
    %v4338 = vsub.s32 0, %v4337
    %v4339 = vrot.slane %v2989, %v4338
    %v4346 = vlaneseq
    %v4347 = vshrl.u32 %v4346, 7
    %v4348 = vsub.s32 0, %v4347
    %v4349 = vrot.slane %v3308, %v4348
    %v4350 = vlaneseq
    %v4351 = vshrl.u32 %v4350, 7
    %v4352 = vsub.s32 0, %v4351
    %v4353 = vrot.slane %v3309, %v4352
    %v4354 = vlaneseq
    %v4355 = vshrl.u32 %v4354, 7
    %v4356 = vsub.s32 0, %v4355
    %v4357 = vrot.slane %v3310, %v4356
    %v4358 = vlaneseq
    %v4359 = vshrl.u32 %v4358, 7
    %v4360 = vsub.s32 0, %v4359
    %v4361 = vrot.slane %v3311, %v4360
    %v4362 = vlaneseq
    %v4363 = vshrl.u32 %v4362, 7
    %v4364 = vsub.s32 0, %v4363
    %v4365 = vrot.slane %v3312, %v4364
    %v4366 = vlaneseq
    %v4367 = vshrl.u32 %v4366, 7
    %v4368 = vsub.s32 0, %v4367
    %v4369 = vrot.slane %v3313, %v4368
    %v4376 = vlaneseq
    %v4377 = vshrl.u32 %v4376, 7
    %v4378 = vsub.s32 0, %v4377
    %v4379 = vrot.slane %v3632, %v4378
    %v4380 = vlaneseq
    %v4381 = vshrl.u32 %v4380, 7
    %v4382 = vsub.s32 0, %v4381
    %v4383 = vrot.slane %v3633, %v4382
    %v4384 = vlaneseq
    %v4385 = vshrl.u32 %v4384, 7
    %v4386 = vsub.s32 0, %v4385
    %v4387 = vrot.slane %v3634, %v4386
    %v4388 = vlaneseq
    %v4389 = vshrl.u32 %v4388, 7
    %v4390 = vsub.s32 0, %v4389
    %v4391 = vrot.slane %v3635, %v4390
    %v4392 = vlaneseq
    %v4393 = vshrl.u32 %v4392, 7
    %v4394 = vsub.s32 0, %v4393
    %v4395 = vrot.slane %v3636, %v4394
    %v4396 = vlaneseq
    %v4397 = vshrl.u32 %v4396, 7
    %v4398 = vsub.s32 0, %v4397
    %v4399 = vrot.slane %v3637, %v4398
    %v4406 = vlaneseq
    %v4407 = vshrl.u32 %v4406, 7
    %v4408 = vsub.s32 0, %v4407
    %v4409 = vrot.slane %v3956, %v4408
    %v4410 = vlaneseq
    %v4411 = vshrl.u32 %v4410, 7
    %v4412 = vsub.s32 0, %v4411
    %v4413 = vrot.slane %v3957, %v4412
    %v4414 = vlaneseq
    %v4415 = vshrl.u32 %v4414, 7
    %v4416 = vsub.s32 0, %v4415
    %v4417 = vrot.slane %v3958, %v4416
    %v4418 = vlaneseq
    %v4419 = vshrl.u32 %v4418, 7
    %v4420 = vsub.s32 0, %v4419
    %v4421 = vrot.slane %v3959, %v4420
    %v4422 = vlaneseq
    %v4423 = vshrl.u32 %v4422, 7
    %v4424 = vsub.s32 0, %v4423
    %v4425 = vrot.slane %v3960, %v4424
    %v4426 = vlaneseq
    %v4427 = vshrl.u32 %v4426, 7
    %v4428 = vsub.s32 0, %v4427
    %v4429 = vrot.slane %v3961, %v4428
    %v4442 = vlaneseq
    %v4443 = vshrl.u32 %v4442, 7
    %v4444 = vsub.s32 0, %v4443
    %v4445 = vrot.slane %v4280, %v4444
    %v4446 = vlaneseq
    %v4447 = vshrl.u32 %v4446, 7
    %v4448 = vsub.s32 0, %v4447
    %v4449 = vrot.slane %v4281, %v4448
    %v4450 = vlaneseq
    %v4451 = vshrl.u32 %v4450, 7
    %v4452 = vsub.s32 0, %v4451
    %v4453 = vrot.slane %v4282, %v4452
    %v4454 = vlaneseq
    %v4455 = vshrl.u32 %v4454, 7
    %v4456 = vsub.s32 0, %v4455
    %v4457 = vrot.slane %v4283, %v4456
    %v4458 = vlaneseq
    %v4459 = vshrl.u32 %v4458, 7
    %v4460 = vsub.s32 0, %v4459
    %v4461 = vrot.slane %v4284, %v4460
    %v4462 = vlaneseq
    %v4463 = vshrl.u32 %v4462, 7
    %v4464 = vsub.s32 0, %v4463
    %v4465 = vrot.slane %v4285, %v4464
    %vm4472 = vcmask 1040384
    %v4473 = vsel %vm4472, %v2335, %v4289
    %v4474 = vsel %vm4472, %v2336, %v4293
    %v4475 = vsel %vm4472, %v2337, %v4297
    %v4476 = vsel %vm4472, %v2338, %v4301
    %v4477 = vsel %vm4472, %v2339, %v4305
    %v4478 = vsel %vm4472, %v2340, %v4309
    %v4479 = vsel %vm94, %v4473, %v4319
    %v4480 = vsel %vm94, %v4474, %v4323
    %v4481 = vsel %vm94, %v4475, %v4327
    %v4482 = vsel %vm94, %v4476, %v4331
    %v4483 = vsel %vm94, %v4477, %v4335
    %v4484 = vsel %vm94, %v4478, %v4339
    %vm4485 = vcmask 1042432
    %v4486 = vsel %vm4485, %v4479, %v4349
    %v4487 = vsel %vm4485, %v4480, %v4353
    %v4488 = vsel %vm4485, %v4481, %v4357
    %v4489 = vsel %vm4485, %v4482, %v4361
    %v4490 = vsel %vm4485, %v4483, %v4365
    %v4491 = vsel %vm4485, %v4484, %v4369
    %v4492 = vsel %vm1773, %v4486, %v4379
    %v4493 = vsel %vm1773, %v4487, %v4383
    %v4494 = vsel %vm1773, %v4488, %v4387
    %v4495 = vsel %vm1773, %v4489, %v4391
    %v4496 = vsel %vm1773, %v4490, %v4395
    %v4497 = vsel %vm1773, %v4491, %v4399
    %vm4498 = vcmask 1044480
    %v4499 = vsel %vm4498, %v4492, %v4409
    %v4500 = vsel %vm4498, %v4493, %v4413
    %v4501 = vsel %vm4498, %v4494, %v4417
    %v4502 = vsel %vm4498, %v4495, %v4421
    %v4503 = vsel %vm4498, %v4496, %v4425
    %v4504 = vsel %vm4498, %v4497, %v4429
    %vm4505 = vcmask 1045504
    %v4506 = vsel %vm4505, %v4499, %v4445
    %v4507 = vsel %vm4505, %v4500, %v4449
    %v4508 = vsel %vm4505, %v4501, %v4453
    %v4509 = vsel %vm4505, %v4502, %v4457
    %v4510 = vsel %vm4505, %v4503, %v4461
    %v4511 = vsel %vm4505, %v4504, %v4465
    %v4512 = vld [vmem:[%s3] sm:$0x3f]
    %v4514 = vcombine.high %v4512, %v4512
    %v4516 = vunpack.c.l.s4 1966171168
    %v4517 = vunpack.c.0.s8 %v4516
    %v4518 = vlaneseq
    %v4519 = vshrl.u32 %v4518, 7
    %v4520 = vsub.s32 %v4517, %v4519
    %v4521 = vrot.slane %v4512, %v4520
    %v4523 = vunpack.c.l.s4 1966171168
    %v4524 = vunpack.c.0.s8 %v4523
    %v4525 = vlaneseq
    %v4526 = vshrl.u32 %v4525, 7
    %v4527 = vsub.s32 %v4524, %v4526
    %v4528 = vrot.slane %v4514, %v4527
    %v4529 = vcombine.high %v4521, %v4521
    %v4530 = vcombine.high %v4528, %v4528
    %v4532 = vunpack.c.l.s4 1966171168
    %v4533 = vunpack.c.0.s8 %v4532
    %v4534 = vlaneseq
    %v4535 = vshrl.u32 %v4534, 7
    %v4536 = vsub.s32 %v4533, %v4535
    %v4537 = vrot.slane %v4521, %v4536
    %v4539 = vunpack.c.l.s4 1966171168
    %v4540 = vunpack.c.0.s8 %v4539
    %v4541 = vlaneseq
    %v4542 = vshrl.u32 %v4541, 7
    %v4543 = vsub.s32 %v4540, %v4542
    %v4544 = vrot.slane %v4528, %v4543
    %v4546 = vunpack.c.l.s4 1966171168
    %v4547 = vunpack.c.0.s8 %v4546
    %v4548 = vlaneseq
    %v4549 = vshrl.u32 %v4548, 7
    %v4550 = vsub.s32 %v4547, %v4549
    %v4551 = vrot.slane %v4529, %v4550
    %v4553 = vunpack.c.l.s4 1966171168
    %v4554 = vunpack.c.0.s8 %v4553
    %v4555 = vlaneseq
    %v4556 = vshrl.u32 %v4555, 7
    %v4557 = vsub.s32 %v4554, %v4556
    %v4558 = vrot.slane %v4530, %v4557
    %v4559 = vcombine.high %v4537, %v4537
    %v4560 = vcombine.high %v4551, %v4551
    %v4561 = vlaneseq
    %v4562 = vshrl.u32 %v4561, 7
    %v4563 = vsub.s32 0, %v4562
    %v4564 = vrot.slane %v4537, %v4563
    %v4565 = vlaneseq
    %v4566 = vshrl.u32 %v4565, 7
    %v4567 = vsub.s32 0, %v4566
    %v4568 = vrot.slane %v4551, %v4567
    %v4569 = vlaneseq
    %v4570 = vshrl.u32 %v4569, 7
    %v4571 = vsub.s32 0, %v4570
    %v4572 = vrot.slane %v4559, %v4571
    %v4573 = vlaneseq
    %v4574 = vshrl.u32 %v4573, 7
    %v4575 = vsub.s32 0, %v4574
    %v4576 = vrot.slane %v4560, %v4575
    %v4577 = vlaneseq
    %v4578 = vshrl.u32 %v4577, 7
    %v4579 = vsub.s32 0, %v4578
    %v4580 = vrot.slane %v4544, %v4579
    %v4581 = vlaneseq
    %v4582 = vshrl.u32 %v4581, 7
    %v4583 = vsub.s32 0, %v4582
    %v4584 = vrot.slane %v4558, %v4583
    %4585 = vrot.lane.b32.xlu0 %v4564, 96
    %v4586 = vpop.permute.xlu0 %4585
    %4587 = vrot.lane.b32.xlu0 %v4568, 96
    %v4588 = vpop.permute.xlu0 %4587
    %4589 = vrot.lane.b32.xlu0 %v4572, 96
    %v4590 = vpop.permute.xlu0 %4589
    %4591 = vrot.lane.b32.xlu0 %v4576, 96
    %v4592 = vpop.permute.xlu0 %4591
    %4593 = vrot.lane.b32.xlu0 %v4580, 96
    %v4594 = vpop.permute.xlu0 %4593
    %4595 = vrot.lane.b32.xlu0 %v4584, 96
    %v4596 = vpop.permute.xlu0 %4595
    %v4603 = vmul.f32 %v4506, %v4586
    %v4604 = vmul.f32 %v4507, %v4588
    %v4605 = vmul.f32 %v4508, %v4590
    %v4606 = vmul.f32 %v4509, %v4592
    %v4607 = vmul.f32 %v4510, %v4594
    %v4608 = vmul.f32 %v4511, %v4596
    %4615 = vrot.lane.b32.xlu0 %v4603, 32
    %v4616 = vpop.permute.xlu0 %4615
    %4617 = vrot.lane.b32.xlu0 %v4604, 32
    %v4618 = vpop.permute.xlu0 %4617
    %4619 = vrot.lane.b32.xlu0 %v4605, 32
    %v4620 = vpop.permute.xlu0 %4619
    %4621 = vrot.lane.b32.xlu0 %v4606, 32
    %v4622 = vpop.permute.xlu0 %4621
    %4623 = vrot.lane.b32.xlu0 %v4607, 32
    %v4624 = vpop.permute.xlu0 %4623
    %4625 = vrot.lane.b32.xlu0 %v4608, 32
    %v4626 = vpop.permute.xlu0 %4625
    %vm4633 = vcmask 260096
    %v4634 = vsel %vm4633, %v4616, 0.0
    %4635 = vadd.xlane.f32.xlu0 %v4634
    %v4636 = vpop.xlane.xlu0 %4635
    %v4637 = vsel %vm4633, %v4618, 0.0
    %4638 = vadd.xlane.f32.xlu0 %v4637
    %v4639 = vpop.xlane.xlu0 %4638
    %v4640 = vsel %vm4633, %v4620, 0.0
    %4641 = vadd.xlane.f32.xlu0 %v4640
    %v4642 = vpop.xlane.xlu0 %4641
    %v4643 = vsel %vm4633, %v4622, 0.0
    %4644 = vadd.xlane.f32.xlu0 %v4643
    %v4645 = vpop.xlane.xlu0 %4644
    %v4646 = vsel %vm4633, %v4624, 0.0
    %4647 = vadd.xlane.f32.xlu0 %v4646
    %v4648 = vpop.xlane.xlu0 %4647
    %v4649 = vsel %vm4633, %v4626, 0.0
    %4650 = vadd.xlane.f32.xlu0 %v4649
    %v4651 = vpop.xlane.xlu0 %4650
    %4652 = vset.pattern.permute.xlu0 32
    %4653 = vperm.xlu0 %4652, %v4512
    %v4654 = vpop.permute.xlu0 %4653
    %v4655 = vlaneseq
    %v4656 = vshrl.u32 %v4655, 7
    %v4657 = vsub.s32 0, %v4656
    %v4658 = vrot.slane %v4654, %v4657
    %v4659 = vlaneseq
    %v4660 = vshrl.u32 %v4659, 7
    %v4661 = vsub.s32 1, %v4660
    %v4662 = vrot.slane %v4654, %v4661
    %v4663 = vlaneseq
    %v4664 = vshrl.u32 %v4663, 7
    %v4665 = vsub.s32 2, %v4664
    %v4666 = vrot.slane %v4654, %v4665
    %v4667 = vlaneseq
    %v4668 = vshrl.u32 %v4667, 7
    %v4669 = vsub.s32 3, %v4668
    %v4670 = vrot.slane %v4654, %v4669
    %v4671 = vlaneseq
    %v4672 = vshrl.u32 %v4671, 7
    %v4673 = vsub.s32 4, %v4672
    %v4674 = vrot.slane %v4654, %v4673
    %v4675 = vlaneseq
    %v4676 = vshrl.u32 %v4675, 7
    %v4677 = vsub.s32 5, %v4676
    %v4678 = vrot.slane %v4654, %v4677
    %v4685 = vadd.f32 %v4636, %v4658
    %v4686 = vadd.f32 %v4639, %v4662
    %v4687 = vadd.f32 %v4642, %v4666
    %v4688 = vadd.f32 %v4645, %v4670
    %v4689 = vadd.f32 %v4648, %v4674
    %v4690 = vadd.f32 %v4651, %v4678
    %v4691 = vld [vmem:[%s4 + $0x18] sm:$0x1]
    %s4693 = vtos %v4691
    %v4694 = vstv %s4693
    %v4696 = vmul.f32 %v4685, %v4694
    %v4697 = vmul.f32 %v4686, %v4694
    %4698 = vrot.lane.b32.xlu0 %v4691, 127
    %v4699 = vpop.permute.xlu0 %4698
    %s4700 = vtos %v4699
    %v4701 = vstv %s4700
    %v4703 = vmul.f32 %v4687, %v4701
    %v4704 = vmul.f32 %v4688, %v4701
    %v4705 = vadd.f32 %v4696, %v4703
    %v4706 = vadd.f32 %v4697, %v4704
    %4707 = vrot.lane.b32.xlu0 %v4691, 126
    %v4708 = vpop.permute.xlu0 %4707
    %s4709 = vtos %v4708
    %v4710 = vstv %s4709
    %v4712 = vmul.f32 %v4689, %v4710
    %v4713 = vmul.f32 %v4690, %v4710
    %v4714 = vadd.f32 %v4705, %v4712
    %v4715 = vadd.f32 %v4706, %v4713
    %4716 = vrot.lane.b32.xlu0 %v4691, 125
    %v4717 = vpop.permute.xlu0 %4716
    %s4718 = vtos %v4717
    %v4719 = vstv %s4718
    %v4721 = vadd.f32 %v4714, %v4719
    %v4722 = vadd.f32 %v4715, %v4719
    %v4723 = vld [vmem:[%s4 + $0x1f] sm:$0x3f]
    %v4724 = vld [vmem:[%s4 + $0x1b] sm:$0xf]
    %v4725 = vld [vmem:[%s4 + $0x19] sm:$0x1]
    %v4726 = vld [vmem:[%s4 + $0x1a] sm:$0x1]
    %v4727 = vld [vmem:[%s1] sm:$0x3]
    %v4728 = vlaneseq
    %v4729 = vshrl.u32 %v4728, 7
    %v4730 = vsub.s32 0, %v4729
    %v4731 = vrot.slane %v4725, %v4730
    %vm4732 = vcmask 48128
    %v4734 = vsel %vm4732, %v4727, 0
    %v4737 = vsel %vm4505, %v4723, 0
    %4739 = vmatprep.subr.mxu0 0.0
    %4740 = vmatpush1.msra.mxu0 %v4737
    %4741 = vmatprep.subr.mxu0 0.0
    %4742 = vmatpush1.msra.mxu0 0.0
    %4743 = vmatprep.subr.mxu0 0.0
    %4744 = vmatpush1.msra.mxu0 0.0
    %4745 = vmatprep.subr.mxu0 0.0
    %4746 = vmatpush1.msra.mxu0 0.0
    %4747 = vmatprep.subr.mxu0 0.0
    %4748 = vmatpush1.msra.mxu0 0.0
    %4749 = vmatprep.subr.mxu0 0.0
    %4750 = vmatpush1.msra.mxu0 0.0
    %4751 = vmatprep.subr.mxu0 0.0
    %4752 = vmatpush1.msra.mxu0 0.0
    %4753 = vmatprep.subr.mxu0 0.0
    %4754 = vmatpush1.msra.mxu0 0.0
    %4755 = vmatprep.subr.mxu0 0.0
    %4756 = vmatpush1.msra.mxu0 0.0
    %4757 = vmatprep.subr.mxu0 0.0
    %4758 = vmatpush1.msra.mxu0 0.0
    %4759 = vmatprep.subr.mxu0 0.0
    %4760 = vmatpush1.msra.mxu0 0.0
    %4761 = vmatprep.subr.mxu0 0.0
    %4762 = vmatpush1.msra.mxu0 0.0
    %4763 = vmatprep.subr.mxu0 0.0
    %4764 = vmatpush1.msra.mxu0 0.0
    %4765 = vmatprep.subr.mxu0 0.0
    %4766 = vmatpush1.msra.mxu0 0.0
    %4767 = vmatprep.subr.mxu0 0.0
    %4768 = vmatpush1.msra.mxu0 0.0
    %4769 = vmatprep.subr.mxu0 0.0
    %4770 = vmatpush1.msra.mxu0 0.0
    %4771 = vmatprep.subr.mxu0 0.0
    %4772 = vmatpush1.msra.mxu0 0.0
    %4773 = vmatprep.subr.mxu0 0.0
    %4774 = vmatpush1.msra.mxu0 0.0
    %4775 = vmatprep.subr.mxu0 0.0
    %4776 = vmatpush1.msra.mxu0 0.0
    %4777 = vmatprep.subr.mxu0 0.0
    %4778 = vmatpush1.msra.mxu0 0.0
    %4779 = vmatprep.subr.mxu0 0.0
    %4780 = vmatpush1.msra.mxu0 0.0
    %4781 = vmatprep.subr.mxu0 0.0
    %4782 = vmatpush1.msra.mxu0 0.0
    %4783 = vmatprep.subr.mxu0 0.0
    %4784 = vmatpush1.msra.mxu0 0.0
    %4785 = vmatprep.subr.mxu0 0.0
    %4786 = vmatpush1.msra.mxu0 0.0
    %4787 = vmatprep.subr.mxu0 0.0
    %4788 = vmatpush1.msra.mxu0 0.0
    %4789 = vmatprep.subr.mxu0 0.0
    %4790 = vmatpush1.msra.mxu0 0.0
    %4791 = vmatprep.subr.mxu0 0.0
    %4792 = vmatpush1.msra.mxu0 0.0
    %4793 = vmatprep.subr.mxu0 0.0
    %4794 = vmatpush1.msra.mxu0 0.0
    %4795 = vmatprep.subr.mxu0 0.0
    %4796 = vmatpush1.msra.mxu0 0.0
    %4797 = vmatprep.subr.mxu0 0.0
    %4798 = vmatpush1.msra.mxu0 0.0
    %4799 = vmatprep.subr.mxu0 0.0
    %4800 = vmatpush1.msra.mxu0 0.0
    %4801 = vmatprep.subr.mxu0 0.0
    %4802 = vmatpush1.msra.mxu0 0.0
    %4803 = vmatprep.mubr.f32.mxu0 0.0
    %4804 = vmatmul.mubr.f32.gmra.mrb[0].mxu0 %v4734
    %v4805 = vpop.f32.mrb[0].mxu0
    %v4806 = vadd.f32 %v4731, %v4805
    %v4807 = vpop.f32.mrb[0].mxu0
    %4808 = vdwg.mxu0
    %v4809 = vmax.f32 %v4806, 0.0
    %v4810 = vlaneseq
    %v4811 = vshrl.u32 %v4810, 7
    %v4812 = vsub.s32 0, %v4811
    %v4813 = vrot.slane %v4726, %v4812
    %v4815 = vsel %vm1760, %v4809, 0
    %v4818 = vsel %vm1773, %v4724, 0
    %4820 = vmatprep.subr.mxu0 0.0
    %4821 = vmatpush1.msra.mxu0 %v4818
    %4822 = vmatprep.subr.mxu0 0.0
    %4823 = vmatpush1.msra.mxu0 0.0
    %4824 = vmatprep.subr.mxu0 0.0
    %4825 = vmatpush1.msra.mxu0 0.0
    %4826 = vmatprep.subr.mxu0 0.0
    %4827 = vmatpush1.msra.mxu0 0.0
    %4828 = vmatprep.subr.mxu0 0.0
    %4829 = vmatpush1.msra.mxu0 0.0
    %4830 = vmatprep.subr.mxu0 0.0
    %4831 = vmatpush1.msra.mxu0 0.0
    %4832 = vmatprep.subr.mxu0 0.0
    %4833 = vmatpush1.msra.mxu0 0.0
    %4834 = vmatprep.subr.mxu0 0.0
    %4835 = vmatpush1.msra.mxu0 0.0
    %4836 = vmatprep.subr.mxu0 0.0
    %4837 = vmatpush1.msra.mxu0 0.0
    %4838 = vmatprep.subr.mxu0 0.0
    %4839 = vmatpush1.msra.mxu0 0.0
    %4840 = vmatprep.subr.mxu0 0.0
    %4841 = vmatpush1.msra.mxu0 0.0
    %4842 = vmatprep.subr.mxu0 0.0
    %4843 = vmatpush1.msra.mxu0 0.0
    %4844 = vmatprep.subr.mxu0 0.0
    %4845 = vmatpush1.msra.mxu0 0.0
    %4846 = vmatprep.subr.mxu0 0.0
    %4847 = vmatpush1.msra.mxu0 0.0
    %4848 = vmatprep.subr.mxu0 0.0
    %4849 = vmatpush1.msra.mxu0 0.0
    %4850 = vmatprep.subr.mxu0 0.0
    %4851 = vmatpush1.msra.mxu0 0.0
    %4852 = vmatprep.subr.mxu0 0.0
    %4853 = vmatpush1.msra.mxu0 0.0
    %4854 = vmatprep.subr.mxu0 0.0
    %4855 = vmatpush1.msra.mxu0 0.0
    %4856 = vmatprep.subr.mxu0 0.0
    %4857 = vmatpush1.msra.mxu0 0.0
    %4858 = vmatprep.subr.mxu0 0.0
    %4859 = vmatpush1.msra.mxu0 0.0
    %4860 = vmatprep.subr.mxu0 0.0
    %4861 = vmatpush1.msra.mxu0 0.0
    %4862 = vmatprep.subr.mxu0 0.0
    %4863 = vmatpush1.msra.mxu0 0.0
    %4864 = vmatprep.subr.mxu0 0.0
    %4865 = vmatpush1.msra.mxu0 0.0
    %4866 = vmatprep.subr.mxu0 0.0
    %4867 = vmatpush1.msra.mxu0 0.0
    %4868 = vmatprep.subr.mxu0 0.0
    %4869 = vmatpush1.msra.mxu0 0.0
    %4870 = vmatprep.subr.mxu0 0.0
    %4871 = vmatpush1.msra.mxu0 0.0
    %4872 = vmatprep.subr.mxu0 0.0
    %4873 = vmatpush1.msra.mxu0 0.0
    %4874 = vmatprep.subr.mxu0 0.0
    %4875 = vmatpush1.msra.mxu0 0.0
    %4876 = vmatprep.subr.mxu0 0.0
    %4877 = vmatpush1.msra.mxu0 0.0
    %4878 = vmatprep.subr.mxu0 0.0
    %4879 = vmatpush1.msra.mxu0 0.0
    %4880 = vmatprep.subr.mxu0 0.0
    %4881 = vmatpush1.msra.mxu0 0.0
    %4882 = vmatprep.subr.mxu0 0.0
    %4883 = vmatpush1.msra.mxu0 0.0
    %4884 = vmatprep.mubr.f32.mxu0 0.0
    %4885 = vmatmul.mubr.f32.gmra.mrb[0].mxu0 %v4815
    %v4886 = vpop.f32.mrb[0].mxu0
    %v4887 = vadd.f32 %v4813, %v4886
    %v4888 = vpop.f32.mrb[0].mxu0
    %4889 = vdwg.mxu0
    %v4890 = vld [vmem:[%s4] sm:$0xff]
    %v4891 = vld [vmem:[%s4 + $0x8] sm:$0x7]
    %v4892 = vld [vmem:[%s4 + $0xb] sm:$0xff]
    %v4893 = vld [vmem:[%s4 + $0x13] sm:$0x7]
    %v4894 = vld [vmem:[%s4 + $0x16] sm:$0x1]
    %v4895 = vld [vmem:[%s4 + $0x17] sm:$0x1]
    %4898 = vset.pattern.permute.xlu0 0
    %4899 = vperm.xlu0 %4898, %v4721
    %v4900 = vpop.permute.xlu0 %4899
    %4901 = vset.pattern.permute.xlu0 0
    %4902 = vperm.xlu0 %4901, %v4722
    %v4903 = vpop.permute.xlu0 %4902
    %v4904 = vlaneseq
    %v4905 = vshrl.u32 %v4904, 7
    %v4906 = vsub.s32 %v52, %v4905
    %v4907 = vrot.slane %v4900, %v4906
    %v4908 = vlaneseq
    %v4909 = vshrl.u32 %v4908, 7
    %v4910 = vsub.s32 %v52, %v4909
    %v4911 = vrot.slane %v4903, %v4910
    %v4912 = vsel %vm77, %v4911, %v4907
    %4915 = vrot.lane.b32.xlu0 %v4887, 7
    %v4916 = vpop.permute.xlu0 %4915
    %vm4918 = vcmask 56320
    %v4919 = vsel %vm4918, %v4912, %v4916
    %v4920 = vlaneseq
    %v4921 = vshrl.u32 %v4920, 7
    %v4922 = vsub.s32 0, %v4921
    %v4923 = vrot.slane %v4894, %v4922
    %vm4924 = vcmask 89088
    %v4926 = vsel %vm4924, %v4919, 0
    %v4929 = vsel %vm4485, %v4891, 0
    %4931 = vmatprep.subr.mxu0 0.0
    %4932 = vmatpush1.msra.mxu0 %v4890
    %4933 = vmatprep.subr.mxu0 0.0
    %4934 = vmatpush1.msra.mxu0 %v4929
    %4935 = vmatprep.subr.mxu0 0.0
    %4936 = vmatpush1.msra.mxu0 0.0
    %4937 = vmatprep.subr.mxu0 0.0
    %4938 = vmatpush1.msra.mxu0 0.0
    %4939 = vmatprep.subr.mxu0 0.0
    %4940 = vmatpush1.msra.mxu0 0.0
    %4941 = vmatprep.subr.mxu0 0.0
    %4942 = vmatpush1.msra.mxu0 0.0
    %4943 = vmatprep.subr.mxu0 0.0
    %4944 = vmatpush1.msra.mxu0 0.0
    %4945 = vmatprep.subr.mxu0 0.0
    %4946 = vmatpush1.msra.mxu0 0.0
    %4947 = vmatprep.subr.mxu0 0.0
    %4948 = vmatpush1.msra.mxu0 0.0
    %4949 = vmatprep.subr.mxu0 0.0
    %4950 = vmatpush1.msra.mxu0 0.0
    %4951 = vmatprep.subr.mxu0 0.0
    %4952 = vmatpush1.msra.mxu0 0.0
    %4953 = vmatprep.subr.mxu0 0.0
    %4954 = vmatpush1.msra.mxu0 0.0
    %4955 = vmatprep.subr.mxu0 0.0
    %4956 = vmatpush1.msra.mxu0 0.0
    %4957 = vmatprep.subr.mxu0 0.0
    %4958 = vmatpush1.msra.mxu0 0.0
    %4959 = vmatprep.subr.mxu0 0.0
    %4960 = vmatpush1.msra.mxu0 0.0
    %4961 = vmatprep.subr.mxu0 0.0
    %4962 = vmatpush1.msra.mxu0 0.0
    %4963 = vmatprep.subr.mxu0 0.0
    %4964 = vmatpush1.msra.mxu0 0.0
    %4965 = vmatprep.subr.mxu0 0.0
    %4966 = vmatpush1.msra.mxu0 0.0
    %4967 = vmatprep.subr.mxu0 0.0
    %4968 = vmatpush1.msra.mxu0 0.0
    %4969 = vmatprep.subr.mxu0 0.0
    %4970 = vmatpush1.msra.mxu0 0.0
    %4971 = vmatprep.subr.mxu0 0.0
    %4972 = vmatpush1.msra.mxu0 0.0
    %4973 = vmatprep.subr.mxu0 0.0
    %4974 = vmatpush1.msra.mxu0 0.0
    %4975 = vmatprep.subr.mxu0 0.0
    %4976 = vmatpush1.msra.mxu0 0.0
    %4977 = vmatprep.subr.mxu0 0.0
    %4978 = vmatpush1.msra.mxu0 0.0
    %4979 = vmatprep.subr.mxu0 0.0
    %4980 = vmatpush1.msra.mxu0 0.0
    %4981 = vmatprep.subr.mxu0 0.0
    %4982 = vmatpush1.msra.mxu0 0.0
    %4983 = vmatprep.subr.mxu0 0.0
    %4984 = vmatpush1.msra.mxu0 0.0
    %4985 = vmatprep.subr.mxu0 0.0
    %4986 = vmatpush1.msra.mxu0 0.0
    %4987 = vmatprep.subr.mxu0 0.0
    %4988 = vmatpush1.msra.mxu0 0.0
    %4989 = vmatprep.subr.mxu0 0.0
    %4990 = vmatpush1.msra.mxu0 0.0
    %4991 = vmatprep.subr.mxu0 0.0
    %4992 = vmatpush1.msra.mxu0 0.0
    %4993 = vmatprep.subr.mxu0 0.0
    %4994 = vmatpush1.msra.mxu0 0.0
    %4995 = vmatprep.mubr.f32.mxu0 0.0
    %4996 = vmatmul.mubr.f32.gmra.mrb[0].mxu0 %v4926
    %v4997 = vpop.f32.mrb[0].mxu0
    %v4998 = vadd.f32 %v4923, %v4997
    %v4999 = vpop.f32.mrb[0].mxu0
    %5000 = vdwg.mxu0
    %v5001 = vmax.f32 %v4998, 0.0
    %v5002 = vlaneseq
    %v5003 = vshrl.u32 %v5002, 7
    %v5004 = vsub.s32 0, %v5003
    %v5005 = vrot.slane %v4895, %v5004
    %v5007 = vsel %vm4924, %v5001, 0
    %v5010 = vsel %vm4485, %v4893, 0
    %5012 = vmatprep.subr.mxu0 0.0
    %5013 = vmatpush1.msra.mxu0 %v4892
    %5014 = vmatprep.subr.mxu0 0.0
    %5015 = vmatpush1.msra.mxu0 %v5010
    %5016 = vmatprep.subr.mxu0 0.0
    %5017 = vmatpush1.msra.mxu0 0.0
    %5018 = vmatprep.subr.mxu0 0.0
    %5019 = vmatpush1.msra.mxu0 0.0
    %5020 = vmatprep.subr.mxu0 0.0
    %5021 = vmatpush1.msra.mxu0 0.0
    %5022 = vmatprep.subr.mxu0 0.0
    %5023 = vmatpush1.msra.mxu0 0.0
    %5024 = vmatprep.subr.mxu0 0.0
    %5025 = vmatpush1.msra.mxu0 0.0
    %5026 = vmatprep.subr.mxu0 0.0
    %5027 = vmatpush1.msra.mxu0 0.0
    %5028 = vmatprep.subr.mxu0 0.0
    %5029 = vmatpush1.msra.mxu0 0.0
    %5030 = vmatprep.subr.mxu0 0.0
    %5031 = vmatpush1.msra.mxu0 0.0
    %5032 = vmatprep.subr.mxu0 0.0
    %5033 = vmatpush1.msra.mxu0 0.0
    %5034 = vmatprep.subr.mxu0 0.0
    %5035 = vmatpush1.msra.mxu0 0.0
    %5036 = vmatprep.subr.mxu0 0.0
    %5037 = vmatpush1.msra.mxu0 0.0
    %5038 = vmatprep.subr.mxu0 0.0
    %5039 = vmatpush1.msra.mxu0 0.0
    %5040 = vmatprep.subr.mxu0 0.0
    %5041 = vmatpush1.msra.mxu0 0.0
    %5042 = vmatprep.subr.mxu0 0.0
    %5043 = vmatpush1.msra.mxu0 0.0
    %5044 = vmatprep.subr.mxu0 0.0
    %5045 = vmatpush1.msra.mxu0 0.0
    %5046 = vmatprep.subr.mxu0 0.0
    %5047 = vmatpush1.msra.mxu0 0.0
    %5048 = vmatprep.subr.mxu0 0.0
    %5049 = vmatpush1.msra.mxu0 0.0
    %5050 = vmatprep.subr.mxu0 0.0
    %5051 = vmatpush1.msra.mxu0 0.0
    %5052 = vmatprep.subr.mxu0 0.0
    %5053 = vmatpush1.msra.mxu0 0.0
    %5054 = vmatprep.subr.mxu0 0.0
    %5055 = vmatpush1.msra.mxu0 0.0
    %5056 = vmatprep.subr.mxu0 0.0
    %5057 = vmatpush1.msra.mxu0 0.0
    %5058 = vmatprep.subr.mxu0 0.0
    %5059 = vmatpush1.msra.mxu0 0.0
    %5060 = vmatprep.subr.mxu0 0.0
    %5061 = vmatpush1.msra.mxu0 0.0
    %5062 = vmatprep.subr.mxu0 0.0
    %5063 = vmatpush1.msra.mxu0 0.0
    %5064 = vmatprep.subr.mxu0 0.0
    %5065 = vmatpush1.msra.mxu0 0.0
    %5066 = vmatprep.subr.mxu0 0.0
    %5067 = vmatpush1.msra.mxu0 0.0
    %5068 = vmatprep.subr.mxu0 0.0
    %5069 = vmatpush1.msra.mxu0 0.0
    %5070 = vmatprep.subr.mxu0 0.0
    %5071 = vmatpush1.msra.mxu0 0.0
    %5072 = vmatprep.subr.mxu0 0.0
    %5073 = vmatpush1.msra.mxu0 0.0
    %5074 = vmatprep.subr.mxu0 0.0
    %5075 = vmatpush1.msra.mxu0 0.0
    %5076 = vmatprep.mubr.f32.mxu0 0.0
    %5077 = vmatmul.mubr.f32.gmra.mrb[0].mxu0 %v5007
    %v5078 = vpop.f32.mrb[0].mxu0
    %v5079 = vadd.f32 %v5005, %v5078
    %v5080 = vpop.f32.mrb[0].mxu0
    %5081 = vdwg.mxu0
    %v5082 = vmul.f32 %v5079, %v114
    %v5083 = vadd.f32 %v5082, %v99
    %5084 = vst.msk [vmem:[#allocation2] sm:$0x3] %vm84, %v5083
    // Predicated region
    $region22: #{tpu_custom_call.1} parent=1 // pred_check
      _
    $region23: #{tpu_custom_call.1} parent=1 // pred_check_branch
      %5086 = sbr.rel (0) target = $region25
    $region24: #{tpu_custom_call.1} parent=1 // pred_region
      %s5088 = ssub.s32 32, 32
      %5089 = vsyncadd [#allocation3], %s5088
      %s5091 = sshll.u32 [#allocation2], 4
      %s5092 = int_to_ptr.vmem [resolvable:$true] %s5091
      %5094 = dma.vmem_to_hbm [thread:$0]  %s5092, 32, %s5, [#allocation3]
    $region25: #{tpu_custom_call.1} parent=1 // pred_fallthru
      _
    // Predicated region
    $region26: #{tpu_custom_call.1} parent=1 // pred_check
      _
    $region27: #{tpu_custom_call.1} parent=1 // pred_check_branch
      %5096 = sbr.rel (0) target = $region29
    $region28: #{tpu_custom_call.1} parent=1 // pred_region
      %5097 = dma.done [#allocation3], 32
    $region29: #{tpu_custom_call.1} parent=1 // pred_fallthru
      _
    %5098 = vsyncpa [#allocation3], 1

</llo_original>
